<compile_context>
chip_gen: v7x
topology: tpu7x:2x2x1
jax: 0.10.0
libtpu: 0.0.40
codegen_flags: <defaults>
</compile_context>

<pallas_src>
import dataclasses
import functools
import math

import jax
import jax.numpy as jnp
import numpy as np
from jax.experimental import pallas as pl
from jax.experimental.pallas import tpu as pltpu

LANE = 128


def _round_up(x, m):
    return ((x + m - 1) // m) * m


def _pad2(x, rows, cols):
    return jnp.pad(x, ((0, rows - x.shape[0]), (0, cols - x.shape[1])))


def _vmem_capacity_bytes():
    try:
        cap = int(pltpu.get_tpu_info().vmem_capacity_bytes)
        if cap > 0:
            return cap
    except Exception:
        pass
    return 64 * 1024 * 1024  # conservative (v7x-sized) default


_TILE_CANDIDATES = ((512, 512), (256, 512), (256, 256), (128, 256), (128, 128))


def _pick_config(fin_pad, fout_pad):
    """Per-generation (tm, tk, vmem_limit_bytes): large tiles + ~96 MiB budget
    on 128 MiB parts (v5e/v6e), tighter 48 MiB budget on v7x's 64 MiB."""
    cap = _vmem_capacity_bytes()
    limit = 96 * 1024 * 1024 if cap >= (100 << 20) else 48 * 1024 * 1024
    for tm, tk in _TILE_CANDIDATES:
        need = (2 * tm * tk                        # int8 mask, double-buffered
                + 2 * tk * fin_pad * 2             # bf16 hdelta K-stream
                + 2 * tm * fin_pad * 4             # f32 H_dst tile
                + 2 * tm * fin_pad * 4             # f32 agg_hbar tile
                + 2 * 2 * fin_pad * fout_pad * 2   # bf16 W1+W2 (worst case 2 bufs)
                + tm * fin_pad * 4                 # f32 accumulator scratch
                + 2 * tm * fout_pad * 4            # f32 out tile
                + (4 << 20))                       # Mosaic internal slack
        if need <= limit:
            return tm, tk, limit
    return 128, 128, limit


@functools.lru_cache(maxsize=1)
def _single_buffer_supported():
    """Probe pipeline_mode=pl.Buffered(1) (disable double-buffering for
    grid-invariant operands).  Runs a tiny kernel once; False on old jax."""
    try:
        def k(x_ref, o_ref):
            o_ref[...] = x_ref[...] * 2.0

        f = pl.pallas_call(
            k,
            out_shape=jax.ShapeDtypeStruct((8, LANE), jnp.float32),
            grid=(2,),
            in_specs=[pl.BlockSpec((8, LANE), lambda i: (0, 0),
                                   pipeline_mode=pl.Buffered(1))],
            out_specs=pl.BlockSpec((8, LANE), lambda i: (0, 0)),
        )
        jax.block_until_ready(f(jnp.ones((8, LANE), jnp.float32)))
        return True
    except Exception:
        return False


def _sage_cv_layer_kernel(adj_ref, hdelta_ref, hsrc_ref, agg_ref, invdeg_ref,
                          w1_ref, w2_ref, b_ref, out_ref, acc_ref, *,
                          apply_relu):
    """Grid = (dst tiles i, src/K tiles k).  Per dst tile:
         acc     = sum_k mask[i,k] @ hdelta[k]            (neighbour sum)
         h_neigh = agg_hbar_dst[i] + acc * (1/deg)[i]     (exact mean + CV)
         out[i]  = relu?( H_dst[i] @ W1 + h_neigh @ W2 + b )
    """
    k = pl.program_id(1)

    @pl.when(k == 0)
    def _():
        acc_ref[...] = jnp.zeros_like(acc_ref)

    # int8 0/1 mask -> bf16 (exact values), summed on the MXU in f32.
    mask = adj_ref[...].astype(jnp.float32).astype(jnp.bfloat16)
    acc_ref[...] += jnp.dot(mask, hdelta_ref[...],
                            preferred_element_type=jnp.float32)

    @pl.when(k == pl.num_programs(1) - 1)
    def _():
        # exact mean: f32 per-row 1/deg applied once, after the summation
        h_neigh = agg_ref[...] + acc_ref[...] * invdeg_ref[...]       # f32 VPU
        h_dst = hsrc_ref[...].astype(jnp.bfloat16)
        # two MXU dots instead of a fused concat-linear (no VMEM copy/relayout)
        z = (jnp.dot(h_dst, w1_ref[...], preferred_element_type=jnp.float32)
             + jnp.dot(h_neigh.astype(jnp.bfloat16), w2_ref[...],
                       preferred_element_type=jnp.float32)
             + b_ref[...])
        if apply_relu:
            z = jnp.maximum(z, 0.0)                                    # f32 ReLU
        out_ref[...] = z


def _sage_cv_layer_impl(adj_mask, inv_deg, h_src, hbar_src, agg_hbar_dst,
                        w1, w2, b, *, apply_relu, tm, tk, vmem_limit_bytes,
                        single_buffer_weights):
    """One SAGEConvWithCV layer (training path).  All operands pre-padded:
         adj_mask     (num_dst_p, num_src_p) int8   0/1 neighbour mask
         inv_deg      (num_dst_p, 1)         f32    1/deg (0 for padded rows)
         h_src        (num_src_p, fin_pad)   f32    current activations
         hbar_src     (num_src_p, fin_pad)   f32    historical activations
         agg_hbar_dst (num_dst_p, fin_pad)   f32    aggregated history
         w1, w2       (fin_pad, fout_pad)    bf16
         b            (1, fout_pad)          f32
    Returns the padded (num_dst_p, fout_pad) f32 output (sliced only after the
    last layer)."""
    num_dst_p, num_src_p = adj_mask.shape
    num_src_rows, fin_pad = h_src.shape
    fout_pad = w1.shape[1]
    assert num_dst_p % tm == 0 and num_src_p % tk == 0
    assert num_src_rows == num_src_p and num_src_rows % tm == 0
    assert hbar_src.shape == h_src.shape and w1.shape[0] == fin_pad

    # Control-variate delta hoisted out of the kernel (fused by XLA under jit)
    # so only ONE bf16 (num_src, fin) tensor streams along the K axis.
    hdelta = (h_src - hbar_src).astype(jnp.bfloat16)

    grid = (num_dst_p // tm, num_src_p // tk)
    kernel = functools.partial(_sage_cv_layer_kernel, apply_relu=apply_relu)

    def const_spec(shape):
        # grid-invariant operand: single-buffer it if the jax version allows
        if single_buffer_weights:
            return pl.BlockSpec(shape, lambda i, k: (0, 0),
                                pipeline_mode=pl.Buffered(1))
        return pl.BlockSpec(shape, lambda i, k: (0, 0))

    return pl.pallas_call(
        kernel,
        out_shape=jax.ShapeDtypeStruct((num_dst_p, fout_pad), jnp.float32),
        grid=grid,
        in_specs=[
            pl.BlockSpec((tm, tk), lambda i, k: (i, k)),           # int8 mask
            pl.BlockSpec((tk, fin_pad), lambda i, k: (k, 0)),      # hdelta K-tile
            pl.BlockSpec((tm, fin_pad), lambda i, k: (i, 0)),      # H_dst (f32)
            pl.BlockSpec((tm, fin_pad), lambda i, k: (i, 0)),      # agg_hbar
            pl.BlockSpec((tm, 1), lambda i, k: (i, 0)),            # 1/deg
            const_spec((fin_pad, fout_pad)),                       # W1
            const_spec((fin_pad, fout_pad)),                       # W2
            const_spec((1, fout_pad)),                             # bias
        ],
        out_specs=pl.BlockSpec((tm, fout_pad), lambda i, k: (i, 0)),
        scratch_shapes=[pltpu.VMEM((tm, fin_pad), jnp.float32)],   # f32 acc
        compiler_params=pltpu.CompilerParams(
            dimension_semantics=("parallel", "arbitrary"),
            vmem_limit_bytes=vmem_limit_bytes,
        ),
    )(adj_mask, hdelta, h_src, agg_hbar_dst, inv_deg, w1, w2, b)


sage_cv_layer = jax.jit(
    _sage_cv_layer_impl,
    static_argnames=("apply_relu", "tm", "tk", "vmem_limit_bytes",
                     "single_buffer_weights"))


@dataclasses.dataclass
class _LayerParams:
    w1: jax.Array
    w2: jax.Array
    b: jax.Array
    fin: int
    fout: int
    fin_pad: int
    fout_pad: int


class SAGEPallas:
    """Mirror of SAGE(in_feats, n_hidden, n_classes, n_layers, F.relu) in
    training mode (control-variate path).  The eval path is the same kernel
    with hist = 0 and agg_hist = 0."""

    def __init__(self, in_feats, n_hidden, n_classes, n_layers, key):
        self.n_layers = n_layers
        self.n_classes = n_classes
        dims = [in_feats] + [n_hidden] * (n_layers - 1) + [n_classes]
        self.params = []
        for l in range(n_layers):
            fin, fout = dims[l], dims[l + 1]
            key, sub = jax.random.split(key)
            # xavier_uniform_ with gain = calculate_gain('relu') = sqrt(2),
            # Linear weight shape (out_feats, 2 * in_feats), bias = 0.
            gain = math.sqrt(2.0)
            bound = gain * math.sqrt(6.0 / (2 * fin + fout))
            W = jax.random.uniform(sub, (fout, 2 * fin), jnp.float32,
                                   -bound, bound)
            fin_p, fout_p = _round_up(fin, LANE), _round_up(fout, LANE)
            w1 = _pad2(W[:, :fin].T, fin_p, fout_p).astype(jnp.bfloat16)
            w2 = _pad2(W[:, fin:].T, fin_p, fout_p).astype(jnp.bfloat16)
            b = jnp.zeros((1, fout_p), jnp.float32)
            self.params.append(_LayerParams(w1, w2, b, fin, fout, fin_p, fout_p))

        max_fin_p = max(p.fin_pad for p in self.params)
        max_fout_p = max(p.fout_pad for p in self.params)
        self.tm, self.tk, self.vmem_limit_bytes = _pick_config(max_fin_p,
                                                               max_fout_p)
        # common node padding so padded activations chain across layers
        # (dst rows of layer l == src rows of layer l+1, no re-pad glue)
        self.node_pad = max(self.tm, self.tk)
        self.single_buffer = _single_buffer_supported()

    def prepare_block(self, mask, hist_src, agg_hist_dst, layer_idx):
        """One-time per-block preprocessing (constant across training steps):
        padded int8 0/1 mask, f32 1/deg (0 for zero-degree / padded rows),
        padded history tensors.  Hoisted out of the per-step hot path."""
        p = self.params[layer_idx]
        nd, ns = mask.shape
        nd_p = _round_up(nd, self.node_pad)
        ns_p = _round_up(ns, self.node_pad)
        deg = jnp.sum(mask, axis=1, keepdims=True)
        inv_deg = jnp.where(deg > 0, 1.0 / jnp.maximum(deg, 1.0), 0.0)
        return {
            "mask": _pad2(mask, nd_p, ns_p).astype(jnp.int8),
            "inv_deg": _pad2(inv_deg.astype(jnp.float32), nd_p, 1),
            "hist_src": _pad2(hist_src.astype(jnp.float32), ns_p, p.fin_pad),
            "agg_hist_dst": _pad2(agg_hist_dst.astype(jnp.float32), nd_p,
                                  p.fin_pad),
            "num_dst": nd,
        }

    def __call__(self, blocks, features):
        ns0_p = blocks[0]["mask"].shape[1]
        h = _pad2(features.astype(jnp.float32), ns0_p, self.params[0].fin_pad)
        for l, (blk, p) in enumerate(zip(blocks, self.params)):
            h = sage_cv_layer(
                blk["mask"], blk["inv_deg"], h, blk["hist_src"],
                blk["agg_hist_dst"], p.w1, p.w2, p.b,
                apply_relu=(l != self.n_layers - 1),  # last layer: no activation
                tm=self.tm, tk=self.tk,
                vmem_limit_bytes=self.vmem_limit_bytes,
                single_buffer_weights=self.single_buffer)
        # slice away node/feature padding once, after the last layer
        return h[:blocks[-1]["num_dst"], :self.n_classes]

    def reference(self, raw_blocks, features):
        """Pure-JAX reference with the same bf16-operand / f32-accum numerics."""
        h = features
        for l, (blk, p) in enumerate(zip(raw_blocks, self.params)):
            mask = blk["mask"]
            deg = jnp.sum(mask, axis=1, keepdims=True)
            inv_deg = jnp.where(deg > 0, 1.0 / jnp.maximum(deg, 1.0), 0.0)
            hdelta = (h - blk["hist_src"]).astype(jnp.bfloat16)
            agg = jnp.dot(mask.astype(jnp.bfloat16), hdelta,
                          preferred_element_type=jnp.float32) * inv_deg
            h_neigh = blk["agg_hist_dst"] + agg
            h_dst = h[:mask.shape[0]].astype(jnp.bfloat16)
            w1 = p.w1[:p.fin, :p.fout]
            w2 = p.w2[:p.fin, :p.fout]
            z = (jnp.dot(h_dst, w1, preferred_element_type=jnp.float32)
                 + jnp.dot(h_neigh.astype(jnp.bfloat16), w2,
                           preferred_element_type=jnp.float32)
                 + p.b[:, :p.fout])
            if l != self.n_layers - 1:
                z = jnp.maximum(z, 0.0)
            h = z
        return h


if __name__ == "__main__":
    key = jax.random.PRNGKey(0)

    in_feats, n_hidden, n_classes, n_layers = 16, 32, 8, 2
    # node counts along the block chain: 64 src -> 32 dst(=src of layer1) -> 16 dst
    num_nodes = [64, 32, 16]
    layer_in_dims = [in_feats] + [n_hidden] * (n_layers - 1)

    key, model_key = jax.random.split(key)
    model = SAGEPallas(in_feats, n_hidden, n_classes, n_layers, model_key)

    # Deterministic synthetic "blocks": 0/1 neighbour masks + CV histories.
    raw_blocks = []
    for l in range(n_layers):
        n_src, n_dst = num_nodes[l], num_nodes[l + 1]
        key, k_adj, k_hist = jax.random.split(key, 3)
        mask = (jax.random.uniform(k_adj, (n_dst, n_src)) < 0.3).astype(jnp.float32)
        # dst node i is also src node i in a DGL block -> guarantee a self edge
        # (smoke-test only; changes pure-neighbor-mean semantics slightly)
        mask = jnp.maximum(mask, jnp.eye(n_dst, n_src, dtype=jnp.float32))
        deg = jnp.sum(mask, axis=1, keepdims=True)
        hist_src = jax.random.normal(k_hist, (n_src, layer_in_dims[l]), jnp.float32)
        agg_hist_dst = (mask @ hist_src) / deg   # exact mean of history (input data)
        raw_blocks.append({"mask": mask, "hist_src": hist_src,
                           "agg_hist_dst": agg_hist_dst})

    blocks = [model.prepare_block(b["mask"], b["hist_src"], b["agg_hist_dst"], l)
              for l, b in enumerate(raw_blocks)]

    key, k_feat = jax.random.split(key)
    features = jax.random.normal(k_feat, (num_nodes[0], in_feats), jnp.float32)

    out = model(blocks, features)
    jax.block_until_ready(out)
    assert out.shape == (num_nodes[-1], n_classes)
    assert out.dtype == jnp.float32

    ref = model.reference(raw_blocks, features)
    jax.block_until_ready(ref)
    np.testing.assert_allclose(np.asarray(out), np.asarray(ref),
                               rtol=2e-2, atol=2e-2)

    print("KERNEL_OK")
</pallas_src>

<mosaic_0001>
module attributes {stable_mosaic.version = 11 : i64} {
  func.func @k(%arg0: i32, %arg1: memref<8x128xf32, #tpu.memory_space<vmem>>, %arg2: memref<8x128xf32, #tpu.memory_space<vmem>>) attributes {dimension_semantics = [#tpu.dimension_semantics<arbitrary>], iteration_bounds = array<i64: 2>, scalar_prefetch = 0 : i64, scratch_operands = 0 : i64, tpu.core_type = #tpu.core_type<tc>, window_params = [{pipeline_mode = #tpu.pipeline_mode<synchronous>, transform_indices = @transform_0, window_bounds = array<i64: 8, 128>}, {pipeline_mode = #tpu.pipeline_mode<synchronous>, transform_indices = @transform_1, window_bounds = array<i64: 8, 128>}]} {
    %c0 = arith.constant 0 : index
    %c0_0 = arith.constant 0 : index
    %0 = vector.load %arg1[%c0, %c0_0] : memref<8x128xf32, #tpu.memory_space<vmem>>, vector<8x128xf32>
    %cst = arith.constant 2.000000e+00 : f32
    %1 = vector.broadcast %cst : f32 to vector<8x128xf32>
    %2 = arith.mulf %0, %1 : vector<8x128xf32>
    %c0_1 = arith.constant 0 : index
    %c0_2 = arith.constant 0 : index
    %3 = vector.load %arg2[%c0_1, %c0_2] : memref<8x128xf32, #tpu.memory_space<vmem>>, vector<8x128xf32>
    tpu.vector_store %arg2[%c0_1, %c0_2], %2 {strides = array<i32>} : memref<8x128xf32, #tpu.memory_space<vmem>>, vector<8x128xf32>,
    return
  }
  func.func @transform_0(%arg0: i32) -> (i32, i32) {
    %c0_i32 = arith.constant 0 : i32
    %c0_i32_0 = arith.constant 0 : i32
    %c0_i32_1 = arith.constant 0 : i32
    return %c0_i32, %c0_i32_0 : i32, i32
  }
  func.func @transform_1(%arg0: i32) -> (i32, i32) {
    %c0_i32 = arith.constant 0 : i32
    %c0_i32_0 = arith.constant 0 : i32
    %c0_i32_1 = arith.constant 0 : i32
    return %c0_i32, %c0_i32_0 : i32, i32
  }
}

module attributes {stable_mosaic.version = 11 : i64} {
  func.func @_sage_cv_layer_kernel(%arg0: i32, %arg1: i32, %arg2: memref<512x512xi8, #tpu.memory_space<vmem>>, %arg3: memref<512x128xbf16, #tpu.memory_space<vmem>>, %arg4: memref<512x128xf32, #tpu.memory_space<vmem>>, %arg5: memref<512x128xf32, #tpu.memory_space<vmem>>, %arg6: memref<512x1xf32, #tpu.memory_space<vmem>>, %arg7: memref<128x128xbf16, #tpu.memory_space<vmem>>, %arg8: memref<128x128xbf16, #tpu.memory_space<vmem>>, %arg9: memref<1x128xf32, #tpu.memory_space<vmem>>, %arg10: memref<512x128xf32, #tpu.memory_space<vmem>>, %arg11: memref<512x128xf32, #tpu.memory_space<vmem>>) attributes {dimension_semantics = [#tpu.dimension_semantics<parallel>, #tpu.dimension_semantics<arbitrary>], iteration_bounds = array<i64: 1, 1>, scalar_prefetch = 0 : i64, scratch_operands = 1 : i64, tpu.core_type = #tpu.core_type<tc>, window_params = [{transform_indices = @transform_0, window_bounds = array<i64: 512, 512>}, {transform_indices = @transform_1, window_bounds = array<i64: 512, 128>}, {transform_indices = @transform_2, window_bounds = array<i64: 512, 128>}, {transform_indices = @transform_3, window_bounds = array<i64: 512, 128>}, {transform_indices = @transform_4, window_bounds = array<i64: 512, 1>}, {pipeline_mode = #tpu.pipeline_mode<synchronous>, transform_indices = @transform_5, window_bounds = array<i64: 128, 128>}, {pipeline_mode = #tpu.pipeline_mode<synchronous>, transform_indices = @transform_6, window_bounds = array<i64: 128, 128>}, {pipeline_mode = #tpu.pipeline_mode<synchronous>, transform_indices = @transform_7, window_bounds = array<i64: 1, 128>}, {transform_indices = @transform_8, window_bounds = array<i64: 512, 128>}]} {
    %c0_i32 = arith.constant 0 : i32
    %0 = arith.cmpi eq, %arg1, %c0_i32 : i32
    %1 = arith.extui %0 : i1 to i32
    %c0_i32_0 = arith.constant 0 : i32
    %2 = arith.cmpi ne, %1, %c0_i32_0 : i32
    scf.if %2 {
      %cst_10 = arith.constant 0.000000e+00 : f32
      %14 = vector.broadcast %cst_10 : f32 to vector<512x128xf32>
      %c0_11 = arith.constant 0 : index
      %c0_12 = arith.constant 0 : index
      %15 = vector.load %arg11[%c0_11, %c0_12] : memref<512x128xf32, #tpu.memory_space<vmem>>, vector<512x128xf32>
      tpu.vector_store %arg11[%c0_11, %c0_12], %14 {strides = array<i32>} : memref<512x128xf32, #tpu.memory_space<vmem>>, vector<512x128xf32>,
    } else {
    }
    %c0 = arith.constant 0 : index
    %c0_1 = arith.constant 0 : index
    %3 = vector.load %arg2[%c0, %c0_1] : memref<512x512xi8, #tpu.memory_space<vmem>>, vector<512x512xi8>
    %4 = arith.sitofp %3 : vector<512x512xi8> to vector<512x512xf32>
    %5 = arith.truncf %4 : vector<512x512xf32> to vector<512x512xbf16>
    %c0_2 = arith.constant 0 : index
    %c0_3 = arith.constant 0 : index
    %6 = vector.load %arg11[%c0_2, %c0_3] : memref<512x128xf32, #tpu.memory_space<vmem>>, vector<512x128xf32>
    %c0_4 = arith.constant 0 : index
    %c0_5 = arith.constant 0 : index
    %7 = vector.load %arg3[%c0_4, %c0_5] : memref<512x128xbf16, #tpu.memory_space<vmem>>, vector<512x128xbf16>
    %cst = arith.constant dense<0.000000e+00> : vector<512x128xf32>
    %8 = tpu.matmul %5, %7, %cst {dimension_numbers = #tpu.dot_dimension_numbers<[1], [0], [0], [1], [0, 0, 1, 1], [], []>} : vector<512x512xbf16>, vector<512x128xbf16>, vector<512x128xf32> -> vector<512x128xf32>
    %9 = arith.addf %6, %8 : vector<512x128xf32>
    %c0_6 = arith.constant 0 : index
    %c0_7 = arith.constant 0 : index
    %10 = vector.load %arg11[%c0_6, %c0_7] : memref<512x128xf32, #tpu.memory_space<vmem>>, vector<512x128xf32>
    tpu.vector_store %arg11[%c0_6, %c0_7], %9 {strides = array<i32>} : memref<512x128xf32, #tpu.memory_space<vmem>>, vector<512x128xf32>,
    %c0_i32_8 = arith.constant 0 : i32
    %11 = arith.cmpi eq, %arg1, %c0_i32_8 : i32
    %12 = arith.extui %11 : i1 to i32
    %c0_i32_9 = arith.constant 0 : i32
    %13 = arith.cmpi ne, %12, %c0_i32_9 : i32
    scf.if %13 {
      %c0_10 = arith.constant 0 : index
      %c0_11 = arith.constant 0 : index
      %14 = vector.load %arg5[%c0_10, %c0_11] : memref<512x128xf32, #tpu.memory_space<vmem>>, vector<512x128xf32>
      %c0_12 = arith.constant 0 : index
      %c0_13 = arith.constant 0 : index
      %15 = vector.load %arg11[%c0_12, %c0_13] : memref<512x128xf32, #tpu.memory_space<vmem>>, vector<512x128xf32>
      %c0_14 = arith.constant 0 : index
      %c0_15 = arith.constant 0 : index
      %16 = vector.load %arg6[%c0_14, %c0_15] : memref<512x1xf32, #tpu.memory_space<vmem>>, vector<512x1xf32>
      %17 = vector.broadcast %16 : vector<512x1xf32> to vector<512x128xf32>
      %18 = arith.mulf %15, %17 : vector<512x128xf32>
      %19 = arith.addf %14, %18 : vector<512x128xf32>
      %c0_16 = arith.constant 0 : index
      %c0_17 = arith.constant 0 : index
      %20 = vector.load %arg4[%c0_16, %c0_17] : memref<512x128xf32, #tpu.memory_space<vmem>>, vector<512x128xf32>
      %21 = arith.truncf %20 : vector<512x128xf32> to vector<512x128xbf16>
      %c0_18 = arith.constant 0 : index
      %c0_19 = arith.constant 0 : index
      %22 = vector.load %arg7[%c0_18, %c0_19] : memref<128x128xbf16, #tpu.memory_space<vmem>>, vector<128x128xbf16>
      %cst_20 = arith.constant dense<0.000000e+00> : vector<512x128xf32>
      %23 = tpu.matmul %21, %22, %cst_20 {dimension_numbers = #tpu.dot_dimension_numbers<[1], [0], [0], [1], [0, 0, 1, 1], [], []>} : vector<512x128xbf16>, vector<128x128xbf16>, vector<512x128xf32> -> vector<512x128xf32>
      %24 = arith.truncf %19 : vector<512x128xf32> to vector<512x128xbf16>
      %c0_21 = arith.constant 0 : index
      %c0_22 = arith.constant 0 : index
      %25 = vector.load %arg8[%c0_21, %c0_22] : memref<128x128xbf16, #tpu.memory_space<vmem>>, vector<128x128xbf16>
      %cst_23 = arith.constant dense<0.000000e+00> : vector<512x128xf32>
      %26 = tpu.matmul %24, %25, %cst_23 {dimension_numbers = #tpu.dot_dimension_numbers<[1], [0], [0], [1], [0, 0, 1, 1], [], []>} : vector<512x128xbf16>, vector<128x128xbf16>, vector<512x128xf32> -> vector<512x128xf32>
      %27 = arith.addf %23, %26 : vector<512x128xf32>
      %c0_24 = arith.constant 0 : index
      %c0_25 = arith.constant 0 : index
      %28 = vector.load %arg9[%c0_24, %c0_25] : memref<1x128xf32, #tpu.memory_space<vmem>>, vector<1x128xf32>
      %29 = vector.broadcast %28 : vector<1x128xf32> to vector<512x128xf32>
      %30 = arith.addf %27, %29 : vector<512x128xf32>
      %cst_26 = arith.constant 0.000000e+00 : f32
      %31 = vector.broadcast %cst_26 : f32 to vector<512x128xf32>
      %32 = arith.maximumf %30, %31 : vector<512x128xf32>
      %c0_27 = arith.constant 0 : index
      %c0_28 = arith.constant 0 : index
      %33 = vector.load %arg10[%c0_27, %c0_28] : memref<512x128xf32, #tpu.memory_space<vmem>>, vector<512x128xf32>
      tpu.vector_store %arg10[%c0_27, %c0_28], %32 {strides = array<i32>} : memref<512x128xf32, #tpu.memory_space<vmem>>, vector<512x128xf32>,
    } else {
    }
    return
  }
  func.func @transform_0(%arg0: i32, %arg1: i32) -> (i32, i32) {
    %c0_i32 = arith.constant 0 : i32
    return %arg0, %arg1 : i32, i32
  }
  func.func @transform_1(%arg0: i32, %arg1: i32) -> (i32, i32) {
    %c0_i32 = arith.constant 0 : i32
    %c0_i32_0 = arith.constant 0 : i32
    return %arg1, %c0_i32 : i32, i32
  }
  func.func @transform_2(%arg0: i32, %arg1: i32) -> (i32, i32) {
    %c0_i32 = arith.constant 0 : i32
    %c0_i32_0 = arith.constant 0 : i32
    return %arg0, %c0_i32 : i32, i32
  }
  func.func @transform_3(%arg0: i32, %arg1: i32) -> (i32, i32) {
    %c0_i32 = arith.constant 0 : i32
    %c0_i32_0 = arith.constant 0 : i32
    return %arg0, %c0_i32 : i32, i32
  }
  func.func @transform_4(%arg0: i32, %arg1: i32) -> (i32, i32) {
    %c0_i32 = arith.constant 0 : i32
    %c0_i32_0 = arith.constant 0 : i32
    return %arg0, %c0_i32 : i32, i32
  }
  func.func @transform_5(%arg0: i32, %arg1: i32) -> (i32, i32) {
    %c0_i32 = arith.constant 0 : i32
    %c0_i32_0 = arith.constant 0 : i32
    %c0_i32_1 = arith.constant 0 : i32
    return %c0_i32, %c0_i32_0 : i32, i32
  }
  func.func @transform_6(%arg0: i32, %arg1: i32) -> (i32, i32) {
    %c0_i32 = arith.constant 0 : i32
    %c0_i32_0 = arith.constant 0 : i32
    %c0_i32_1 = arith.constant 0 : i32
    return %c0_i32, %c0_i32_0 : i32, i32
  }
  func.func @transform_7(%arg0: i32, %arg1: i32) -> (i32, i32) {
    %c0_i32 = arith.constant 0 : i32
    %c0_i32_0 = arith.constant 0 : i32
    %c0_i32_1 = arith.constant 0 : i32
    return %c0_i32, %c0_i32_0 : i32, i32
  }
  func.func @transform_8(%arg0: i32, %arg1: i32) -> (i32, i32) {
    %c0_i32 = arith.constant 0 : i32
    %c0_i32_0 = arith.constant 0 : i32
    return %arg0, %c0_i32 : i32, i32
  }
}

</mosaic_0001>

<llo_original>
// kernel: tpu_custom_call.1
$region0: #{tpu_custom_call.1}
  #allocation0 [shape = 'u32[]', space=smem, size = 0x4, offset = 0x4, fixed_abs, tag = 'smem constant byte address 0x4 - core index']
  #allocation1 [shape = 'u32[144,128]{1,0:T(1,128)}', space=vmem, size = 0x12000, scoped, tag = 'internal scratch']
  %s0 = inlined_call_operand.hbm [shape: f32[8,128], index: 0, kind: input, shape index: {}]
  %s1 = inlined_call_operand.hbm [shape: f32[8,128], index: 1, kind: output, shape index: {}]
  %s2 = sld [smem:[#allocation0]]
  $region41: #{tpu_custom_call.1} parent=0
    _
  %s4 = ssub.s32 1, %s2
  %s5 = scalar_select 0, %s4, %s2
  $region1: #{tpu_custom_call.1} parent=0
    #allocation2 [shape = 'u8[4096]{0}', space=vmem, size = 0x1000, scoped, tag = 'input window, operand 0, single buffered']
    #allocation3 [shape = 's32[2]{0}', space=sflag, size = 0x8, scoped, tag = 'scoped memory for tpu_custom_call.1']
    #allocation4 [shape = 's32[2]{0}', space=sflag, size = 0x8, scoped, tag = 'scoped memory for tpu_custom_call.1']
    #allocation5 [shape = 'u8[4096]{0}', space=vmem, size = 0x1000, scoped, tag = 'output window, operand 0, single buffered']
    %6 = vsyncpa [#allocation3], 0
    %7 = vsyncpa [#allocation4], 0
    loop: start=0, step=1, limit=4
    $region2: #{tpu_custom_call.1} parent=1 // loop_pre_header
      _
    $region3: #{tpu_custom_call.1} parent=1 // loop_header
      %s9 = sphi 0, %s13
      %p10 = scmp.ge.s32.totalorder %s9, 4
      %s17 = sphi 0, %s17
      %s19 = sphi 0, %s17
      %s20 = sphi 0, %s19
      %s34 = sphi 0, %s20
      %s38 = sphi 0, %s38
      %s40 = sphi 0, %s38
      %s41 = sphi 0, %s40
      %s55 = sphi 0, %s41
    $region4: #{tpu_custom_call.1} parent=1 // loop_header_branch
      %12 = sbr.rel (%p10) target = $region8
    $region5: #{tpu_custom_call.1} parent=1 // loop_body
      %s14 = ssub.s32 %s9, 1
      %s15 = ssub.s32 %s9, 2
      %s16 = sadd.s32 %s9, 1
      %s18 = sadd.s32 %s17, 1
      %p21 = scmp.eq.s32.totalorder %s9, 1
      %p22 = scmp.ne.s32.totalorder %s17, %s19
      %p23 = scmp.eq.s32.totalorder %s9, 0
      %p24 = por %p22, %p23
      %p25 = scmp.ne.s32.totalorder %s17, %s19
      %p26 = scmp.eq.s32.totalorder %s14, 1
      %p27 = por %p25, %p26
      %p28 = scmp.ne.s32.totalorder %s19, %s20
      %p29 = scmp.eq.s32.totalorder %s14, 0
      %p30 = por %p28, %p29
      %p31 = scmp.ne.s32.totalorder %s19, %s20
      %p32 = scmp.eq.s32.totalorder %s15, 1
      %p33 = por %p31, %p32
      %p35 = scmp.ne.s32.totalorder %s20, %s34
      %p36 = scmp.eq.s32.totalorder %s15, 0
      %p37 = por %p35, %p36
      %s39 = sadd.s32 %s38, 1
      %p42 = scmp.eq.s32.totalorder %s9, 1
      %p43 = scmp.ne.s32.totalorder %s38, %s40
      %p44 = scmp.eq.s32.totalorder %s9, 0
      %p45 = por %p43, %p44
      %p46 = scmp.ne.s32.totalorder %s38, %s40
      %p47 = scmp.eq.s32.totalorder %s14, 1
      %p48 = por %p46, %p47
      %p49 = scmp.ne.s32.totalorder %s40, %s41
      %p50 = scmp.eq.s32.totalorder %s14, 0
      %p51 = por %p49, %p50
      %p52 = scmp.ne.s32.totalorder %s40, %s41
      %p53 = scmp.eq.s32.totalorder %s15, 1
      %p54 = por %p52, %p53
      %p56 = scmp.ne.s32.totalorder %s41, %s55
      %p57 = scmp.eq.s32.totalorder %s15, 0
      %p58 = por %p56, %p57
      %p59 = scmp.le.s32.totalorder 1, %s9
      %p60 = scmp.lt.s32.totalorder %s9, 3
      %p61 = pnand %p59, %p60
      %p62 = pneg %p61
      // Predicated region
      $region9: #{tpu_custom_call.1} parent=5 // pred_check
        _
      $region10: #{tpu_custom_call.1} parent=5 // pred_check_branch
        %64 = sbr.rel (%p61) target = $region12
      $region11: #{tpu_custom_call.1} parent=5 // pred_region
        %s65 = ssub.s32 %s9, 1
        // Predicated region
        $region13: #{tpu_custom_call.1} parent=11 // pred_check
          %p66 = pneg %p30
        $region14: #{tpu_custom_call.1} parent=11 // pred_check_branch
          %68 = sbr.rel (%p66) target = $region16
        $region15: #{tpu_custom_call.1} parent=11 // pred_region
          %s70 = ssub.s32 128, 128
          %71 = vsyncadd [#allocation3], %s70
          %s73 = sshll.u32 [#allocation2], 4
          %s74 = int_to_ptr.vmem [resolvable:$true] %s73
          %76 = dma.hbm_to_vmem [thread:$0]  %s0, 128, %s74, [#allocation3]
        $region16: #{tpu_custom_call.1} parent=11 // pred_fallthru
          _
      $region12: #{tpu_custom_call.1} parent=5 // pred_fallthru
        _
      %p77 = scmp.lt.s32.totalorder %s9, 2
      // Predicated region
      $region17: #{tpu_custom_call.1} parent=5 // pred_check
        %p78 = pneg %p77
      $region18: #{tpu_custom_call.1} parent=5 // pred_check_branch
        %80 = sbr.rel (%p78) target = $region20
      $region19: #{tpu_custom_call.1} parent=5 // pred_region
        _
      $region20: #{tpu_custom_call.1} parent=5 // pred_fallthru
        _
      %p81 = scmp.le.s32.totalorder 1, %s9
      %p82 = scmp.lt.s32.totalorder %s9, 3
      %p83 = pnand %p81, %p82
      %p84 = pneg %p83
      // Predicated region
      $region21: #{tpu_custom_call.1} parent=5 // pred_check
        _
      $region22: #{tpu_custom_call.1} parent=5 // pred_check_branch
        %86 = sbr.rel (%p83) target = $region24
      $region23: #{tpu_custom_call.1} parent=5 // pred_region
        %s87 = ssub.s32 %s9, 1
        // Predicated region
        $region25: #{tpu_custom_call.1} parent=23 // pred_check
          %p88 = pneg %p30
        $region26: #{tpu_custom_call.1} parent=23 // pred_check_branch
          %90 = sbr.rel (%p88) target = $region28
        $region27: #{tpu_custom_call.1} parent=23 // pred_region
          %91 = dma.done [#allocation3], 128
        $region28: #{tpu_custom_call.1} parent=23 // pred_fallthru
          _
        %p92 = pneg %p30
        %p93 = pneg %p27
        %p94 = pneg %p51
        %p95 = pneg %p48
        %v96 = vld [vmem:[#allocation2] sm:$0xff]
        %v97 = vmul.f32 %v96, 2.0
        %98 = vst [vmem:[#allocation5] sm:$0xff] %v97
        // Predicated region
        $region29: #{tpu_custom_call.1} parent=23 // pred_check
          %p99 = pneg %p48
        $region30: #{tpu_custom_call.1} parent=23 // pred_check_branch
          %101 = sbr.rel (%p99) target = $region32
        $region31: #{tpu_custom_call.1} parent=23 // pred_region
          %s103 = ssub.s32 128, 128
          %104 = vsyncadd [#allocation4], %s103
          %s106 = sshll.u32 [#allocation5], 4
          %s107 = int_to_ptr.vmem [resolvable:$true] %s106
          %109 = dma.vmem_to_hbm [thread:$0]  %s107, 128, %s1, [#allocation4]
        $region32: #{tpu_custom_call.1} parent=23 // pred_fallthru
          _
        // Predicated region
        $region33: #{tpu_custom_call.1} parent=23 // pred_check
          %p110 = pneg %p48
        $region34: #{tpu_custom_call.1} parent=23 // pred_check_branch
          %112 = sbr.rel (%p110) target = $region36
        $region35: #{tpu_custom_call.1} parent=23 // pred_region
          %113 = dma.done [#allocation4], 128
        $region36: #{tpu_custom_call.1} parent=23 // pred_fallthru
          _
      $region24: #{tpu_custom_call.1} parent=5 // pred_fallthru
        _
      %p114 = scmp.le.s32.totalorder 2, %s9
      // Predicated region
      $region37: #{tpu_custom_call.1} parent=5 // pred_check
        %p115 = pneg %p114
      $region38: #{tpu_custom_call.1} parent=5 // pred_check_branch
        %117 = sbr.rel (%p115) target = $region40
      $region39: #{tpu_custom_call.1} parent=5 // pred_region
        %s118 = ssub.s32 %s9, 2
      $region40: #{tpu_custom_call.1} parent=5 // pred_fallthru
        _
    $region6: #{tpu_custom_call.1} parent=1 // loop_footer
      %s13 = sadd.s32 1, %s9
    $region7: #{tpu_custom_call.1} parent=1 // loop_footer_branch
      %8 = sbr.rel target = $region3
    $region8: #{tpu_custom_call.1} parent=1 // loop_exit
      _
    %119 = vsyncpa [#allocation3], 1
    %s120 = scalar_lea.sflag [#allocation3], 1
    %121 = vsyncpa %s120, 1
    %122 = vsyncpa [#allocation4], 1
    %s123 = scalar_lea.sflag [#allocation4], 1
    %124 = vsyncpa %s123, 1

// kernel: _sage_cv_layer_impl.1
$region0: #{_sage_cv_layer_impl.1}
  #allocation0 [shape = 'u32[]', space=smem, size = 0x4, offset = 0x4, fixed_abs, tag = 'smem constant byte address 0x4 - core index']
  #allocation1 [shape = 'u32[144,128]{1,0:T(1,128)}', space=vmem, size = 0x12000, scoped, tag = 'internal scratch']
  #allocation2 [shape = 'f32[512,128]{1,0:T(8,128)}', space=vmem, size = 0x40000, scoped, tag = 'scratch operand']
  %s0 = inlined_call_operand.vmem [shape: s8[512,512], index: 0, kind: input, shape index: {}]
  %s1 = inlined_call_operand.vmem [shape: bf16[512,128], index: 1, kind: input, shape index: {}]
  %s2 = inlined_call_operand.vmem [shape: f32[512,128], index: 2, kind: input, shape index: {}]
  %s3 = inlined_call_operand.vmem [shape: f32[512,128], index: 3, kind: input, shape index: {}]
  %s4 = inlined_call_operand.vmem [shape: f32[512,1], index: 4, kind: input, shape index: {}]
  %s5 = inlined_call_operand.vmem [shape: bf16[128,128], index: 5, kind: input, shape index: {}]
  %s6 = inlined_call_operand.vmem [shape: bf16[128,128], index: 6, kind: input, shape index: {}]
  %s7 = inlined_call_operand.vmem [shape: f32[1,128], index: 7, kind: input, shape index: {}]
  %s8 = inlined_call_operand.hbm [shape: f32[512,128], index: 8, kind: output, shape index: {}]
  %s9 = sld [smem:[#allocation0]]
  $region50: #{_sage_cv_layer_impl.1} parent=0
    _
  %s11 = ssub.s32 1, %s9
  %s12 = scalar_select 0, %s11, %s9
  $region1: #{_sage_cv_layer_impl.1} parent=0
    #allocation3 [shape = 'u8[262144]{0}', space=vmem, size = 0x40000, scoped, tag = 'output window, operand 0, single buffered']
    #allocation4 [shape = 's32[1]{0}', space=sflag, size = 0x4, scoped, tag = 'scoped memory for _sage_cv_layer_impl.1']
    %13 = vsyncpa [#allocation4], 0
    // Predicated region
    $region2: #{_sage_cv_layer_impl.1} parent=1 // pred_check
      _
    $region3: #{_sage_cv_layer_impl.1} parent=1 // pred_check_branch
      %15 = sbr.rel (0) target = $region5
    $region4: #{_sage_cv_layer_impl.1} parent=1 // pred_region
      _
    $region5: #{_sage_cv_layer_impl.1} parent=1 // pred_fallthru
      _
    // Predicated region
    $region6: #{_sage_cv_layer_impl.1} parent=1 // pred_check
      _
    $region7: #{_sage_cv_layer_impl.1} parent=1 // pred_check_branch
      %17 = sbr.rel (0) target = $region9
    $region8: #{_sage_cv_layer_impl.1} parent=1 // pred_region
      _
    $region9: #{_sage_cv_layer_impl.1} parent=1 // pred_fallthru
      _
    // Predicated region
    $region10: #{_sage_cv_layer_impl.1} parent=1 // pred_check
      _
    $region11: #{_sage_cv_layer_impl.1} parent=1 // pred_check_branch
      %19 = sbr.rel (0) target = $region13
    $region12: #{_sage_cv_layer_impl.1} parent=1 // pred_region
      _
    $region13: #{_sage_cv_layer_impl.1} parent=1 // pred_fallthru
      _
    // Predicated region
    $region14: #{_sage_cv_layer_impl.1} parent=1 // pred_check
      _
    $region15: #{_sage_cv_layer_impl.1} parent=1 // pred_check_branch
      %21 = sbr.rel (0) target = $region17
    $region16: #{_sage_cv_layer_impl.1} parent=1 // pred_region
      _
    $region17: #{_sage_cv_layer_impl.1} parent=1 // pred_fallthru
      _
    // Predicated region
    $region18: #{_sage_cv_layer_impl.1} parent=1 // pred_check
      _
    $region19: #{_sage_cv_layer_impl.1} parent=1 // pred_check_branch
      %23 = sbr.rel (0) target = $region21
    $region20: #{_sage_cv_layer_impl.1} parent=1 // pred_region
      _
    $region21: #{_sage_cv_layer_impl.1} parent=1 // pred_fallthru
      _
    // Predicated region
    $region22: #{_sage_cv_layer_impl.1} parent=1 // pred_check
      _
    $region23: #{_sage_cv_layer_impl.1} parent=1 // pred_check_branch
      %25 = sbr.rel (0) target = $region25
    $region24: #{_sage_cv_layer_impl.1} parent=1 // pred_region
      _
    $region25: #{_sage_cv_layer_impl.1} parent=1 // pred_fallthru
      _
    // Predicated region
    $region26: #{_sage_cv_layer_impl.1} parent=1 // pred_check
      _
    $region27: #{_sage_cv_layer_impl.1} parent=1 // pred_check_branch
      %27 = sbr.rel (0) target = $region29
    $region28: #{_sage_cv_layer_impl.1} parent=1 // pred_region
      _
    $region29: #{_sage_cv_layer_impl.1} parent=1 // pred_fallthru
      _
    // Predicated region
    $region30: #{_sage_cv_layer_impl.1} parent=1 // pred_check
      _
    $region31: #{_sage_cv_layer_impl.1} parent=1 // pred_check_branch
      %29 = sbr.rel (0) target = $region33
    $region32: #{_sage_cv_layer_impl.1} parent=1 // pred_region
      _
    $region33: #{_sage_cv_layer_impl.1} parent=1 // pred_fallthru
      _
    %p31 = scmp.eq.s32.totalorder 0, 0
    // Predicated region
    $region34: #{_sage_cv_layer_impl.1} parent=1 // pred_check
      %p32 = pneg %p31
    $region35: #{_sage_cv_layer_impl.1} parent=1 // pred_check_branch
      %34 = sbr.rel (%p32) target = $region37
    $region36: #{_sage_cv_layer_impl.1} parent=1 // pred_region
      %35 = vst [vmem:[#allocation2] sm:$0xff] 0.0
      %36 = vst [vmem:[#allocation2 + $0x8] sm:$0xff] 0.0
      %37 = vst [vmem:[#allocation2 + $0x10] sm:$0xff] 0.0
      %38 = vst [vmem:[#allocation2 + $0x18] sm:$0xff] 0.0
      %39 = vst [vmem:[#allocation2 + $0x20] sm:$0xff] 0.0
      %40 = vst [vmem:[#allocation2 + $0x28] sm:$0xff] 0.0
      %41 = vst [vmem:[#allocation2 + $0x30] sm:$0xff] 0.0
      %42 = vst [vmem:[#allocation2 + $0x38] sm:$0xff] 0.0
      %43 = vst [vmem:[#allocation2 + $0x40] sm:$0xff] 0.0
      %44 = vst [vmem:[#allocation2 + $0x48] sm:$0xff] 0.0
      %45 = vst [vmem:[#allocation2 + $0x50] sm:$0xff] 0.0
      %46 = vst [vmem:[#allocation2 + $0x58] sm:$0xff] 0.0
      %47 = vst [vmem:[#allocation2 + $0x60] sm:$0xff] 0.0
      %48 = vst [vmem:[#allocation2 + $0x68] sm:$0xff] 0.0
      %49 = vst [vmem:[#allocation2 + $0x70] sm:$0xff] 0.0
      %50 = vst [vmem:[#allocation2 + $0x78] sm:$0xff] 0.0
      %51 = vst [vmem:[#allocation2 + $0x80] sm:$0xff] 0.0
      %52 = vst [vmem:[#allocation2 + $0x88] sm:$0xff] 0.0
      %53 = vst [vmem:[#allocation2 + $0x90] sm:$0xff] 0.0
      %54 = vst [vmem:[#allocation2 + $0x98] sm:$0xff] 0.0
      %55 = vst [vmem:[#allocation2 + $0xa0] sm:$0xff] 0.0
      %56 = vst [vmem:[#allocation2 + $0xa8] sm:$0xff] 0.0
      %57 = vst [vmem:[#allocation2 + $0xb0] sm:$0xff] 0.0
      %58 = vst [vmem:[#allocation2 + $0xb8] sm:$0xff] 0.0
      %59 = vst [vmem:[#allocation2 + $0xc0] sm:$0xff] 0.0
      %60 = vst [vmem:[#allocation2 + $0xc8] sm:$0xff] 0.0
      %61 = vst [vmem:[#allocation2 + $0xd0] sm:$0xff] 0.0
      %62 = vst [vmem:[#allocation2 + $0xd8] sm:$0xff] 0.0
      %63 = vst [vmem:[#allocation2 + $0xe0] sm:$0xff] 0.0
      %64 = vst [vmem:[#allocation2 + $0xe8] sm:$0xff] 0.0
      %65 = vst [vmem:[#allocation2 + $0xf0] sm:$0xff] 0.0
      %66 = vst [vmem:[#allocation2 + $0xf8] sm:$0xff] 0.0
      %67 = vst [vmem:[#allocation2 + $0x100] sm:$0xff] 0.0
      %68 = vst [vmem:[#allocation2 + $0x108] sm:$0xff] 0.0
      %69 = vst [vmem:[#allocation2 + $0x110] sm:$0xff] 0.0
      %70 = vst [vmem:[#allocation2 + $0x118] sm:$0xff] 0.0
      %71 = vst [vmem:[#allocation2 + $0x120] sm:$0xff] 0.0
      %72 = vst [vmem:[#allocation2 + $0x128] sm:$0xff] 0.0
      %73 = vst [vmem:[#allocation2 + $0x130] sm:$0xff] 0.0
      %74 = vst [vmem:[#allocation2 + $0x138] sm:$0xff] 0.0
      %75 = vst [vmem:[#allocation2 + $0x140] sm:$0xff] 0.0
      %76 = vst [vmem:[#allocation2 + $0x148] sm:$0xff] 0.0
      %77 = vst [vmem:[#allocation2 + $0x150] sm:$0xff] 0.0
      %78 = vst [vmem:[#allocation2 + $0x158] sm:$0xff] 0.0
      %79 = vst [vmem:[#allocation2 + $0x160] sm:$0xff] 0.0
      %80 = vst [vmem:[#allocation2 + $0x168] sm:$0xff] 0.0
      %81 = vst [vmem:[#allocation2 + $0x170] sm:$0xff] 0.0
      %82 = vst [vmem:[#allocation2 + $0x178] sm:$0xff] 0.0
      %83 = vst [vmem:[#allocation2 + $0x180] sm:$0xff] 0.0
      %84 = vst [vmem:[#allocation2 + $0x188] sm:$0xff] 0.0
      %85 = vst [vmem:[#allocation2 + $0x190] sm:$0xff] 0.0
      %86 = vst [vmem:[#allocation2 + $0x198] sm:$0xff] 0.0
      %87 = vst [vmem:[#allocation2 + $0x1a0] sm:$0xff] 0.0
      %88 = vst [vmem:[#allocation2 + $0x1a8] sm:$0xff] 0.0
      %89 = vst [vmem:[#allocation2 + $0x1b0] sm:$0xff] 0.0
      %90 = vst [vmem:[#allocation2 + $0x1b8] sm:$0xff] 0.0
      %91 = vst [vmem:[#allocation2 + $0x1c0] sm:$0xff] 0.0
      %92 = vst [vmem:[#allocation2 + $0x1c8] sm:$0xff] 0.0
      %93 = vst [vmem:[#allocation2 + $0x1d0] sm:$0xff] 0.0
      %94 = vst [vmem:[#allocation2 + $0x1d8] sm:$0xff] 0.0
      %95 = vst [vmem:[#allocation2 + $0x1e0] sm:$0xff] 0.0
      %96 = vst [vmem:[#allocation2 + $0x1e8] sm:$0xff] 0.0
      %97 = vst [vmem:[#allocation2 + $0x1f0] sm:$0xff] 0.0
      %98 = vst [vmem:[#allocation2 + $0x1f8] sm:$0xff] 0.0
    $region37: #{_sage_cv_layer_impl.1} parent=1 // pred_fallthru
      _
    %v99 = vld [vmem:[%s0] sm:$0xff]
    %v100 = vld [vmem:[%s0 + $0x8] sm:$0xff]
    %v101 = vld [vmem:[%s0 + $0x10] sm:$0xff]
    %v102 = vld [vmem:[%s0 + $0x18] sm:$0xff]
    %v103 = vld [vmem:[%s0 + $0x20] sm:$0xff]
    %v104 = vld [vmem:[%s0 + $0x28] sm:$0xff]
    %v105 = vld [vmem:[%s0 + $0x30] sm:$0xff]
    %v106 = vld [vmem:[%s0 + $0x38] sm:$0xff]
    %v107 = vld [vmem:[%s0 + $0x40] sm:$0xff]
    %v108 = vld [vmem:[%s0 + $0x48] sm:$0xff]
    %v109 = vld [vmem:[%s0 + $0x50] sm:$0xff]
    %v110 = vld [vmem:[%s0 + $0x58] sm:$0xff]
    %v111 = vld [vmem:[%s0 + $0x60] sm:$0xff]
    %v112 = vld [vmem:[%s0 + $0x68] sm:$0xff]
    %v113 = vld [vmem:[%s0 + $0x70] sm:$0xff]
    %v114 = vld [vmem:[%s0 + $0x78] sm:$0xff]
    %v115 = vld [vmem:[%s0 + $0x80] sm:$0xff]
    %v116 = vld [vmem:[%s0 + $0x88] sm:$0xff]
    %v117 = vld [vmem:[%s0 + $0x90] sm:$0xff]
    %v118 = vld [vmem:[%s0 + $0x98] sm:$0xff]
    %v119 = vld [vmem:[%s0 + $0xa0] sm:$0xff]
    %v120 = vld [vmem:[%s0 + $0xa8] sm:$0xff]
    %v121 = vld [vmem:[%s0 + $0xb0] sm:$0xff]
    %v122 = vld [vmem:[%s0 + $0xb8] sm:$0xff]
    %v123 = vld [vmem:[%s0 + $0xc0] sm:$0xff]
    %v124 = vld [vmem:[%s0 + $0xc8] sm:$0xff]
    %v125 = vld [vmem:[%s0 + $0xd0] sm:$0xff]
    %v126 = vld [vmem:[%s0 + $0xd8] sm:$0xff]
    %v127 = vld [vmem:[%s0 + $0xe0] sm:$0xff]
    %v128 = vld [vmem:[%s0 + $0xe8] sm:$0xff]
    %v129 = vld [vmem:[%s0 + $0xf0] sm:$0xff]
    %v130 = vld [vmem:[%s0 + $0xf8] sm:$0xff]
    %v131 = vld [vmem:[%s0 + $0x100] sm:$0xff]
    %v132 = vld [vmem:[%s0 + $0x108] sm:$0xff]
    %v133 = vld [vmem:[%s0 + $0x110] sm:$0xff]
    %v134 = vld [vmem:[%s0 + $0x118] sm:$0xff]
    %v135 = vld [vmem:[%s0 + $0x120] sm:$0xff]
    %v136 = vld [vmem:[%s0 + $0x128] sm:$0xff]
    %v137 = vld [vmem:[%s0 + $0x130] sm:$0xff]
    %v138 = vld [vmem:[%s0 + $0x138] sm:$0xff]
    %v139 = vld [vmem:[%s0 + $0x140] sm:$0xff]
    %v140 = vld [vmem:[%s0 + $0x148] sm:$0xff]
    %v141 = vld [vmem:[%s0 + $0x150] sm:$0xff]
    %v142 = vld [vmem:[%s0 + $0x158] sm:$0xff]
    %v143 = vld [vmem:[%s0 + $0x160] sm:$0xff]
    %v144 = vld [vmem:[%s0 + $0x168] sm:$0xff]
    %v145 = vld [vmem:[%s0 + $0x170] sm:$0xff]
    %v146 = vld [vmem:[%s0 + $0x178] sm:$0xff]
    %v147 = vld [vmem:[%s0 + $0x180] sm:$0xff]
    %v148 = vld [vmem:[%s0 + $0x188] sm:$0xff]
    %v149 = vld [vmem:[%s0 + $0x190] sm:$0xff]
    %v150 = vld [vmem:[%s0 + $0x198] sm:$0xff]
    %v151 = vld [vmem:[%s0 + $0x1a0] sm:$0xff]
    %v152 = vld [vmem:[%s0 + $0x1a8] sm:$0xff]
    %v153 = vld [vmem:[%s0 + $0x1b0] sm:$0xff]
    %v154 = vld [vmem:[%s0 + $0x1b8] sm:$0xff]
    %v155 = vld [vmem:[%s0 + $0x1c0] sm:$0xff]
    %v156 = vld [vmem:[%s0 + $0x1c8] sm:$0xff]
    %v157 = vld [vmem:[%s0 + $0x1d0] sm:$0xff]
    %v158 = vld [vmem:[%s0 + $0x1d8] sm:$0xff]
    %v159 = vld [vmem:[%s0 + $0x1e0] sm:$0xff]
    %v160 = vld [vmem:[%s0 + $0x1e8] sm:$0xff]
    %v161 = vld [vmem:[%s0 + $0x1f0] sm:$0xff]
    %v162 = vld [vmem:[%s0 + $0x1f8] sm:$0xff]
    %v163 = vunpack.c.l.s8.bf16 %v99
    %v164 = vunpack.c.l.s8.bf16 %v100
    %v165 = vunpack.c.l.s8.bf16 %v101
    %v166 = vunpack.c.l.s8.bf16 %v102
    %v167 = vunpack.c.h.s8.bf16 %v99
    %v168 = vunpack.c.h.s8.bf16 %v100
    %v169 = vunpack.c.h.s8.bf16 %v101
    %v170 = vunpack.c.h.s8.bf16 %v102
    %v171 = vunpack.c.l.s8.bf16 %v103
    %v172 = vunpack.c.l.s8.bf16 %v104
    %v173 = vunpack.c.l.s8.bf16 %v105
    %v174 = vunpack.c.l.s8.bf16 %v106
    %v175 = vunpack.c.h.s8.bf16 %v103
    %v176 = vunpack.c.h.s8.bf16 %v104
    %v177 = vunpack.c.h.s8.bf16 %v105
    %v178 = vunpack.c.h.s8.bf16 %v106
    %v179 = vunpack.c.l.s8.bf16 %v107
    %v180 = vunpack.c.l.s8.bf16 %v108
    %v181 = vunpack.c.l.s8.bf16 %v109
    %v182 = vunpack.c.l.s8.bf16 %v110
    %v183 = vunpack.c.h.s8.bf16 %v107
    %v184 = vunpack.c.h.s8.bf16 %v108
    %v185 = vunpack.c.h.s8.bf16 %v109
    %v186 = vunpack.c.h.s8.bf16 %v110
    %v187 = vunpack.c.l.s8.bf16 %v111
    %v188 = vunpack.c.l.s8.bf16 %v112
    %v189 = vunpack.c.l.s8.bf16 %v113
    %v190 = vunpack.c.l.s8.bf16 %v114
    %v191 = vunpack.c.h.s8.bf16 %v111
    %v192 = vunpack.c.h.s8.bf16 %v112
    %v193 = vunpack.c.h.s8.bf16 %v113
    %v194 = vunpack.c.h.s8.bf16 %v114
    %v195 = vunpack.c.l.s8.bf16 %v115
    %v196 = vunpack.c.l.s8.bf16 %v116
    %v197 = vunpack.c.l.s8.bf16 %v117
    %v198 = vunpack.c.l.s8.bf16 %v118
    %v199 = vunpack.c.h.s8.bf16 %v115
    %v200 = vunpack.c.h.s8.bf16 %v116
    %v201 = vunpack.c.h.s8.bf16 %v117
    %v202 = vunpack.c.h.s8.bf16 %v118
    %v203 = vunpack.c.l.s8.bf16 %v119
    %v204 = vunpack.c.l.s8.bf16 %v120
    %v205 = vunpack.c.l.s8.bf16 %v121
    %v206 = vunpack.c.l.s8.bf16 %v122
    %v207 = vunpack.c.h.s8.bf16 %v119
    %v208 = vunpack.c.h.s8.bf16 %v120
    %v209 = vunpack.c.h.s8.bf16 %v121
    %v210 = vunpack.c.h.s8.bf16 %v122
    %v211 = vunpack.c.l.s8.bf16 %v123
    %v212 = vunpack.c.l.s8.bf16 %v124
    %v213 = vunpack.c.l.s8.bf16 %v125
    %v214 = vunpack.c.l.s8.bf16 %v126
    %v215 = vunpack.c.h.s8.bf16 %v123
    %v216 = vunpack.c.h.s8.bf16 %v124
    %v217 = vunpack.c.h.s8.bf16 %v125
    %v218 = vunpack.c.h.s8.bf16 %v126
    %v219 = vunpack.c.l.s8.bf16 %v127
    %v220 = vunpack.c.l.s8.bf16 %v128
    %v221 = vunpack.c.l.s8.bf16 %v129
    %v222 = vunpack.c.l.s8.bf16 %v130
    %v223 = vunpack.c.h.s8.bf16 %v127
    %v224 = vunpack.c.h.s8.bf16 %v128
    %v225 = vunpack.c.h.s8.bf16 %v129
    %v226 = vunpack.c.h.s8.bf16 %v130
    %v227 = vunpack.c.l.s8.bf16 %v131
    %v228 = vunpack.c.l.s8.bf16 %v132
    %v229 = vunpack.c.l.s8.bf16 %v133
    %v230 = vunpack.c.l.s8.bf16 %v134
    %v231 = vunpack.c.h.s8.bf16 %v131
    %v232 = vunpack.c.h.s8.bf16 %v132
    %v233 = vunpack.c.h.s8.bf16 %v133
    %v234 = vunpack.c.h.s8.bf16 %v134
    %v235 = vunpack.c.l.s8.bf16 %v135
    %v236 = vunpack.c.l.s8.bf16 %v136
    %v237 = vunpack.c.l.s8.bf16 %v137
    %v238 = vunpack.c.l.s8.bf16 %v138
    %v239 = vunpack.c.h.s8.bf16 %v135
    %v240 = vunpack.c.h.s8.bf16 %v136
    %v241 = vunpack.c.h.s8.bf16 %v137
    %v242 = vunpack.c.h.s8.bf16 %v138
    %v243 = vunpack.c.l.s8.bf16 %v139
    %v244 = vunpack.c.l.s8.bf16 %v140
    %v245 = vunpack.c.l.s8.bf16 %v141
    %v246 = vunpack.c.l.s8.bf16 %v142
    %v247 = vunpack.c.h.s8.bf16 %v139
    %v248 = vunpack.c.h.s8.bf16 %v140
    %v249 = vunpack.c.h.s8.bf16 %v141
    %v250 = vunpack.c.h.s8.bf16 %v142
    %v251 = vunpack.c.l.s8.bf16 %v143
    %v252 = vunpack.c.l.s8.bf16 %v144
    %v253 = vunpack.c.l.s8.bf16 %v145
    %v254 = vunpack.c.l.s8.bf16 %v146
    %v255 = vunpack.c.h.s8.bf16 %v143
    %v256 = vunpack.c.h.s8.bf16 %v144
    %v257 = vunpack.c.h.s8.bf16 %v145
    %v258 = vunpack.c.h.s8.bf16 %v146
    %v259 = vunpack.c.l.s8.bf16 %v147
    %v260 = vunpack.c.l.s8.bf16 %v148
    %v261 = vunpack.c.l.s8.bf16 %v149
    %v262 = vunpack.c.l.s8.bf16 %v150
    %v263 = vunpack.c.h.s8.bf16 %v147
    %v264 = vunpack.c.h.s8.bf16 %v148
    %v265 = vunpack.c.h.s8.bf16 %v149
    %v266 = vunpack.c.h.s8.bf16 %v150
    %v267 = vunpack.c.l.s8.bf16 %v151
    %v268 = vunpack.c.l.s8.bf16 %v152
    %v269 = vunpack.c.l.s8.bf16 %v153
    %v270 = vunpack.c.l.s8.bf16 %v154
    %v271 = vunpack.c.h.s8.bf16 %v151
    %v272 = vunpack.c.h.s8.bf16 %v152
    %v273 = vunpack.c.h.s8.bf16 %v153
    %v274 = vunpack.c.h.s8.bf16 %v154
    %v275 = vunpack.c.l.s8.bf16 %v155
    %v276 = vunpack.c.l.s8.bf16 %v156
    %v277 = vunpack.c.l.s8.bf16 %v157
    %v278 = vunpack.c.l.s8.bf16 %v158
    %v279 = vunpack.c.h.s8.bf16 %v155
    %v280 = vunpack.c.h.s8.bf16 %v156
    %v281 = vunpack.c.h.s8.bf16 %v157
    %v282 = vunpack.c.h.s8.bf16 %v158
    %v283 = vunpack.c.l.s8.bf16 %v159
    %v284 = vunpack.c.l.s8.bf16 %v160
    %v285 = vunpack.c.l.s8.bf16 %v161
    %v286 = vunpack.c.l.s8.bf16 %v162
    %v287 = vunpack.c.h.s8.bf16 %v159
    %v288 = vunpack.c.h.s8.bf16 %v160
    %v289 = vunpack.c.h.s8.bf16 %v161
    %v290 = vunpack.c.h.s8.bf16 %v162
    %v291 = vld [vmem:[#allocation2] sm:$0xff]
    %v292 = vld [vmem:[#allocation2 + $0x8] sm:$0xff]
    %v293 = vld [vmem:[#allocation2 + $0x10] sm:$0xff]
    %v294 = vld [vmem:[#allocation2 + $0x18] sm:$0xff]
    %v295 = vld [vmem:[#allocation2 + $0x20] sm:$0xff]
    %v296 = vld [vmem:[#allocation2 + $0x28] sm:$0xff]
    %v297 = vld [vmem:[#allocation2 + $0x30] sm:$0xff]
    %v298 = vld [vmem:[#allocation2 + $0x38] sm:$0xff]
    %v299 = vld [vmem:[#allocation2 + $0x40] sm:$0xff]
    %v300 = vld [vmem:[#allocation2 + $0x48] sm:$0xff]
    %v301 = vld [vmem:[#allocation2 + $0x50] sm:$0xff]
    %v302 = vld [vmem:[#allocation2 + $0x58] sm:$0xff]
    %v303 = vld [vmem:[#allocation2 + $0x60] sm:$0xff]
    %v304 = vld [vmem:[#allocation2 + $0x68] sm:$0xff]
    %v305 = vld [vmem:[#allocation2 + $0x70] sm:$0xff]
    %v306 = vld [vmem:[#allocation2 + $0x78] sm:$0xff]
    %v307 = vld [vmem:[#allocation2 + $0x80] sm:$0xff]
    %v308 = vld [vmem:[#allocation2 + $0x88] sm:$0xff]
    %v309 = vld [vmem:[#allocation2 + $0x90] sm:$0xff]
    %v310 = vld [vmem:[#allocation2 + $0x98] sm:$0xff]
    %v311 = vld [vmem:[#allocation2 + $0xa0] sm:$0xff]
    %v312 = vld [vmem:[#allocation2 + $0xa8] sm:$0xff]
    %v313 = vld [vmem:[#allocation2 + $0xb0] sm:$0xff]
    %v314 = vld [vmem:[#allocation2 + $0xb8] sm:$0xff]
    %v315 = vld [vmem:[#allocation2 + $0xc0] sm:$0xff]
    %v316 = vld [vmem:[#allocation2 + $0xc8] sm:$0xff]
    %v317 = vld [vmem:[#allocation2 + $0xd0] sm:$0xff]
    %v318 = vld [vmem:[#allocation2 + $0xd8] sm:$0xff]
    %v319 = vld [vmem:[#allocation2 + $0xe0] sm:$0xff]
    %v320 = vld [vmem:[#allocation2 + $0xe8] sm:$0xff]
    %v321 = vld [vmem:[#allocation2 + $0xf0] sm:$0xff]
    %v322 = vld [vmem:[#allocation2 + $0xf8] sm:$0xff]
    %v323 = vld [vmem:[#allocation2 + $0x100] sm:$0xff]
    %v324 = vld [vmem:[#allocation2 + $0x108] sm:$0xff]
    %v325 = vld [vmem:[#allocation2 + $0x110] sm:$0xff]
    %v326 = vld [vmem:[#allocation2 + $0x118] sm:$0xff]
    %v327 = vld [vmem:[#allocation2 + $0x120] sm:$0xff]
    %v328 = vld [vmem:[#allocation2 + $0x128] sm:$0xff]
    %v329 = vld [vmem:[#allocation2 + $0x130] sm:$0xff]
    %v330 = vld [vmem:[#allocation2 + $0x138] sm:$0xff]
    %v331 = vld [vmem:[#allocation2 + $0x140] sm:$0xff]
    %v332 = vld [vmem:[#allocation2 + $0x148] sm:$0xff]
    %v333 = vld [vmem:[#allocation2 + $0x150] sm:$0xff]
    %v334 = vld [vmem:[#allocation2 + $0x158] sm:$0xff]
    %v335 = vld [vmem:[#allocation2 + $0x160] sm:$0xff]
    %v336 = vld [vmem:[#allocation2 + $0x168] sm:$0xff]
    %v337 = vld [vmem:[#allocation2 + $0x170] sm:$0xff]
    %v338 = vld [vmem:[#allocation2 + $0x178] sm:$0xff]
    %v339 = vld [vmem:[#allocation2 + $0x180] sm:$0xff]
    %v340 = vld [vmem:[#allocation2 + $0x188] sm:$0xff]
    %v341 = vld [vmem:[#allocation2 + $0x190] sm:$0xff]
    %v342 = vld [vmem:[#allocation2 + $0x198] sm:$0xff]
    %v343 = vld [vmem:[#allocation2 + $0x1a0] sm:$0xff]
    %v344 = vld [vmem:[#allocation2 + $0x1a8] sm:$0xff]
    %v345 = vld [vmem:[#allocation2 + $0x1b0] sm:$0xff]
    %v346 = vld [vmem:[#allocation2 + $0x1b8] sm:$0xff]
    %v347 = vld [vmem:[#allocation2 + $0x1c0] sm:$0xff]
    %v348 = vld [vmem:[#allocation2 + $0x1c8] sm:$0xff]
    %v349 = vld [vmem:[#allocation2 + $0x1d0] sm:$0xff]
    %v350 = vld [vmem:[#allocation2 + $0x1d8] sm:$0xff]
    %v351 = vld [vmem:[#allocation2 + $0x1e0] sm:$0xff]
    %v352 = vld [vmem:[#allocation2 + $0x1e8] sm:$0xff]
    %v353 = vld [vmem:[#allocation2 + $0x1f0] sm:$0xff]
    %v354 = vld [vmem:[#allocation2 + $0x1f8] sm:$0xff]
    %v355 = vld [vmem:[%s1] sm:$0xf]
    %v356 = vld [vmem:[%s1 + $0x4] sm:$0xf]
    %v357 = vld [vmem:[%s1 + $0x8] sm:$0xf]
    %v358 = vld [vmem:[%s1 + $0xc] sm:$0xf]
    %v359 = vld [vmem:[%s1 + $0x10] sm:$0xf]
    %v360 = vld [vmem:[%s1 + $0x14] sm:$0xf]
    %v361 = vld [vmem:[%s1 + $0x18] sm:$0xf]
    %v362 = vld [vmem:[%s1 + $0x1c] sm:$0xf]
    %v363 = vld [vmem:[%s1 + $0x20] sm:$0xf]
    %v364 = vld [vmem:[%s1 + $0x24] sm:$0xf]
    %v365 = vld [vmem:[%s1 + $0x28] sm:$0xf]
    %v366 = vld [vmem:[%s1 + $0x2c] sm:$0xf]
    %v367 = vld [vmem:[%s1 + $0x30] sm:$0xf]
    %v368 = vld [vmem:[%s1 + $0x34] sm:$0xf]
    %v369 = vld [vmem:[%s1 + $0x38] sm:$0xf]
    %v370 = vld [vmem:[%s1 + $0x3c] sm:$0xf]
    %v371 = vld [vmem:[%s1 + $0x40] sm:$0xf]
    %v372 = vld [vmem:[%s1 + $0x44] sm:$0xf]
    %v373 = vld [vmem:[%s1 + $0x48] sm:$0xf]
    %v374 = vld [vmem:[%s1 + $0x4c] sm:$0xf]
    %v375 = vld [vmem:[%s1 + $0x50] sm:$0xf]
    %v376 = vld [vmem:[%s1 + $0x54] sm:$0xf]
    %v377 = vld [vmem:[%s1 + $0x58] sm:$0xf]
    %v378 = vld [vmem:[%s1 + $0x5c] sm:$0xf]
    %v379 = vld [vmem:[%s1 + $0x60] sm:$0xf]
    %v380 = vld [vmem:[%s1 + $0x64] sm:$0xf]
    %v381 = vld [vmem:[%s1 + $0x68] sm:$0xf]
    %v382 = vld [vmem:[%s1 + $0x6c] sm:$0xf]
    %v383 = vld [vmem:[%s1 + $0x70] sm:$0xf]
    %v384 = vld [vmem:[%s1 + $0x74] sm:$0xf]
    %v385 = vld [vmem:[%s1 + $0x78] sm:$0xf]
    %v386 = vld [vmem:[%s1 + $0x7c] sm:$0xf]
    %v387 = vld [vmem:[%s1 + $0x80] sm:$0xf]
    %v388 = vld [vmem:[%s1 + $0x84] sm:$0xf]
    %v389 = vld [vmem:[%s1 + $0x88] sm:$0xf]
    %v390 = vld [vmem:[%s1 + $0x8c] sm:$0xf]
    %v391 = vld [vmem:[%s1 + $0x90] sm:$0xf]
    %v392 = vld [vmem:[%s1 + $0x94] sm:$0xf]
    %v393 = vld [vmem:[%s1 + $0x98] sm:$0xf]
    %v394 = vld [vmem:[%s1 + $0x9c] sm:$0xf]
    %v395 = vld [vmem:[%s1 + $0xa0] sm:$0xf]
    %v396 = vld [vmem:[%s1 + $0xa4] sm:$0xf]
    %v397 = vld [vmem:[%s1 + $0xa8] sm:$0xf]
    %v398 = vld [vmem:[%s1 + $0xac] sm:$0xf]
    %v399 = vld [vmem:[%s1 + $0xb0] sm:$0xf]
    %v400 = vld [vmem:[%s1 + $0xb4] sm:$0xf]
    %v401 = vld [vmem:[%s1 + $0xb8] sm:$0xf]
    %v402 = vld [vmem:[%s1 + $0xbc] sm:$0xf]
    %v403 = vld [vmem:[%s1 + $0xc0] sm:$0xf]
    %v404 = vld [vmem:[%s1 + $0xc4] sm:$0xf]
    %v405 = vld [vmem:[%s1 + $0xc8] sm:$0xf]
    %v406 = vld [vmem:[%s1 + $0xcc] sm:$0xf]
    %v407 = vld [vmem:[%s1 + $0xd0] sm:$0xf]
    %v408 = vld [vmem:[%s1 + $0xd4] sm:$0xf]
    %v409 = vld [vmem:[%s1 + $0xd8] sm:$0xf]
    %v410 = vld [vmem:[%s1 + $0xdc] sm:$0xf]
    %v411 = vld [vmem:[%s1 + $0xe0] sm:$0xf]
    %v412 = vld [vmem:[%s1 + $0xe4] sm:$0xf]
    %v413 = vld [vmem:[%s1 + $0xe8] sm:$0xf]
    %v414 = vld [vmem:[%s1 + $0xec] sm:$0xf]
    %v415 = vld [vmem:[%s1 + $0xf0] sm:$0xf]
    %v416 = vld [vmem:[%s1 + $0xf4] sm:$0xf]
    %v417 = vld [vmem:[%s1 + $0xf8] sm:$0xf]
    %v418 = vld [vmem:[%s1 + $0xfc] sm:$0xf]
    %v483 = vunpack.c.l.b16 %v355
    %v484 = vunpack.c.l.b16 %v356
    %v485 = vunpack.c.l.b16 %v357
    %v486 = vunpack.c.l.b16 %v358
    %v487 = vunpack.c.l.b16 %v359
    %v488 = vunpack.c.l.b16 %v360
    %v489 = vunpack.c.l.b16 %v361
    %v490 = vunpack.c.l.b16 %v362
    %v491 = vunpack.c.l.b16 %v363
    %v492 = vunpack.c.l.b16 %v364
    %v493 = vunpack.c.l.b16 %v365
    %v494 = vunpack.c.l.b16 %v366
    %v495 = vunpack.c.l.b16 %v367
    %v496 = vunpack.c.l.b16 %v368
    %v497 = vunpack.c.l.b16 %v369
    %v498 = vunpack.c.l.b16 %v370
    %v499 = vunpack.c.l.b16 %v371
    %v500 = vunpack.c.l.b16 %v372
    %v501 = vunpack.c.l.b16 %v373
    %v502 = vunpack.c.l.b16 %v374
    %v503 = vunpack.c.l.b16 %v375
    %v504 = vunpack.c.l.b16 %v376
    %v505 = vunpack.c.l.b16 %v377
    %v506 = vunpack.c.l.b16 %v378
    %v507 = vunpack.c.l.b16 %v379
    %v508 = vunpack.c.l.b16 %v380
    %v509 = vunpack.c.l.b16 %v381
    %v510 = vunpack.c.l.b16 %v382
    %v511 = vunpack.c.l.b16 %v383
    %v512 = vunpack.c.l.b16 %v384
    %v513 = vunpack.c.l.b16 %v385
    %v514 = vunpack.c.l.b16 %v386
    %v515 = vunpack.c.l.b16 %v387
    %v516 = vunpack.c.l.b16 %v388
    %v517 = vunpack.c.l.b16 %v389
    %v518 = vunpack.c.l.b16 %v390
    %v519 = vunpack.c.l.b16 %v391
    %v520 = vunpack.c.l.b16 %v392
    %v521 = vunpack.c.l.b16 %v393
    %v522 = vunpack.c.l.b16 %v394
    %v523 = vunpack.c.l.b16 %v395
    %v524 = vunpack.c.l.b16 %v396
    %v525 = vunpack.c.l.b16 %v397
    %v526 = vunpack.c.l.b16 %v398
    %v527 = vunpack.c.l.b16 %v399
    %v528 = vunpack.c.l.b16 %v400
    %v529 = vunpack.c.l.b16 %v401
    %v530 = vunpack.c.l.b16 %v402
    %v531 = vunpack.c.l.b16 %v403
    %v532 = vunpack.c.l.b16 %v404
    %v533 = vunpack.c.l.b16 %v405
    %v534 = vunpack.c.l.b16 %v406
    %v535 = vunpack.c.l.b16 %v407
    %v536 = vunpack.c.l.b16 %v408
    %v537 = vunpack.c.l.b16 %v409
    %v538 = vunpack.c.l.b16 %v410
    %v539 = vunpack.c.l.b16 %v411
    %v540 = vunpack.c.l.b16 %v412
    %v541 = vunpack.c.l.b16 %v413
    %v542 = vunpack.c.l.b16 %v414
    %v543 = vunpack.c.l.b16 %v415
    %v544 = vunpack.c.l.b16 %v416
    %v545 = vunpack.c.l.b16 %v417
    %v546 = vunpack.c.l.b16 %v418
    %v547 = vpack.c.b16 %v484, %v483
    %v548 = vpack.c.b16 %v486, %v485
    %v549 = vpack.c.b16 %v488, %v487
    %v550 = vpack.c.b16 %v490, %v489
    %v551 = vpack.c.b16 %v492, %v491
    %v552 = vpack.c.b16 %v494, %v493
    %v553 = vpack.c.b16 %v496, %v495
    %v554 = vpack.c.b16 %v498, %v497
    %v555 = vpack.c.b16 %v500, %v499
    %v556 = vpack.c.b16 %v502, %v501
    %v557 = vpack.c.b16 %v504, %v503
    %v558 = vpack.c.b16 %v506, %v505
    %v559 = vpack.c.b16 %v508, %v507
    %v560 = vpack.c.b16 %v510, %v509
    %v561 = vpack.c.b16 %v512, %v511
    %v562 = vpack.c.b16 %v514, %v513
    %v563 = vpack.c.b16 %v516, %v515
    %v564 = vpack.c.b16 %v518, %v517
    %v565 = vpack.c.b16 %v520, %v519
    %v566 = vpack.c.b16 %v522, %v521
    %v567 = vpack.c.b16 %v524, %v523
    %v568 = vpack.c.b16 %v526, %v525
    %v569 = vpack.c.b16 %v528, %v527
    %v570 = vpack.c.b16 %v530, %v529
    %v571 = vpack.c.b16 %v532, %v531
    %v572 = vpack.c.b16 %v534, %v533
    %v573 = vpack.c.b16 %v536, %v535
    %v574 = vpack.c.b16 %v538, %v537
    %v575 = vpack.c.b16 %v540, %v539
    %v576 = vpack.c.b16 %v542, %v541
    %v577 = vpack.c.b16 %v544, %v543
    %v578 = vpack.c.b16 %v546, %v545
    %611 = vmatprep.subr.bf16.mxu0 0
    %612 = vmatpush1.bf16.msra.mxu0 %v547
    %613 = vmatprep.subr.bf16.mxu0 0
    %614 = vmatpush1.bf16.msra.mxu0 %v548
    %615 = vmatprep.subr.bf16.mxu0 0
    %616 = vmatpush1.bf16.msra.mxu0 %v549
    %617 = vmatprep.subr.bf16.mxu0 0
    %618 = vmatpush1.bf16.msra.mxu0 %v550
    %619 = vmatprep.subr.bf16.mxu0 0
    %620 = vmatpush1.bf16.msra.mxu0 %v551
    %621 = vmatprep.subr.bf16.mxu0 0
    %622 = vmatpush1.bf16.msra.mxu0 %v552
    %623 = vmatprep.subr.bf16.mxu0 0
    %624 = vmatpush1.bf16.msra.mxu0 %v553
    %625 = vmatprep.subr.bf16.mxu0 0
    %626 = vmatpush1.bf16.msra.mxu0 %v554
    %627 = vmatprep.subr.bf16.mxu0 0
    %628 = vmatpush1.bf16.msra.mxu0 %v555
    %629 = vmatprep.subr.bf16.mxu0 0
    %630 = vmatpush1.bf16.msra.mxu0 %v556
    %631 = vmatprep.subr.bf16.mxu0 0
    %632 = vmatpush1.bf16.msra.mxu0 %v557
    %633 = vmatprep.subr.bf16.mxu0 0
    %634 = vmatpush1.bf16.msra.mxu0 %v558
    %635 = vmatprep.subr.bf16.mxu0 0
    %636 = vmatpush1.bf16.msra.mxu0 %v559
    %637 = vmatprep.subr.bf16.mxu0 0
    %638 = vmatpush1.bf16.msra.mxu0 %v560
    %639 = vmatprep.subr.bf16.mxu0 0
    %640 = vmatpush1.bf16.msra.mxu0 %v561
    %641 = vmatprep.subr.bf16.mxu0 0
    %642 = vmatpush1.bf16.msra.mxu0 %v562
    %643 = vmatprep.mubr.bf16.mxu0 %v164
    %644 = vmatmul.mubr.bf16.gmra.mrb[0].mxu0 %v163
    %v645 = vpop.f32.mrb[0].mxu0
    %v646 = vadd.f32 0.0, %v645
    %v647 = vpop.f32.mrb[0].mxu0
    %v648 = vpop.f32.mrb[0].mxu0
    %v649 = vadd.f32 0.0, %v648
    %v650 = vpop.f32.mrb[0].mxu0
    %651 = vmatprep.mubr.bf16.mxu0 %v168
    %652 = vmatmul.mubr.bf16.gmra.mrb[0].mxu0 %v167
    %v653 = vpop.f32.mrb[0].mxu0
    %v654 = vadd.f32 0.0, %v653
    %v655 = vpop.f32.mrb[0].mxu0
    %v656 = vpop.f32.mrb[0].mxu0
    %v657 = vadd.f32 0.0, %v656
    %v658 = vpop.f32.mrb[0].mxu0
    %659 = vmatprep.mubr.bf16.mxu0 %v172
    %660 = vmatmul.mubr.bf16.gmra.mrb[0].mxu0 %v171
    %v661 = vpop.f32.mrb[0].mxu0
    %v662 = vadd.f32 0.0, %v661
    %v663 = vpop.f32.mrb[0].mxu0
    %v664 = vpop.f32.mrb[0].mxu0
    %v665 = vadd.f32 0.0, %v664
    %v666 = vpop.f32.mrb[0].mxu0
    %667 = vmatprep.mubr.bf16.mxu0 %v176
    %668 = vmatmul.mubr.bf16.gmra.mrb[0].mxu0 %v175
    %v669 = vpop.f32.mrb[0].mxu0
    %v670 = vadd.f32 0.0, %v669
    %v671 = vpop.f32.mrb[0].mxu0
    %v672 = vpop.f32.mrb[0].mxu0
    %v673 = vadd.f32 0.0, %v672
    %v674 = vpop.f32.mrb[0].mxu0
    %675 = vmatprep.mubr.bf16.mxu0 %v180
    %676 = vmatmul.mubr.bf16.gmra.mrb[0].mxu0 %v179
    %v677 = vpop.f32.mrb[0].mxu0
    %v678 = vadd.f32 0.0, %v677
    %v679 = vpop.f32.mrb[0].mxu0
    %v680 = vpop.f32.mrb[0].mxu0
    %v681 = vadd.f32 0.0, %v680
    %v682 = vpop.f32.mrb[0].mxu0
    %683 = vmatprep.mubr.bf16.mxu0 %v184
    %684 = vmatmul.mubr.bf16.gmra.mrb[0].mxu0 %v183
    %v685 = vpop.f32.mrb[0].mxu0
    %v686 = vadd.f32 0.0, %v685
    %v687 = vpop.f32.mrb[0].mxu0
    %v688 = vpop.f32.mrb[0].mxu0
    %v689 = vadd.f32 0.0, %v688
    %v690 = vpop.f32.mrb[0].mxu0
    %691 = vmatprep.mubr.bf16.mxu0 %v188
    %692 = vmatmul.mubr.bf16.gmra.mrb[0].mxu0 %v187
    %v693 = vpop.f32.mrb[0].mxu0
    %v694 = vadd.f32 0.0, %v693
    %v695 = vpop.f32.mrb[0].mxu0
    %v696 = vpop.f32.mrb[0].mxu0
    %v697 = vadd.f32 0.0, %v696
    %v698 = vpop.f32.mrb[0].mxu0
    %699 = vmatprep.mubr.bf16.mxu0 %v192
    %700 = vmatmul.mubr.bf16.gmra.mrb[0].mxu0 %v191
    %v701 = vpop.f32.mrb[0].mxu0
    %v702 = vadd.f32 0.0, %v701
    %v703 = vpop.f32.mrb[0].mxu0
    %v704 = vpop.f32.mrb[0].mxu0
    %v705 = vadd.f32 0.0, %v704
    %v706 = vpop.f32.mrb[0].mxu0
    %707 = vmatprep.mubr.bf16.mxu0 %v196
    %708 = vmatmul.mubr.bf16.gmra.mrb[0].mxu0 %v195
    %v709 = vpop.f32.mrb[0].mxu0
    %v710 = vadd.f32 0.0, %v709
    %v711 = vpop.f32.mrb[0].mxu0
    %v712 = vpop.f32.mrb[0].mxu0
    %v713 = vadd.f32 0.0, %v712
    %v714 = vpop.f32.mrb[0].mxu0
    %715 = vmatprep.mubr.bf16.mxu0 %v200
    %716 = vmatmul.mubr.bf16.gmra.mrb[0].mxu0 %v199
    %v717 = vpop.f32.mrb[0].mxu0
    %v718 = vadd.f32 0.0, %v717
    %v719 = vpop.f32.mrb[0].mxu0
    %v720 = vpop.f32.mrb[0].mxu0
    %v721 = vadd.f32 0.0, %v720
    %v722 = vpop.f32.mrb[0].mxu0
    %723 = vmatprep.mubr.bf16.mxu0 %v204
    %724 = vmatmul.mubr.bf16.gmra.mrb[0].mxu0 %v203
    %v725 = vpop.f32.mrb[0].mxu0
    %v726 = vadd.f32 0.0, %v725
    %v727 = vpop.f32.mrb[0].mxu0
    %v728 = vpop.f32.mrb[0].mxu0
    %v729 = vadd.f32 0.0, %v728
    %v730 = vpop.f32.mrb[0].mxu0
    %731 = vmatprep.mubr.bf16.mxu0 %v208
    %732 = vmatmul.mubr.bf16.gmra.mrb[0].mxu0 %v207
    %v733 = vpop.f32.mrb[0].mxu0
    %v734 = vadd.f32 0.0, %v733
    %v735 = vpop.f32.mrb[0].mxu0
    %v736 = vpop.f32.mrb[0].mxu0
    %v737 = vadd.f32 0.0, %v736
    %v738 = vpop.f32.mrb[0].mxu0
    %739 = vmatprep.mubr.bf16.mxu0 %v212
    %740 = vmatmul.mubr.bf16.gmra.mrb[0].mxu0 %v211
    %v741 = vpop.f32.mrb[0].mxu0
    %v742 = vadd.f32 0.0, %v741
    %v743 = vpop.f32.mrb[0].mxu0
    %v744 = vpop.f32.mrb[0].mxu0
    %v745 = vadd.f32 0.0, %v744
    %v746 = vpop.f32.mrb[0].mxu0
    %747 = vmatprep.mubr.bf16.mxu0 %v216
    %748 = vmatmul.mubr.bf16.gmra.mrb[0].mxu0 %v215
    %v749 = vpop.f32.mrb[0].mxu0
    %v750 = vadd.f32 0.0, %v749
    %v751 = vpop.f32.mrb[0].mxu0
    %v752 = vpop.f32.mrb[0].mxu0
    %v753 = vadd.f32 0.0, %v752
    %v754 = vpop.f32.mrb[0].mxu0
    %755 = vmatprep.mubr.bf16.mxu0 %v220
    %756 = vmatmul.mubr.bf16.gmra.mrb[0].mxu0 %v219
    %v757 = vpop.f32.mrb[0].mxu0
    %v758 = vadd.f32 0.0, %v757
    %v759 = vpop.f32.mrb[0].mxu0
    %v760 = vpop.f32.mrb[0].mxu0
    %v761 = vadd.f32 0.0, %v760
    %v762 = vpop.f32.mrb[0].mxu0
    %763 = vmatprep.mubr.bf16.mxu0 %v224
    %764 = vmatmul.mubr.bf16.gmra.mrb[0].mxu0 %v223
    %v765 = vpop.f32.mrb[0].mxu0
    %v766 = vadd.f32 0.0, %v765
    %v767 = vpop.f32.mrb[0].mxu0
    %v768 = vpop.f32.mrb[0].mxu0
    %v769 = vadd.f32 0.0, %v768
    %v770 = vpop.f32.mrb[0].mxu0
    %771 = vmatprep.mubr.bf16.mxu0 %v228
    %772 = vmatmul.mubr.bf16.gmra.mrb[0].mxu0 %v227
    %v773 = vpop.f32.mrb[0].mxu0
    %v774 = vadd.f32 0.0, %v773
    %v775 = vpop.f32.mrb[0].mxu0
    %v776 = vpop.f32.mrb[0].mxu0
    %v777 = vadd.f32 0.0, %v776
    %v778 = vpop.f32.mrb[0].mxu0
    %779 = vmatprep.mubr.bf16.mxu0 %v232
    %780 = vmatmul.mubr.bf16.gmra.mrb[0].mxu0 %v231
    %v781 = vpop.f32.mrb[0].mxu0
    %v782 = vadd.f32 0.0, %v781
    %v783 = vpop.f32.mrb[0].mxu0
    %v784 = vpop.f32.mrb[0].mxu0
    %v785 = vadd.f32 0.0, %v784
    %v786 = vpop.f32.mrb[0].mxu0
    %787 = vmatprep.mubr.bf16.mxu0 %v236
    %788 = vmatmul.mubr.bf16.gmra.mrb[0].mxu0 %v235
    %v789 = vpop.f32.mrb[0].mxu0
    %v790 = vadd.f32 0.0, %v789
    %v791 = vpop.f32.mrb[0].mxu0
    %v792 = vpop.f32.mrb[0].mxu0
    %v793 = vadd.f32 0.0, %v792
    %v794 = vpop.f32.mrb[0].mxu0
    %795 = vmatprep.mubr.bf16.mxu0 %v240
    %796 = vmatmul.mubr.bf16.gmra.mrb[0].mxu0 %v239
    %v797 = vpop.f32.mrb[0].mxu0
    %v798 = vadd.f32 0.0, %v797
    %v799 = vpop.f32.mrb[0].mxu0
    %v800 = vpop.f32.mrb[0].mxu0
    %v801 = vadd.f32 0.0, %v800
    %v802 = vpop.f32.mrb[0].mxu0
    %803 = vmatprep.mubr.bf16.mxu0 %v244
    %804 = vmatmul.mubr.bf16.gmra.mrb[0].mxu0 %v243
    %v805 = vpop.f32.mrb[0].mxu0
    %v806 = vadd.f32 0.0, %v805
    %v807 = vpop.f32.mrb[0].mxu0
    %v808 = vpop.f32.mrb[0].mxu0
    %v809 = vadd.f32 0.0, %v808
    %v810 = vpop.f32.mrb[0].mxu0
    %811 = vmatprep.mubr.bf16.mxu0 %v248
    %812 = vmatmul.mubr.bf16.gmra.mrb[0].mxu0 %v247
    %v813 = vpop.f32.mrb[0].mxu0
    %v814 = vadd.f32 0.0, %v813
    %v815 = vpop.f32.mrb[0].mxu0
    %v816 = vpop.f32.mrb[0].mxu0
    %v817 = vadd.f32 0.0, %v816
    %v818 = vpop.f32.mrb[0].mxu0
    %819 = vmatprep.mubr.bf16.mxu0 %v252
    %820 = vmatmul.mubr.bf16.gmra.mrb[0].mxu0 %v251
    %v821 = vpop.f32.mrb[0].mxu0
    %v822 = vadd.f32 0.0, %v821
    %v823 = vpop.f32.mrb[0].mxu0
    %v824 = vpop.f32.mrb[0].mxu0
    %v825 = vadd.f32 0.0, %v824
    %v826 = vpop.f32.mrb[0].mxu0
    %827 = vmatprep.mubr.bf16.mxu0 %v256
    %828 = vmatmul.mubr.bf16.gmra.mrb[0].mxu0 %v255
    %v829 = vpop.f32.mrb[0].mxu0
    %v830 = vadd.f32 0.0, %v829
    %v831 = vpop.f32.mrb[0].mxu0
    %v832 = vpop.f32.mrb[0].mxu0
    %v833 = vadd.f32 0.0, %v832
    %v834 = vpop.f32.mrb[0].mxu0
    %835 = vmatprep.mubr.bf16.mxu0 %v260
    %836 = vmatmul.mubr.bf16.gmra.mrb[0].mxu0 %v259
    %v837 = vpop.f32.mrb[0].mxu0
    %v838 = vadd.f32 0.0, %v837
    %v839 = vpop.f32.mrb[0].mxu0
    %v840 = vpop.f32.mrb[0].mxu0
    %v841 = vadd.f32 0.0, %v840
    %v842 = vpop.f32.mrb[0].mxu0
    %843 = vmatprep.mubr.bf16.mxu0 %v264
    %844 = vmatmul.mubr.bf16.gmra.mrb[0].mxu0 %v263
    %v845 = vpop.f32.mrb[0].mxu0
    %v846 = vadd.f32 0.0, %v845
    %v847 = vpop.f32.mrb[0].mxu0
    %v848 = vpop.f32.mrb[0].mxu0
    %v849 = vadd.f32 0.0, %v848
    %v850 = vpop.f32.mrb[0].mxu0
    %851 = vmatprep.mubr.bf16.mxu0 %v268
    %852 = vmatmul.mubr.bf16.gmra.mrb[0].mxu0 %v267
    %v853 = vpop.f32.mrb[0].mxu0
    %v854 = vadd.f32 0.0, %v853
    %v855 = vpop.f32.mrb[0].mxu0
    %v856 = vpop.f32.mrb[0].mxu0
    %v857 = vadd.f32 0.0, %v856
    %v858 = vpop.f32.mrb[0].mxu0
    %859 = vmatprep.mubr.bf16.mxu0 %v272
    %860 = vmatmul.mubr.bf16.gmra.mrb[0].mxu0 %v271
    %v861 = vpop.f32.mrb[0].mxu0
    %v862 = vadd.f32 0.0, %v861
    %v863 = vpop.f32.mrb[0].mxu0
    %v864 = vpop.f32.mrb[0].mxu0
    %v865 = vadd.f32 0.0, %v864
    %v866 = vpop.f32.mrb[0].mxu0
    %867 = vmatprep.mubr.bf16.mxu0 %v276
    %868 = vmatmul.mubr.bf16.gmra.mrb[0].mxu0 %v275
    %v869 = vpop.f32.mrb[0].mxu0
    %v870 = vadd.f32 0.0, %v869
    %v871 = vpop.f32.mrb[0].mxu0
    %v872 = vpop.f32.mrb[0].mxu0
    %v873 = vadd.f32 0.0, %v872
    %v874 = vpop.f32.mrb[0].mxu0
    %875 = vmatprep.mubr.bf16.mxu0 %v280
    %876 = vmatmul.mubr.bf16.gmra.mrb[0].mxu0 %v279
    %v877 = vpop.f32.mrb[0].mxu0
    %v878 = vadd.f32 0.0, %v877
    %v879 = vpop.f32.mrb[0].mxu0
    %v880 = vpop.f32.mrb[0].mxu0
    %v881 = vadd.f32 0.0, %v880
    %v882 = vpop.f32.mrb[0].mxu0
    %883 = vmatprep.mubr.bf16.mxu0 %v284
    %884 = vmatmul.mubr.bf16.gmra.mrb[0].mxu0 %v283
    %v885 = vpop.f32.mrb[0].mxu0
    %v886 = vadd.f32 0.0, %v885
    %v887 = vpop.f32.mrb[0].mxu0
    %v888 = vpop.f32.mrb[0].mxu0
    %v889 = vadd.f32 0.0, %v888
    %v890 = vpop.f32.mrb[0].mxu0
    %891 = vmatprep.mubr.bf16.mxu0 %v288
    %892 = vmatmul.mubr.bf16.gmra.mrb[0].mxu0 %v287
    %v893 = vpop.f32.mrb[0].mxu0
    %v894 = vadd.f32 0.0, %v893
    %v895 = vpop.f32.mrb[0].mxu0
    %v896 = vpop.f32.mrb[0].mxu0
    %v897 = vadd.f32 0.0, %v896
    %v898 = vpop.f32.mrb[0].mxu0
    %899 = vdwg.mxu0
    %900 = vmatprep.subr.bf16.mxu0 0
    %901 = vmatpush1.bf16.msra.mxu0 %v563
    %902 = vmatprep.subr.bf16.mxu0 0
    %903 = vmatpush1.bf16.msra.mxu0 %v564
    %904 = vmatprep.subr.bf16.mxu0 0
    %905 = vmatpush1.bf16.msra.mxu0 %v565
    %906 = vmatprep.subr.bf16.mxu0 0
    %907 = vmatpush1.bf16.msra.mxu0 %v566
    %908 = vmatprep.subr.bf16.mxu0 0
    %909 = vmatpush1.bf16.msra.mxu0 %v567
    %910 = vmatprep.subr.bf16.mxu0 0
    %911 = vmatpush1.bf16.msra.mxu0 %v568
    %912 = vmatprep.subr.bf16.mxu0 0
    %913 = vmatpush1.bf16.msra.mxu0 %v569
    %914 = vmatprep.subr.bf16.mxu0 0
    %915 = vmatpush1.bf16.msra.mxu0 %v570
    %916 = vmatprep.subr.bf16.mxu0 0
    %917 = vmatpush1.bf16.msra.mxu0 %v571
    %918 = vmatprep.subr.bf16.mxu0 0
    %919 = vmatpush1.bf16.msra.mxu0 %v572
    %920 = vmatprep.subr.bf16.mxu0 0
    %921 = vmatpush1.bf16.msra.mxu0 %v573
    %922 = vmatprep.subr.bf16.mxu0 0
    %923 = vmatpush1.bf16.msra.mxu0 %v574
    %924 = vmatprep.subr.bf16.mxu0 0
    %925 = vmatpush1.bf16.msra.mxu0 %v575
    %926 = vmatprep.subr.bf16.mxu0 0
    %927 = vmatpush1.bf16.msra.mxu0 %v576
    %928 = vmatprep.subr.bf16.mxu0 0
    %929 = vmatpush1.bf16.msra.mxu0 %v577
    %930 = vmatprep.subr.bf16.mxu0 0
    %931 = vmatpush1.bf16.msra.mxu0 %v578
    %932 = vmatprep.mubr.bf16.mxu0 %v166
    %933 = vmatmul.mubr.bf16.gmra.mrb[0].mxu0 %v165
    %v934 = vpop.f32.mrb[0].mxu0
    %v935 = vadd.f32 %v646, %v934
    %v936 = vpop.f32.mrb[0].mxu0
    %v937 = vpop.f32.mrb[0].mxu0
    %v938 = vadd.f32 %v649, %v937
    %v939 = vpop.f32.mrb[0].mxu0
    %940 = vmatprep.mubr.bf16.mxu0 %v170
    %941 = vmatmul.mubr.bf16.gmra.mrb[0].mxu0 %v169
    %v942 = vpop.f32.mrb[0].mxu0
    %v943 = vadd.f32 %v654, %v942
    %v944 = vpop.f32.mrb[0].mxu0
    %v945 = vpop.f32.mrb[0].mxu0
    %v946 = vadd.f32 %v657, %v945
    %v947 = vpop.f32.mrb[0].mxu0
    %948 = vmatprep.mubr.bf16.mxu0 %v174
    %949 = vmatmul.mubr.bf16.gmra.mrb[0].mxu0 %v173
    %v950 = vpop.f32.mrb[0].mxu0
    %v951 = vadd.f32 %v662, %v950
    %v952 = vpop.f32.mrb[0].mxu0
    %v953 = vpop.f32.mrb[0].mxu0
    %v954 = vadd.f32 %v665, %v953
    %v955 = vpop.f32.mrb[0].mxu0
    %956 = vmatprep.mubr.bf16.mxu0 %v178
    %957 = vmatmul.mubr.bf16.gmra.mrb[0].mxu0 %v177
    %v958 = vpop.f32.mrb[0].mxu0
    %v959 = vadd.f32 %v670, %v958
    %v960 = vpop.f32.mrb[0].mxu0
    %v961 = vpop.f32.mrb[0].mxu0
    %v962 = vadd.f32 %v673, %v961
    %v963 = vpop.f32.mrb[0].mxu0
    %964 = vmatprep.mubr.bf16.mxu0 %v182
    %965 = vmatmul.mubr.bf16.gmra.mrb[0].mxu0 %v181
    %v966 = vpop.f32.mrb[0].mxu0
    %v967 = vadd.f32 %v678, %v966
    %v968 = vpop.f32.mrb[0].mxu0
    %v969 = vpop.f32.mrb[0].mxu0
    %v970 = vadd.f32 %v681, %v969
    %v971 = vpop.f32.mrb[0].mxu0
    %972 = vmatprep.mubr.bf16.mxu0 %v186
    %973 = vmatmul.mubr.bf16.gmra.mrb[0].mxu0 %v185
    %v974 = vpop.f32.mrb[0].mxu0
    %v975 = vadd.f32 %v686, %v974
    %v976 = vpop.f32.mrb[0].mxu0
    %v977 = vpop.f32.mrb[0].mxu0
    %v978 = vadd.f32 %v689, %v977
    %v979 = vpop.f32.mrb[0].mxu0
    %980 = vmatprep.mubr.bf16.mxu0 %v190
    %981 = vmatmul.mubr.bf16.gmra.mrb[0].mxu0 %v189
    %v982 = vpop.f32.mrb[0].mxu0
    %v983 = vadd.f32 %v694, %v982
    %v984 = vpop.f32.mrb[0].mxu0
    %v985 = vpop.f32.mrb[0].mxu0
    %v986 = vadd.f32 %v697, %v985
    %v987 = vpop.f32.mrb[0].mxu0
    %988 = vmatprep.mubr.bf16.mxu0 %v194
    %989 = vmatmul.mubr.bf16.gmra.mrb[0].mxu0 %v193
    %v990 = vpop.f32.mrb[0].mxu0
    %v991 = vadd.f32 %v702, %v990
    %v992 = vpop.f32.mrb[0].mxu0
    %v993 = vpop.f32.mrb[0].mxu0
    %v994 = vadd.f32 %v705, %v993
    %v995 = vpop.f32.mrb[0].mxu0
    %996 = vmatprep.mubr.bf16.mxu0 %v198
    %997 = vmatmul.mubr.bf16.gmra.mrb[0].mxu0 %v197
    %v998 = vpop.f32.mrb[0].mxu0
    %v999 = vadd.f32 %v710, %v998
    %v1000 = vpop.f32.mrb[0].mxu0
    %v1001 = vpop.f32.mrb[0].mxu0
    %v1002 = vadd.f32 %v713, %v1001
    %v1003 = vpop.f32.mrb[0].mxu0
    %1004 = vmatprep.mubr.bf16.mxu0 %v202
    %1005 = vmatmul.mubr.bf16.gmra.mrb[0].mxu0 %v201
    %v1006 = vpop.f32.mrb[0].mxu0
    %v1007 = vadd.f32 %v718, %v1006
    %v1008 = vpop.f32.mrb[0].mxu0
    %v1009 = vpop.f32.mrb[0].mxu0
    %v1010 = vadd.f32 %v721, %v1009
    %v1011 = vpop.f32.mrb[0].mxu0
    %1012 = vmatprep.mubr.bf16.mxu0 %v206
    %1013 = vmatmul.mubr.bf16.gmra.mrb[0].mxu0 %v205
    %v1014 = vpop.f32.mrb[0].mxu0
    %v1015 = vadd.f32 %v726, %v1014
    %v1016 = vpop.f32.mrb[0].mxu0
    %v1017 = vpop.f32.mrb[0].mxu0
    %v1018 = vadd.f32 %v729, %v1017
    %v1019 = vpop.f32.mrb[0].mxu0
    %1020 = vmatprep.mubr.bf16.mxu0 %v210
    %1021 = vmatmul.mubr.bf16.gmra.mrb[0].mxu0 %v209
    %v1022 = vpop.f32.mrb[0].mxu0
    %v1023 = vadd.f32 %v734, %v1022
    %v1024 = vpop.f32.mrb[0].mxu0
    %v1025 = vpop.f32.mrb[0].mxu0
    %v1026 = vadd.f32 %v737, %v1025
    %v1027 = vpop.f32.mrb[0].mxu0
    %1028 = vmatprep.mubr.bf16.mxu0 %v214
    %1029 = vmatmul.mubr.bf16.gmra.mrb[0].mxu0 %v213
    %v1030 = vpop.f32.mrb[0].mxu0
    %v1031 = vadd.f32 %v742, %v1030
    %v1032 = vpop.f32.mrb[0].mxu0
    %v1033 = vpop.f32.mrb[0].mxu0
    %v1034 = vadd.f32 %v745, %v1033
    %v1035 = vpop.f32.mrb[0].mxu0
    %1036 = vmatprep.mubr.bf16.mxu0 %v218
    %1037 = vmatmul.mubr.bf16.gmra.mrb[0].mxu0 %v217
    %v1038 = vpop.f32.mrb[0].mxu0
    %v1039 = vadd.f32 %v750, %v1038
    %v1040 = vpop.f32.mrb[0].mxu0
    %v1041 = vpop.f32.mrb[0].mxu0
    %v1042 = vadd.f32 %v753, %v1041
    %v1043 = vpop.f32.mrb[0].mxu0
    %1044 = vmatprep.mubr.bf16.mxu0 %v222
    %1045 = vmatmul.mubr.bf16.gmra.mrb[0].mxu0 %v221
    %v1046 = vpop.f32.mrb[0].mxu0
    %v1047 = vadd.f32 %v758, %v1046
    %v1048 = vpop.f32.mrb[0].mxu0
    %v1049 = vpop.f32.mrb[0].mxu0
    %v1050 = vadd.f32 %v761, %v1049
    %v1051 = vpop.f32.mrb[0].mxu0
    %1052 = vmatprep.mubr.bf16.mxu0 %v226
    %1053 = vmatmul.mubr.bf16.gmra.mrb[0].mxu0 %v225
    %v1054 = vpop.f32.mrb[0].mxu0
    %v1055 = vadd.f32 %v766, %v1054
    %v1056 = vpop.f32.mrb[0].mxu0
    %v1057 = vpop.f32.mrb[0].mxu0
    %v1058 = vadd.f32 %v769, %v1057
    %v1059 = vpop.f32.mrb[0].mxu0
    %1060 = vmatprep.mubr.bf16.mxu0 %v230
    %1061 = vmatmul.mubr.bf16.gmra.mrb[0].mxu0 %v229
    %v1062 = vpop.f32.mrb[0].mxu0
    %v1063 = vadd.f32 %v774, %v1062
    %v1064 = vpop.f32.mrb[0].mxu0
    %v1065 = vpop.f32.mrb[0].mxu0
    %v1066 = vadd.f32 %v777, %v1065
    %v1067 = vpop.f32.mrb[0].mxu0
    %1068 = vmatprep.mubr.bf16.mxu0 %v234
    %1069 = vmatmul.mubr.bf16.gmra.mrb[0].mxu0 %v233
    %v1070 = vpop.f32.mrb[0].mxu0
    %v1071 = vadd.f32 %v782, %v1070
    %v1072 = vpop.f32.mrb[0].mxu0
    %v1073 = vpop.f32.mrb[0].mxu0
    %v1074 = vadd.f32 %v785, %v1073
    %v1075 = vpop.f32.mrb[0].mxu0
    %1076 = vmatprep.mubr.bf16.mxu0 %v238
    %1077 = vmatmul.mubr.bf16.gmra.mrb[0].mxu0 %v237
    %v1078 = vpop.f32.mrb[0].mxu0
    %v1079 = vadd.f32 %v790, %v1078
    %v1080 = vpop.f32.mrb[0].mxu0
    %v1081 = vpop.f32.mrb[0].mxu0
    %v1082 = vadd.f32 %v793, %v1081
    %v1083 = vpop.f32.mrb[0].mxu0
    %1084 = vmatprep.mubr.bf16.mxu0 %v242
    %1085 = vmatmul.mubr.bf16.gmra.mrb[0].mxu0 %v241
    %v1086 = vpop.f32.mrb[0].mxu0
    %v1087 = vadd.f32 %v798, %v1086
    %v1088 = vpop.f32.mrb[0].mxu0
    %v1089 = vpop.f32.mrb[0].mxu0
    %v1090 = vadd.f32 %v801, %v1089
    %v1091 = vpop.f32.mrb[0].mxu0
    %1092 = vmatprep.mubr.bf16.mxu0 %v246
    %1093 = vmatmul.mubr.bf16.gmra.mrb[0].mxu0 %v245
    %v1094 = vpop.f32.mrb[0].mxu0
    %v1095 = vadd.f32 %v806, %v1094
    %v1096 = vpop.f32.mrb[0].mxu0
    %v1097 = vpop.f32.mrb[0].mxu0
    %v1098 = vadd.f32 %v809, %v1097
    %v1099 = vpop.f32.mrb[0].mxu0
    %1100 = vmatprep.mubr.bf16.mxu0 %v250
    %1101 = vmatmul.mubr.bf16.gmra.mrb[0].mxu0 %v249
    %v1102 = vpop.f32.mrb[0].mxu0
    %v1103 = vadd.f32 %v814, %v1102
    %v1104 = vpop.f32.mrb[0].mxu0
    %v1105 = vpop.f32.mrb[0].mxu0
    %v1106 = vadd.f32 %v817, %v1105
    %v1107 = vpop.f32.mrb[0].mxu0
    %1108 = vmatprep.mubr.bf16.mxu0 %v254
    %1109 = vmatmul.mubr.bf16.gmra.mrb[0].mxu0 %v253
    %v1110 = vpop.f32.mrb[0].mxu0
    %v1111 = vadd.f32 %v822, %v1110
    %v1112 = vpop.f32.mrb[0].mxu0
    %v1113 = vpop.f32.mrb[0].mxu0
    %v1114 = vadd.f32 %v825, %v1113
    %v1115 = vpop.f32.mrb[0].mxu0
    %1116 = vmatprep.mubr.bf16.mxu0 %v258
    %1117 = vmatmul.mubr.bf16.gmra.mrb[0].mxu0 %v257
    %v1118 = vpop.f32.mrb[0].mxu0
    %v1119 = vadd.f32 %v830, %v1118
    %v1120 = vpop.f32.mrb[0].mxu0
    %v1121 = vpop.f32.mrb[0].mxu0
    %v1122 = vadd.f32 %v833, %v1121
    %v1123 = vpop.f32.mrb[0].mxu0
    %1124 = vmatprep.mubr.bf16.mxu0 %v262
    %1125 = vmatmul.mubr.bf16.gmra.mrb[0].mxu0 %v261
    %v1126 = vpop.f32.mrb[0].mxu0
    %v1127 = vadd.f32 %v838, %v1126
    %v1128 = vpop.f32.mrb[0].mxu0
    %v1129 = vpop.f32.mrb[0].mxu0
    %v1130 = vadd.f32 %v841, %v1129
    %v1131 = vpop.f32.mrb[0].mxu0
    %1132 = vmatprep.mubr.bf16.mxu0 %v266
    %1133 = vmatmul.mubr.bf16.gmra.mrb[0].mxu0 %v265
    %v1134 = vpop.f32.mrb[0].mxu0
    %v1135 = vadd.f32 %v846, %v1134
    %v1136 = vpop.f32.mrb[0].mxu0
    %v1137 = vpop.f32.mrb[0].mxu0
    %v1138 = vadd.f32 %v849, %v1137
    %v1139 = vpop.f32.mrb[0].mxu0
    %1140 = vmatprep.mubr.bf16.mxu0 %v270
    %1141 = vmatmul.mubr.bf16.gmra.mrb[0].mxu0 %v269
    %v1142 = vpop.f32.mrb[0].mxu0
    %v1143 = vadd.f32 %v854, %v1142
    %v1144 = vpop.f32.mrb[0].mxu0
    %v1145 = vpop.f32.mrb[0].mxu0
    %v1146 = vadd.f32 %v857, %v1145
    %v1147 = vpop.f32.mrb[0].mxu0
    %1148 = vmatprep.mubr.bf16.mxu0 %v274
    %1149 = vmatmul.mubr.bf16.gmra.mrb[0].mxu0 %v273
    %v1150 = vpop.f32.mrb[0].mxu0
    %v1151 = vadd.f32 %v862, %v1150
    %v1152 = vpop.f32.mrb[0].mxu0
    %v1153 = vpop.f32.mrb[0].mxu0
    %v1154 = vadd.f32 %v865, %v1153
    %v1155 = vpop.f32.mrb[0].mxu0
    %1156 = vmatprep.mubr.bf16.mxu0 %v278
    %1157 = vmatmul.mubr.bf16.gmra.mrb[0].mxu0 %v277
    %v1158 = vpop.f32.mrb[0].mxu0
    %v1159 = vadd.f32 %v870, %v1158
    %v1160 = vpop.f32.mrb[0].mxu0
    %v1161 = vpop.f32.mrb[0].mxu0
    %v1162 = vadd.f32 %v873, %v1161
    %v1163 = vpop.f32.mrb[0].mxu0
    %1164 = vmatprep.mubr.bf16.mxu0 %v282
    %1165 = vmatmul.mubr.bf16.gmra.mrb[0].mxu0 %v281
    %v1166 = vpop.f32.mrb[0].mxu0
    %v1167 = vadd.f32 %v878, %v1166
    %v1168 = vpop.f32.mrb[0].mxu0
    %v1169 = vpop.f32.mrb[0].mxu0
    %v1170 = vadd.f32 %v881, %v1169
    %v1171 = vpop.f32.mrb[0].mxu0
    %1172 = vmatprep.mubr.bf16.mxu0 %v286
    %1173 = vmatmul.mubr.bf16.gmra.mrb[0].mxu0 %v285
    %v1174 = vpop.f32.mrb[0].mxu0
    %v1175 = vadd.f32 %v886, %v1174
    %v1176 = vpop.f32.mrb[0].mxu0
    %v1177 = vpop.f32.mrb[0].mxu0
    %v1178 = vadd.f32 %v889, %v1177
    %v1179 = vpop.f32.mrb[0].mxu0
    %1180 = vmatprep.mubr.bf16.mxu0 %v290
    %1181 = vmatmul.mubr.bf16.gmra.mrb[0].mxu0 %v289
    %v1182 = vpop.f32.mrb[0].mxu0
    %v1183 = vadd.f32 %v894, %v1182
    %v1184 = vpop.f32.mrb[0].mxu0
    %v1185 = vpop.f32.mrb[0].mxu0
    %v1186 = vadd.f32 %v897, %v1185
    %v1187 = vpop.f32.mrb[0].mxu0
    %1188 = vdwg.mxu0
    %v1189 = vadd.f32 %v291, %v935
    %v1190 = vadd.f32 %v292, %v938
    %v1191 = vadd.f32 %v293, %v943
    %v1192 = vadd.f32 %v294, %v946
    %v1193 = vadd.f32 %v295, %v951
    %v1194 = vadd.f32 %v296, %v954
    %v1195 = vadd.f32 %v297, %v959
    %v1196 = vadd.f32 %v298, %v962
    %v1197 = vadd.f32 %v299, %v967
    %v1198 = vadd.f32 %v300, %v970
    %v1199 = vadd.f32 %v301, %v975
    %v1200 = vadd.f32 %v302, %v978
    %v1201 = vadd.f32 %v303, %v983
    %v1202 = vadd.f32 %v304, %v986
    %v1203 = vadd.f32 %v305, %v991
    %v1204 = vadd.f32 %v306, %v994
    %v1205 = vadd.f32 %v307, %v999
    %v1206 = vadd.f32 %v308, %v1002
    %v1207 = vadd.f32 %v309, %v1007
    %v1208 = vadd.f32 %v310, %v1010
    %v1209 = vadd.f32 %v311, %v1015
    %v1210 = vadd.f32 %v312, %v1018
    %v1211 = vadd.f32 %v313, %v1023
    %v1212 = vadd.f32 %v314, %v1026
    %v1213 = vadd.f32 %v315, %v1031
    %v1214 = vadd.f32 %v316, %v1034
    %v1215 = vadd.f32 %v317, %v1039
    %v1216 = vadd.f32 %v318, %v1042
    %v1217 = vadd.f32 %v319, %v1047
    %v1218 = vadd.f32 %v320, %v1050
    %v1219 = vadd.f32 %v321, %v1055
    %v1220 = vadd.f32 %v322, %v1058
    %v1221 = vadd.f32 %v323, %v1063
    %v1222 = vadd.f32 %v324, %v1066
    %v1223 = vadd.f32 %v325, %v1071
    %v1224 = vadd.f32 %v326, %v1074
    %v1225 = vadd.f32 %v327, %v1079
    %v1226 = vadd.f32 %v328, %v1082
    %v1227 = vadd.f32 %v329, %v1087
    %v1228 = vadd.f32 %v330, %v1090
    %v1229 = vadd.f32 %v331, %v1095
    %v1230 = vadd.f32 %v332, %v1098
    %v1231 = vadd.f32 %v333, %v1103
    %v1232 = vadd.f32 %v334, %v1106
    %v1233 = vadd.f32 %v335, %v1111
    %v1234 = vadd.f32 %v336, %v1114
    %v1235 = vadd.f32 %v337, %v1119
    %v1236 = vadd.f32 %v338, %v1122
    %v1237 = vadd.f32 %v339, %v1127
    %v1238 = vadd.f32 %v340, %v1130
    %v1239 = vadd.f32 %v341, %v1135
    %v1240 = vadd.f32 %v342, %v1138
    %v1241 = vadd.f32 %v343, %v1143
    %v1242 = vadd.f32 %v344, %v1146
    %v1243 = vadd.f32 %v345, %v1151
    %v1244 = vadd.f32 %v346, %v1154
    %v1245 = vadd.f32 %v347, %v1159
    %v1246 = vadd.f32 %v348, %v1162
    %v1247 = vadd.f32 %v349, %v1167
    %v1248 = vadd.f32 %v350, %v1170
    %v1249 = vadd.f32 %v351, %v1175
    %v1250 = vadd.f32 %v352, %v1178
    %v1251 = vadd.f32 %v353, %v1183
    %v1252 = vadd.f32 %v354, %v1186
    %1253 = vst [vmem:[#allocation2] sm:$0xff] %v1189
    %1254 = vst [vmem:[#allocation2 + $0x8] sm:$0xff] %v1190
    %1255 = vst [vmem:[#allocation2 + $0x10] sm:$0xff] %v1191
    %1256 = vst [vmem:[#allocation2 + $0x18] sm:$0xff] %v1192
    %1257 = vst [vmem:[#allocation2 + $0x20] sm:$0xff] %v1193
    %1258 = vst [vmem:[#allocation2 + $0x28] sm:$0xff] %v1194
    %1259 = vst [vmem:[#allocation2 + $0x30] sm:$0xff] %v1195
    %1260 = vst [vmem:[#allocation2 + $0x38] sm:$0xff] %v1196
    %1261 = vst [vmem:[#allocation2 + $0x40] sm:$0xff] %v1197
    %1262 = vst [vmem:[#allocation2 + $0x48] sm:$0xff] %v1198
    %1263 = vst [vmem:[#allocation2 + $0x50] sm:$0xff] %v1199
    %1264 = vst [vmem:[#allocation2 + $0x58] sm:$0xff] %v1200
    %1265 = vst [vmem:[#allocation2 + $0x60] sm:$0xff] %v1201
    %1266 = vst [vmem:[#allocation2 + $0x68] sm:$0xff] %v1202
    %1267 = vst [vmem:[#allocation2 + $0x70] sm:$0xff] %v1203
    %1268 = vst [vmem:[#allocation2 + $0x78] sm:$0xff] %v1204
    %1269 = vst [vmem:[#allocation2 + $0x80] sm:$0xff] %v1205
    %1270 = vst [vmem:[#allocation2 + $0x88] sm:$0xff] %v1206
    %1271 = vst [vmem:[#allocation2 + $0x90] sm:$0xff] %v1207
    %1272 = vst [vmem:[#allocation2 + $0x98] sm:$0xff] %v1208
    %1273 = vst [vmem:[#allocation2 + $0xa0] sm:$0xff] %v1209
    %1274 = vst [vmem:[#allocation2 + $0xa8] sm:$0xff] %v1210
    %1275 = vst [vmem:[#allocation2 + $0xb0] sm:$0xff] %v1211
    %1276 = vst [vmem:[#allocation2 + $0xb8] sm:$0xff] %v1212
    %1277 = vst [vmem:[#allocation2 + $0xc0] sm:$0xff] %v1213
    %1278 = vst [vmem:[#allocation2 + $0xc8] sm:$0xff] %v1214
    %1279 = vst [vmem:[#allocation2 + $0xd0] sm:$0xff] %v1215
    %1280 = vst [vmem:[#allocation2 + $0xd8] sm:$0xff] %v1216
    %1281 = vst [vmem:[#allocation2 + $0xe0] sm:$0xff] %v1217
    %1282 = vst [vmem:[#allocation2 + $0xe8] sm:$0xff] %v1218
    %1283 = vst [vmem:[#allocation2 + $0xf0] sm:$0xff] %v1219
    %1284 = vst [vmem:[#allocation2 + $0xf8] sm:$0xff] %v1220
    %1285 = vst [vmem:[#allocation2 + $0x100] sm:$0xff] %v1221
    %1286 = vst [vmem:[#allocation2 + $0x108] sm:$0xff] %v1222
    %1287 = vst [vmem:[#allocation2 + $0x110] sm:$0xff] %v1223
    %1288 = vst [vmem:[#allocation2 + $0x118] sm:$0xff] %v1224
    %1289 = vst [vmem:[#allocation2 + $0x120] sm:$0xff] %v1225
    %1290 = vst [vmem:[#allocation2 + $0x128] sm:$0xff] %v1226
    %1291 = vst [vmem:[#allocation2 + $0x130] sm:$0xff] %v1227
    %1292 = vst [vmem:[#allocation2 + $0x138] sm:$0xff] %v1228
    %1293 = vst [vmem:[#allocation2 + $0x140] sm:$0xff] %v1229
    %1294 = vst [vmem:[#allocation2 + $0x148] sm:$0xff] %v1230
    %1295 = vst [vmem:[#allocation2 + $0x150] sm:$0xff] %v1231
    %1296 = vst [vmem:[#allocation2 + $0x158] sm:$0xff] %v1232
    %1297 = vst [vmem:[#allocation2 + $0x160] sm:$0xff] %v1233
    %1298 = vst [vmem:[#allocation2 + $0x168] sm:$0xff] %v1234
    %1299 = vst [vmem:[#allocation2 + $0x170] sm:$0xff] %v1235
    %1300 = vst [vmem:[#allocation2 + $0x178] sm:$0xff] %v1236
    %1301 = vst [vmem:[#allocation2 + $0x180] sm:$0xff] %v1237
    %1302 = vst [vmem:[#allocation2 + $0x188] sm:$0xff] %v1238
    %1303 = vst [vmem:[#allocation2 + $0x190] sm:$0xff] %v1239
    %1304 = vst [vmem:[#allocation2 + $0x198] sm:$0xff] %v1240
    %1305 = vst [vmem:[#allocation2 + $0x1a0] sm:$0xff] %v1241
    %1306 = vst [vmem:[#allocation2 + $0x1a8] sm:$0xff] %v1242
    %1307 = vst [vmem:[#allocation2 + $0x1b0] sm:$0xff] %v1243
    %1308 = vst [vmem:[#allocation2 + $0x1b8] sm:$0xff] %v1244
    %1309 = vst [vmem:[#allocation2 + $0x1c0] sm:$0xff] %v1245
    %1310 = vst [vmem:[#allocation2 + $0x1c8] sm:$0xff] %v1246
    %1311 = vst [vmem:[#allocation2 + $0x1d0] sm:$0xff] %v1247
    %1312 = vst [vmem:[#allocation2 + $0x1d8] sm:$0xff] %v1248
    %1313 = vst [vmem:[#allocation2 + $0x1e0] sm:$0xff] %v1249
    %1314 = vst [vmem:[#allocation2 + $0x1e8] sm:$0xff] %v1250
    %1315 = vst [vmem:[#allocation2 + $0x1f0] sm:$0xff] %v1251
    %1316 = vst [vmem:[#allocation2 + $0x1f8] sm:$0xff] %v1252
    // Predicated region
    $region38: #{_sage_cv_layer_impl.1} parent=1 // pred_check
      %p1317 = pneg %p31
    $region39: #{_sage_cv_layer_impl.1} parent=1 // pred_check_branch
      %1319 = sbr.rel (%p1317) target = $region41
    $region40: #{_sage_cv_layer_impl.1} parent=1 // pred_region
      %v1320 = vld [vmem:[%s3] sm:$0xff]
      %v1321 = vld [vmem:[%s3 + $0x8] sm:$0xff]
      %v1322 = vld [vmem:[%s3 + $0x10] sm:$0xff]
      %v1323 = vld [vmem:[%s3 + $0x18] sm:$0xff]
      %v1324 = vld [vmem:[%s3 + $0x20] sm:$0xff]
      %v1325 = vld [vmem:[%s3 + $0x28] sm:$0xff]
      %v1326 = vld [vmem:[%s3 + $0x30] sm:$0xff]
      %v1327 = vld [vmem:[%s3 + $0x38] sm:$0xff]
      %v1328 = vld [vmem:[%s3 + $0x40] sm:$0xff]
      %v1329 = vld [vmem:[%s3 + $0x48] sm:$0xff]
      %v1330 = vld [vmem:[%s3 + $0x50] sm:$0xff]
      %v1331 = vld [vmem:[%s3 + $0x58] sm:$0xff]
      %v1332 = vld [vmem:[%s3 + $0x60] sm:$0xff]
      %v1333 = vld [vmem:[%s3 + $0x68] sm:$0xff]
      %v1334 = vld [vmem:[%s3 + $0x70] sm:$0xff]
      %v1335 = vld [vmem:[%s3 + $0x78] sm:$0xff]
      %v1336 = vld [vmem:[%s3 + $0x80] sm:$0xff]
      %v1337 = vld [vmem:[%s3 + $0x88] sm:$0xff]
      %v1338 = vld [vmem:[%s3 + $0x90] sm:$0xff]
      %v1339 = vld [vmem:[%s3 + $0x98] sm:$0xff]
      %v1340 = vld [vmem:[%s3 + $0xa0] sm:$0xff]
      %v1341 = vld [vmem:[%s3 + $0xa8] sm:$0xff]
      %v1342 = vld [vmem:[%s3 + $0xb0] sm:$0xff]
      %v1343 = vld [vmem:[%s3 + $0xb8] sm:$0xff]
      %v1344 = vld [vmem:[%s3 + $0xc0] sm:$0xff]
      %v1345 = vld [vmem:[%s3 + $0xc8] sm:$0xff]
      %v1346 = vld [vmem:[%s3 + $0xd0] sm:$0xff]
      %v1347 = vld [vmem:[%s3 + $0xd8] sm:$0xff]
      %v1348 = vld [vmem:[%s3 + $0xe0] sm:$0xff]
      %v1349 = vld [vmem:[%s3 + $0xe8] sm:$0xff]
      %v1350 = vld [vmem:[%s3 + $0xf0] sm:$0xff]
      %v1351 = vld [vmem:[%s3 + $0xf8] sm:$0xff]
      %v1352 = vld [vmem:[%s3 + $0x100] sm:$0xff]
      %v1353 = vld [vmem:[%s3 + $0x108] sm:$0xff]
      %v1354 = vld [vmem:[%s3 + $0x110] sm:$0xff]
      %v1355 = vld [vmem:[%s3 + $0x118] sm:$0xff]
      %v1356 = vld [vmem:[%s3 + $0x120] sm:$0xff]
      %v1357 = vld [vmem:[%s3 + $0x128] sm:$0xff]
      %v1358 = vld [vmem:[%s3 + $0x130] sm:$0xff]
      %v1359 = vld [vmem:[%s3 + $0x138] sm:$0xff]
      %v1360 = vld [vmem:[%s3 + $0x140] sm:$0xff]
      %v1361 = vld [vmem:[%s3 + $0x148] sm:$0xff]
      %v1362 = vld [vmem:[%s3 + $0x150] sm:$0xff]
      %v1363 = vld [vmem:[%s3 + $0x158] sm:$0xff]
      %v1364 = vld [vmem:[%s3 + $0x160] sm:$0xff]
      %v1365 = vld [vmem:[%s3 + $0x168] sm:$0xff]
      %v1366 = vld [vmem:[%s3 + $0x170] sm:$0xff]
      %v1367 = vld [vmem:[%s3 + $0x178] sm:$0xff]
      %v1368 = vld [vmem:[%s3 + $0x180] sm:$0xff]
      %v1369 = vld [vmem:[%s3 + $0x188] sm:$0xff]
      %v1370 = vld [vmem:[%s3 + $0x190] sm:$0xff]
      %v1371 = vld [vmem:[%s3 + $0x198] sm:$0xff]
      %v1372 = vld [vmem:[%s3 + $0x1a0] sm:$0xff]
      %v1373 = vld [vmem:[%s3 + $0x1a8] sm:$0xff]
      %v1374 = vld [vmem:[%s3 + $0x1b0] sm:$0xff]
      %v1375 = vld [vmem:[%s3 + $0x1b8] sm:$0xff]
      %v1376 = vld [vmem:[%s3 + $0x1c0] sm:$0xff]
      %v1377 = vld [vmem:[%s3 + $0x1c8] sm:$0xff]
      %v1378 = vld [vmem:[%s3 + $0x1d0] sm:$0xff]
      %v1379 = vld [vmem:[%s3 + $0x1d8] sm:$0xff]
      %v1380 = vld [vmem:[%s3 + $0x1e0] sm:$0xff]
      %v1381 = vld [vmem:[%s3 + $0x1e8] sm:$0xff]
      %v1382 = vld [vmem:[%s3 + $0x1f0] sm:$0xff]
      %v1383 = vld [vmem:[%s3 + $0x1f8] sm:$0xff]
      %v1384 = vld [vmem:[#allocation2] sm:$0xff]
      %v1385 = vld [vmem:[#allocation2 + $0x8] sm:$0xff]
      %v1386 = vld [vmem:[#allocation2 + $0x10] sm:$0xff]
      %v1387 = vld [vmem:[#allocation2 + $0x18] sm:$0xff]
      %v1388 = vld [vmem:[#allocation2 + $0x20] sm:$0xff]
      %v1389 = vld [vmem:[#allocation2 + $0x28] sm:$0xff]
      %v1390 = vld [vmem:[#allocation2 + $0x30] sm:$0xff]
      %v1391 = vld [vmem:[#allocation2 + $0x38] sm:$0xff]
      %v1392 = vld [vmem:[#allocation2 + $0x40] sm:$0xff]
      %v1393 = vld [vmem:[#allocation2 + $0x48] sm:$0xff]
      %v1394 = vld [vmem:[#allocation2 + $0x50] sm:$0xff]
      %v1395 = vld [vmem:[#allocation2 + $0x58] sm:$0xff]
      %v1396 = vld [vmem:[#allocation2 + $0x60] sm:$0xff]
      %v1397 = vld [vmem:[#allocation2 + $0x68] sm:$0xff]
      %v1398 = vld [vmem:[#allocation2 + $0x70] sm:$0xff]
      %v1399 = vld [vmem:[#allocation2 + $0x78] sm:$0xff]
      %v1400 = vld [vmem:[#allocation2 + $0x80] sm:$0xff]
      %v1401 = vld [vmem:[#allocation2 + $0x88] sm:$0xff]
      %v1402 = vld [vmem:[#allocation2 + $0x90] sm:$0xff]
      %v1403 = vld [vmem:[#allocation2 + $0x98] sm:$0xff]
      %v1404 = vld [vmem:[#allocation2 + $0xa0] sm:$0xff]
      %v1405 = vld [vmem:[#allocation2 + $0xa8] sm:$0xff]
      %v1406 = vld [vmem:[#allocation2 + $0xb0] sm:$0xff]
      %v1407 = vld [vmem:[#allocation2 + $0xb8] sm:$0xff]
      %v1408 = vld [vmem:[#allocation2 + $0xc0] sm:$0xff]
      %v1409 = vld [vmem:[#allocation2 + $0xc8] sm:$0xff]
      %v1410 = vld [vmem:[#allocation2 + $0xd0] sm:$0xff]
      %v1411 = vld [vmem:[#allocation2 + $0xd8] sm:$0xff]
      %v1412 = vld [vmem:[#allocation2 + $0xe0] sm:$0xff]
      %v1413 = vld [vmem:[#allocation2 + $0xe8] sm:$0xff]
      %v1414 = vld [vmem:[#allocation2 + $0xf0] sm:$0xff]
      %v1415 = vld [vmem:[#allocation2 + $0xf8] sm:$0xff]
      %v1416 = vld [vmem:[#allocation2 + $0x100] sm:$0xff]
      %v1417 = vld [vmem:[#allocation2 + $0x108] sm:$0xff]
      %v1418 = vld [vmem:[#allocation2 + $0x110] sm:$0xff]
      %v1419 = vld [vmem:[#allocation2 + $0x118] sm:$0xff]
      %v1420 = vld [vmem:[#allocation2 + $0x120] sm:$0xff]
      %v1421 = vld [vmem:[#allocation2 + $0x128] sm:$0xff]
      %v1422 = vld [vmem:[#allocation2 + $0x130] sm:$0xff]
      %v1423 = vld [vmem:[#allocation2 + $0x138] sm:$0xff]
      %v1424 = vld [vmem:[#allocation2 + $0x140] sm:$0xff]
      %v1425 = vld [vmem:[#allocation2 + $0x148] sm:$0xff]
      %v1426 = vld [vmem:[#allocation2 + $0x150] sm:$0xff]
      %v1427 = vld [vmem:[#allocation2 + $0x158] sm:$0xff]
      %v1428 = vld [vmem:[#allocation2 + $0x160] sm:$0xff]
      %v1429 = vld [vmem:[#allocation2 + $0x168] sm:$0xff]
      %v1430 = vld [vmem:[#allocation2 + $0x170] sm:$0xff]
      %v1431 = vld [vmem:[#allocation2 + $0x178] sm:$0xff]
      %v1432 = vld [vmem:[#allocation2 + $0x180] sm:$0xff]
      %v1433 = vld [vmem:[#allocation2 + $0x188] sm:$0xff]
      %v1434 = vld [vmem:[#allocation2 + $0x190] sm:$0xff]
      %v1435 = vld [vmem:[#allocation2 + $0x198] sm:$0xff]
      %v1436 = vld [vmem:[#allocation2 + $0x1a0] sm:$0xff]
      %v1437 = vld [vmem:[#allocation2 + $0x1a8] sm:$0xff]
      %v1438 = vld [vmem:[#allocation2 + $0x1b0] sm:$0xff]
      %v1439 = vld [vmem:[#allocation2 + $0x1b8] sm:$0xff]
      %v1440 = vld [vmem:[#allocation2 + $0x1c0] sm:$0xff]
      %v1441 = vld [vmem:[#allocation2 + $0x1c8] sm:$0xff]
      %v1442 = vld [vmem:[#allocation2 + $0x1d0] sm:$0xff]
      %v1443 = vld [vmem:[#allocation2 + $0x1d8] sm:$0xff]
      %v1444 = vld [vmem:[#allocation2 + $0x1e0] sm:$0xff]
      %v1445 = vld [vmem:[#allocation2 + $0x1e8] sm:$0xff]
      %v1446 = vld [vmem:[#allocation2 + $0x1f0] sm:$0xff]
      %v1447 = vld [vmem:[#allocation2 + $0x1f8] sm:$0xff]
      %v1448 = vld [vmem:[%s4] sm:$0xff]
      %v1449 = vld [vmem:[%s4 + $0x8] sm:$0xff]
      %v1450 = vld [vmem:[%s4 + $0x10] sm:$0xff]
      %v1451 = vld [vmem:[%s4 + $0x18] sm:$0xff]
      %v1452 = vld [vmem:[%s4 + $0x20] sm:$0xff]
      %v1453 = vld [vmem:[%s4 + $0x28] sm:$0xff]
      %v1454 = vld [vmem:[%s4 + $0x30] sm:$0xff]
      %v1455 = vld [vmem:[%s4 + $0x38] sm:$0xff]
      %v1456 = vld [vmem:[%s4 + $0x40] sm:$0xff]
      %v1457 = vld [vmem:[%s4 + $0x48] sm:$0xff]
      %v1458 = vld [vmem:[%s4 + $0x50] sm:$0xff]
      %v1459 = vld [vmem:[%s4 + $0x58] sm:$0xff]
      %v1460 = vld [vmem:[%s4 + $0x60] sm:$0xff]
      %v1461 = vld [vmem:[%s4 + $0x68] sm:$0xff]
      %v1462 = vld [vmem:[%s4 + $0x70] sm:$0xff]
      %v1463 = vld [vmem:[%s4 + $0x78] sm:$0xff]
      %v1464 = vld [vmem:[%s4 + $0x80] sm:$0xff]
      %v1465 = vld [vmem:[%s4 + $0x88] sm:$0xff]
      %v1466 = vld [vmem:[%s4 + $0x90] sm:$0xff]
      %v1467 = vld [vmem:[%s4 + $0x98] sm:$0xff]
      %v1468 = vld [vmem:[%s4 + $0xa0] sm:$0xff]
      %v1469 = vld [vmem:[%s4 + $0xa8] sm:$0xff]
      %v1470 = vld [vmem:[%s4 + $0xb0] sm:$0xff]
      %v1471 = vld [vmem:[%s4 + $0xb8] sm:$0xff]
      %v1472 = vld [vmem:[%s4 + $0xc0] sm:$0xff]
      %v1473 = vld [vmem:[%s4 + $0xc8] sm:$0xff]
      %v1474 = vld [vmem:[%s4 + $0xd0] sm:$0xff]
      %v1475 = vld [vmem:[%s4 + $0xd8] sm:$0xff]
      %v1476 = vld [vmem:[%s4 + $0xe0] sm:$0xff]
      %v1477 = vld [vmem:[%s4 + $0xe8] sm:$0xff]
      %v1478 = vld [vmem:[%s4 + $0xf0] sm:$0xff]
      %v1479 = vld [vmem:[%s4 + $0xf8] sm:$0xff]
      %v1480 = vld [vmem:[%s4 + $0x100] sm:$0xff]
      %v1481 = vld [vmem:[%s4 + $0x108] sm:$0xff]
      %v1482 = vld [vmem:[%s4 + $0x110] sm:$0xff]
      %v1483 = vld [vmem:[%s4 + $0x118] sm:$0xff]
      %v1484 = vld [vmem:[%s4 + $0x120] sm:$0xff]
      %v1485 = vld [vmem:[%s4 + $0x128] sm:$0xff]
      %v1486 = vld [vmem:[%s4 + $0x130] sm:$0xff]
      %v1487 = vld [vmem:[%s4 + $0x138] sm:$0xff]
      %v1488 = vld [vmem:[%s4 + $0x140] sm:$0xff]
      %v1489 = vld [vmem:[%s4 + $0x148] sm:$0xff]
      %v1490 = vld [vmem:[%s4 + $0x150] sm:$0xff]
      %v1491 = vld [vmem:[%s4 + $0x158] sm:$0xff]
      %v1492 = vld [vmem:[%s4 + $0x160] sm:$0xff]
      %v1493 = vld [vmem:[%s4 + $0x168] sm:$0xff]
      %v1494 = vld [vmem:[%s4 + $0x170] sm:$0xff]
      %v1495 = vld [vmem:[%s4 + $0x178] sm:$0xff]
      %v1496 = vld [vmem:[%s4 + $0x180] sm:$0xff]
      %v1497 = vld [vmem:[%s4 + $0x188] sm:$0xff]
      %v1498 = vld [vmem:[%s4 + $0x190] sm:$0xff]
      %v1499 = vld [vmem:[%s4 + $0x198] sm:$0xff]
      %v1500 = vld [vmem:[%s4 + $0x1a0] sm:$0xff]
      %v1501 = vld [vmem:[%s4 + $0x1a8] sm:$0xff]
      %v1502 = vld [vmem:[%s4 + $0x1b0] sm:$0xff]
      %v1503 = vld [vmem:[%s4 + $0x1b8] sm:$0xff]
      %v1504 = vld [vmem:[%s4 + $0x1c0] sm:$0xff]
      %v1505 = vld [vmem:[%s4 + $0x1c8] sm:$0xff]
      %v1506 = vld [vmem:[%s4 + $0x1d0] sm:$0xff]
      %v1507 = vld [vmem:[%s4 + $0x1d8] sm:$0xff]
      %v1508 = vld [vmem:[%s4 + $0x1e0] sm:$0xff]
      %v1509 = vld [vmem:[%s4 + $0x1e8] sm:$0xff]
      %v1510 = vld [vmem:[%s4 + $0x1f0] sm:$0xff]
      %v1511 = vld [vmem:[%s4 + $0x1f8] sm:$0xff]
      %1513 = vset.pattern.permute.xlu0 0
      %1514 = vperm.xlu0 %1513, %v1448
      %v1515 = vpop.permute.xlu0 %1514
      %1518 = vset.pattern.permute.xlu0 0
      %1519 = vperm.xlu0 %1518, %v1449
      %v1520 = vpop.permute.xlu0 %1519
      %1523 = vset.pattern.permute.xlu0 0
      %1524 = vperm.xlu0 %1523, %v1450
      %v1525 = vpop.permute.xlu0 %1524
      %1528 = vset.pattern.permute.xlu0 0
      %1529 = vperm.xlu0 %1528, %v1451
      %v1530 = vpop.permute.xlu0 %1529
      %1533 = vset.pattern.permute.xlu0 0
      %1534 = vperm.xlu0 %1533, %v1452
      %v1535 = vpop.permute.xlu0 %1534
      %1538 = vset.pattern.permute.xlu0 0
      %1539 = vperm.xlu0 %1538, %v1453
      %v1540 = vpop.permute.xlu0 %1539
      %1543 = vset.pattern.permute.xlu0 0
      %1544 = vperm.xlu0 %1543, %v1454
      %v1545 = vpop.permute.xlu0 %1544
      %1548 = vset.pattern.permute.xlu0 0
      %1549 = vperm.xlu0 %1548, %v1455
      %v1550 = vpop.permute.xlu0 %1549
      %1553 = vset.pattern.permute.xlu0 0
      %1554 = vperm.xlu0 %1553, %v1456
      %v1555 = vpop.permute.xlu0 %1554
      %1558 = vset.pattern.permute.xlu0 0
      %1559 = vperm.xlu0 %1558, %v1457
      %v1560 = vpop.permute.xlu0 %1559
      %1563 = vset.pattern.permute.xlu0 0
      %1564 = vperm.xlu0 %1563, %v1458
      %v1565 = vpop.permute.xlu0 %1564
      %1568 = vset.pattern.permute.xlu0 0
      %1569 = vperm.xlu0 %1568, %v1459
      %v1570 = vpop.permute.xlu0 %1569
      %1573 = vset.pattern.permute.xlu0 0
      %1574 = vperm.xlu0 %1573, %v1460
      %v1575 = vpop.permute.xlu0 %1574
      %1578 = vset.pattern.permute.xlu0 0
      %1579 = vperm.xlu0 %1578, %v1461
      %v1580 = vpop.permute.xlu0 %1579
      %1583 = vset.pattern.permute.xlu0 0
      %1584 = vperm.xlu0 %1583, %v1462
      %v1585 = vpop.permute.xlu0 %1584
      %1588 = vset.pattern.permute.xlu0 0
      %1589 = vperm.xlu0 %1588, %v1463
      %v1590 = vpop.permute.xlu0 %1589
      %1593 = vset.pattern.permute.xlu0 0
      %1594 = vperm.xlu0 %1593, %v1464
      %v1595 = vpop.permute.xlu0 %1594
      %1598 = vset.pattern.permute.xlu0 0
      %1599 = vperm.xlu0 %1598, %v1465
      %v1600 = vpop.permute.xlu0 %1599
      %1603 = vset.pattern.permute.xlu0 0
      %1604 = vperm.xlu0 %1603, %v1466
      %v1605 = vpop.permute.xlu0 %1604
      %1608 = vset.pattern.permute.xlu0 0
      %1609 = vperm.xlu0 %1608, %v1467
      %v1610 = vpop.permute.xlu0 %1609
      %1613 = vset.pattern.permute.xlu0 0
      %1614 = vperm.xlu0 %1613, %v1468
      %v1615 = vpop.permute.xlu0 %1614
      %1618 = vset.pattern.permute.xlu0 0
      %1619 = vperm.xlu0 %1618, %v1469
      %v1620 = vpop.permute.xlu0 %1619
      %1623 = vset.pattern.permute.xlu0 0
      %1624 = vperm.xlu0 %1623, %v1470
      %v1625 = vpop.permute.xlu0 %1624
      %1628 = vset.pattern.permute.xlu0 0
      %1629 = vperm.xlu0 %1628, %v1471
      %v1630 = vpop.permute.xlu0 %1629
      %1633 = vset.pattern.permute.xlu0 0
      %1634 = vperm.xlu0 %1633, %v1472
      %v1635 = vpop.permute.xlu0 %1634
      %1638 = vset.pattern.permute.xlu0 0
      %1639 = vperm.xlu0 %1638, %v1473
      %v1640 = vpop.permute.xlu0 %1639
      %1643 = vset.pattern.permute.xlu0 0
      %1644 = vperm.xlu0 %1643, %v1474
      %v1645 = vpop.permute.xlu0 %1644
      %1648 = vset.pattern.permute.xlu0 0
      %1649 = vperm.xlu0 %1648, %v1475
      %v1650 = vpop.permute.xlu0 %1649
      %1653 = vset.pattern.permute.xlu0 0
      %1654 = vperm.xlu0 %1653, %v1476
      %v1655 = vpop.permute.xlu0 %1654
      %1658 = vset.pattern.permute.xlu0 0
      %1659 = vperm.xlu0 %1658, %v1477
      %v1660 = vpop.permute.xlu0 %1659
      %1663 = vset.pattern.permute.xlu0 0
      %1664 = vperm.xlu0 %1663, %v1478
      %v1665 = vpop.permute.xlu0 %1664
      %1668 = vset.pattern.permute.xlu0 0
      %1669 = vperm.xlu0 %1668, %v1479
      %v1670 = vpop.permute.xlu0 %1669
      %1673 = vset.pattern.permute.xlu0 0
      %1674 = vperm.xlu0 %1673, %v1480
      %v1675 = vpop.permute.xlu0 %1674
      %1678 = vset.pattern.permute.xlu0 0
      %1679 = vperm.xlu0 %1678, %v1481
      %v1680 = vpop.permute.xlu0 %1679
      %1683 = vset.pattern.permute.xlu0 0
      %1684 = vperm.xlu0 %1683, %v1482
      %v1685 = vpop.permute.xlu0 %1684
      %1688 = vset.pattern.permute.xlu0 0
      %1689 = vperm.xlu0 %1688, %v1483
      %v1690 = vpop.permute.xlu0 %1689
      %1693 = vset.pattern.permute.xlu0 0
      %1694 = vperm.xlu0 %1693, %v1484
      %v1695 = vpop.permute.xlu0 %1694
      %1698 = vset.pattern.permute.xlu0 0
      %1699 = vperm.xlu0 %1698, %v1485
      %v1700 = vpop.permute.xlu0 %1699
      %1703 = vset.pattern.permute.xlu0 0
      %1704 = vperm.xlu0 %1703, %v1486
      %v1705 = vpop.permute.xlu0 %1704
      %1708 = vset.pattern.permute.xlu0 0
      %1709 = vperm.xlu0 %1708, %v1487
      %v1710 = vpop.permute.xlu0 %1709
      %1713 = vset.pattern.permute.xlu0 0
      %1714 = vperm.xlu0 %1713, %v1488
      %v1715 = vpop.permute.xlu0 %1714
      %1718 = vset.pattern.permute.xlu0 0
      %1719 = vperm.xlu0 %1718, %v1489
      %v1720 = vpop.permute.xlu0 %1719
      %1723 = vset.pattern.permute.xlu0 0
      %1724 = vperm.xlu0 %1723, %v1490
      %v1725 = vpop.permute.xlu0 %1724
      %1728 = vset.pattern.permute.xlu0 0
      %1729 = vperm.xlu0 %1728, %v1491
      %v1730 = vpop.permute.xlu0 %1729
      %1733 = vset.pattern.permute.xlu0 0
      %1734 = vperm.xlu0 %1733, %v1492
      %v1735 = vpop.permute.xlu0 %1734
      %1738 = vset.pattern.permute.xlu0 0
      %1739 = vperm.xlu0 %1738, %v1493
      %v1740 = vpop.permute.xlu0 %1739
      %1743 = vset.pattern.permute.xlu0 0
      %1744 = vperm.xlu0 %1743, %v1494
      %v1745 = vpop.permute.xlu0 %1744
      %1748 = vset.pattern.permute.xlu0 0
      %1749 = vperm.xlu0 %1748, %v1495
      %v1750 = vpop.permute.xlu0 %1749
      %1753 = vset.pattern.permute.xlu0 0
      %1754 = vperm.xlu0 %1753, %v1496
      %v1755 = vpop.permute.xlu0 %1754
      %1758 = vset.pattern.permute.xlu0 0
      %1759 = vperm.xlu0 %1758, %v1497
      %v1760 = vpop.permute.xlu0 %1759
      %1763 = vset.pattern.permute.xlu0 0
      %1764 = vperm.xlu0 %1763, %v1498
      %v1765 = vpop.permute.xlu0 %1764
      %1768 = vset.pattern.permute.xlu0 0
      %1769 = vperm.xlu0 %1768, %v1499
      %v1770 = vpop.permute.xlu0 %1769
      %1773 = vset.pattern.permute.xlu0 0
      %1774 = vperm.xlu0 %1773, %v1500
      %v1775 = vpop.permute.xlu0 %1774
      %1778 = vset.pattern.permute.xlu0 0
      %1779 = vperm.xlu0 %1778, %v1501
      %v1780 = vpop.permute.xlu0 %1779
      %1783 = vset.pattern.permute.xlu0 0
      %1784 = vperm.xlu0 %1783, %v1502
      %v1785 = vpop.permute.xlu0 %1784
      %1788 = vset.pattern.permute.xlu0 0
      %1789 = vperm.xlu0 %1788, %v1503
      %v1790 = vpop.permute.xlu0 %1789
      %1793 = vset.pattern.permute.xlu0 0
      %1794 = vperm.xlu0 %1793, %v1504
      %v1795 = vpop.permute.xlu0 %1794
      %1798 = vset.pattern.permute.xlu0 0
      %1799 = vperm.xlu0 %1798, %v1505
      %v1800 = vpop.permute.xlu0 %1799
      %1803 = vset.pattern.permute.xlu0 0
      %1804 = vperm.xlu0 %1803, %v1506
      %v1805 = vpop.permute.xlu0 %1804
      %1808 = vset.pattern.permute.xlu0 0
      %1809 = vperm.xlu0 %1808, %v1507
      %v1810 = vpop.permute.xlu0 %1809
      %1813 = vset.pattern.permute.xlu0 0
      %1814 = vperm.xlu0 %1813, %v1508
      %v1815 = vpop.permute.xlu0 %1814
      %1818 = vset.pattern.permute.xlu0 0
      %1819 = vperm.xlu0 %1818, %v1509
      %v1820 = vpop.permute.xlu0 %1819
      %1823 = vset.pattern.permute.xlu0 0
      %1824 = vperm.xlu0 %1823, %v1510
      %v1825 = vpop.permute.xlu0 %1824
      %1828 = vset.pattern.permute.xlu0 0
      %1829 = vperm.xlu0 %1828, %v1511
      %v1830 = vpop.permute.xlu0 %1829
      %v1832 = vmul.f32 %v1384, %v1515
      %v1833 = vmul.f32 %v1385, %v1520
      %v1834 = vmul.f32 %v1386, %v1525
      %v1835 = vmul.f32 %v1387, %v1530
      %v1836 = vmul.f32 %v1388, %v1535
      %v1837 = vmul.f32 %v1389, %v1540
      %v1838 = vmul.f32 %v1390, %v1545
      %v1839 = vmul.f32 %v1391, %v1550
      %v1840 = vmul.f32 %v1392, %v1555
      %v1841 = vmul.f32 %v1393, %v1560
      %v1842 = vmul.f32 %v1394, %v1565
      %v1843 = vmul.f32 %v1395, %v1570
      %v1844 = vmul.f32 %v1396, %v1575
      %v1845 = vmul.f32 %v1397, %v1580
      %v1846 = vmul.f32 %v1398, %v1585
      %v1847 = vmul.f32 %v1399, %v1590
      %v1848 = vmul.f32 %v1400, %v1595
      %v1849 = vmul.f32 %v1401, %v1600
      %v1850 = vmul.f32 %v1402, %v1605
      %v1851 = vmul.f32 %v1403, %v1610
      %v1852 = vmul.f32 %v1404, %v1615
      %v1853 = vmul.f32 %v1405, %v1620
      %v1854 = vmul.f32 %v1406, %v1625
      %v1855 = vmul.f32 %v1407, %v1630
      %v1856 = vmul.f32 %v1408, %v1635
      %v1857 = vmul.f32 %v1409, %v1640
      %v1858 = vmul.f32 %v1410, %v1645
      %v1859 = vmul.f32 %v1411, %v1650
      %v1860 = vmul.f32 %v1412, %v1655
      %v1861 = vmul.f32 %v1413, %v1660
      %v1862 = vmul.f32 %v1414, %v1665
      %v1863 = vmul.f32 %v1415, %v1670
      %v1864 = vmul.f32 %v1416, %v1675
      %v1865 = vmul.f32 %v1417, %v1680
      %v1866 = vmul.f32 %v1418, %v1685
      %v1867 = vmul.f32 %v1419, %v1690
      %v1868 = vmul.f32 %v1420, %v1695
      %v1869 = vmul.f32 %v1421, %v1700
      %v1870 = vmul.f32 %v1422, %v1705
      %v1871 = vmul.f32 %v1423, %v1710
      %v1872 = vmul.f32 %v1424, %v1715
      %v1873 = vmul.f32 %v1425, %v1720
      %v1874 = vmul.f32 %v1426, %v1725
      %v1875 = vmul.f32 %v1427, %v1730
      %v1876 = vmul.f32 %v1428, %v1735
      %v1877 = vmul.f32 %v1429, %v1740
      %v1878 = vmul.f32 %v1430, %v1745
      %v1879 = vmul.f32 %v1431, %v1750
      %v1880 = vmul.f32 %v1432, %v1755
      %v1881 = vmul.f32 %v1433, %v1760
      %v1882 = vmul.f32 %v1434, %v1765
      %v1883 = vmul.f32 %v1435, %v1770
      %v1884 = vmul.f32 %v1436, %v1775
      %v1885 = vmul.f32 %v1437, %v1780
      %v1886 = vmul.f32 %v1438, %v1785
      %v1887 = vmul.f32 %v1439, %v1790
      %v1888 = vmul.f32 %v1440, %v1795
      %v1889 = vmul.f32 %v1441, %v1800
      %v1890 = vmul.f32 %v1442, %v1805
      %v1891 = vmul.f32 %v1443, %v1810
      %v1892 = vmul.f32 %v1444, %v1815
      %v1893 = vmul.f32 %v1445, %v1820
      %v1894 = vmul.f32 %v1446, %v1825
      %v1895 = vmul.f32 %v1447, %v1830
      %v1896 = vadd.f32 %v1320, %v1832
      %v1897 = vadd.f32 %v1321, %v1833
      %v1898 = vadd.f32 %v1322, %v1834
      %v1899 = vadd.f32 %v1323, %v1835
      %v1900 = vadd.f32 %v1324, %v1836
      %v1901 = vadd.f32 %v1325, %v1837
      %v1902 = vadd.f32 %v1326, %v1838
      %v1903 = vadd.f32 %v1327, %v1839
      %v1904 = vadd.f32 %v1328, %v1840
      %v1905 = vadd.f32 %v1329, %v1841
      %v1906 = vadd.f32 %v1330, %v1842
      %v1907 = vadd.f32 %v1331, %v1843
      %v1908 = vadd.f32 %v1332, %v1844
      %v1909 = vadd.f32 %v1333, %v1845
      %v1910 = vadd.f32 %v1334, %v1846
      %v1911 = vadd.f32 %v1335, %v1847
      %v1912 = vadd.f32 %v1336, %v1848
      %v1913 = vadd.f32 %v1337, %v1849
      %v1914 = vadd.f32 %v1338, %v1850
      %v1915 = vadd.f32 %v1339, %v1851
      %v1916 = vadd.f32 %v1340, %v1852
      %v1917 = vadd.f32 %v1341, %v1853
      %v1918 = vadd.f32 %v1342, %v1854
      %v1919 = vadd.f32 %v1343, %v1855
      %v1920 = vadd.f32 %v1344, %v1856
      %v1921 = vadd.f32 %v1345, %v1857
      %v1922 = vadd.f32 %v1346, %v1858
      %v1923 = vadd.f32 %v1347, %v1859
      %v1924 = vadd.f32 %v1348, %v1860
      %v1925 = vadd.f32 %v1349, %v1861
      %v1926 = vadd.f32 %v1350, %v1862
      %v1927 = vadd.f32 %v1351, %v1863
      %v1928 = vadd.f32 %v1352, %v1864
      %v1929 = vadd.f32 %v1353, %v1865
      %v1930 = vadd.f32 %v1354, %v1866
      %v1931 = vadd.f32 %v1355, %v1867
      %v1932 = vadd.f32 %v1356, %v1868
      %v1933 = vadd.f32 %v1357, %v1869
      %v1934 = vadd.f32 %v1358, %v1870
      %v1935 = vadd.f32 %v1359, %v1871
      %v1936 = vadd.f32 %v1360, %v1872
      %v1937 = vadd.f32 %v1361, %v1873
      %v1938 = vadd.f32 %v1362, %v1874
      %v1939 = vadd.f32 %v1363, %v1875
      %v1940 = vadd.f32 %v1364, %v1876
      %v1941 = vadd.f32 %v1365, %v1877
      %v1942 = vadd.f32 %v1366, %v1878
      %v1943 = vadd.f32 %v1367, %v1879
      %v1944 = vadd.f32 %v1368, %v1880
      %v1945 = vadd.f32 %v1369, %v1881
      %v1946 = vadd.f32 %v1370, %v1882
      %v1947 = vadd.f32 %v1371, %v1883
      %v1948 = vadd.f32 %v1372, %v1884
      %v1949 = vadd.f32 %v1373, %v1885
      %v1950 = vadd.f32 %v1374, %v1886
      %v1951 = vadd.f32 %v1375, %v1887
      %v1952 = vadd.f32 %v1376, %v1888
      %v1953 = vadd.f32 %v1377, %v1889
      %v1954 = vadd.f32 %v1378, %v1890
      %v1955 = vadd.f32 %v1379, %v1891
      %v1956 = vadd.f32 %v1380, %v1892
      %v1957 = vadd.f32 %v1381, %v1893
      %v1958 = vadd.f32 %v1382, %v1894
      %v1959 = vadd.f32 %v1383, %v1895
      %v1960 = vld [vmem:[%s2] sm:$0xff]
      %v1961 = vld [vmem:[%s2 + $0x8] sm:$0xff]
      %v1962 = vld [vmem:[%s2 + $0x10] sm:$0xff]
      %v1963 = vld [vmem:[%s2 + $0x18] sm:$0xff]
      %v1964 = vld [vmem:[%s2 + $0x20] sm:$0xff]
      %v1965 = vld [vmem:[%s2 + $0x28] sm:$0xff]
      %v1966 = vld [vmem:[%s2 + $0x30] sm:$0xff]
      %v1967 = vld [vmem:[%s2 + $0x38] sm:$0xff]
      %v1968 = vld [vmem:[%s2 + $0x40] sm:$0xff]
      %v1969 = vld [vmem:[%s2 + $0x48] sm:$0xff]
      %v1970 = vld [vmem:[%s2 + $0x50] sm:$0xff]
      %v1971 = vld [vmem:[%s2 + $0x58] sm:$0xff]
      %v1972 = vld [vmem:[%s2 + $0x60] sm:$0xff]
      %v1973 = vld [vmem:[%s2 + $0x68] sm:$0xff]
      %v1974 = vld [vmem:[%s2 + $0x70] sm:$0xff]
      %v1975 = vld [vmem:[%s2 + $0x78] sm:$0xff]
      %v1976 = vld [vmem:[%s2 + $0x80] sm:$0xff]
      %v1977 = vld [vmem:[%s2 + $0x88] sm:$0xff]
      %v1978 = vld [vmem:[%s2 + $0x90] sm:$0xff]
      %v1979 = vld [vmem:[%s2 + $0x98] sm:$0xff]
      %v1980 = vld [vmem:[%s2 + $0xa0] sm:$0xff]
      %v1981 = vld [vmem:[%s2 + $0xa8] sm:$0xff]
      %v1982 = vld [vmem:[%s2 + $0xb0] sm:$0xff]
      %v1983 = vld [vmem:[%s2 + $0xb8] sm:$0xff]
      %v1984 = vld [vmem:[%s2 + $0xc0] sm:$0xff]
      %v1985 = vld [vmem:[%s2 + $0xc8] sm:$0xff]
      %v1986 = vld [vmem:[%s2 + $0xd0] sm:$0xff]
      %v1987 = vld [vmem:[%s2 + $0xd8] sm:$0xff]
      %v1988 = vld [vmem:[%s2 + $0xe0] sm:$0xff]
      %v1989 = vld [vmem:[%s2 + $0xe8] sm:$0xff]
      %v1990 = vld [vmem:[%s2 + $0xf0] sm:$0xff]
      %v1991 = vld [vmem:[%s2 + $0xf8] sm:$0xff]
      %v1992 = vld [vmem:[%s2 + $0x100] sm:$0xff]
      %v1993 = vld [vmem:[%s2 + $0x108] sm:$0xff]
      %v1994 = vld [vmem:[%s2 + $0x110] sm:$0xff]
      %v1995 = vld [vmem:[%s2 + $0x118] sm:$0xff]
      %v1996 = vld [vmem:[%s2 + $0x120] sm:$0xff]
      %v1997 = vld [vmem:[%s2 + $0x128] sm:$0xff]
      %v1998 = vld [vmem:[%s2 + $0x130] sm:$0xff]
      %v1999 = vld [vmem:[%s2 + $0x138] sm:$0xff]
      %v2000 = vld [vmem:[%s2 + $0x140] sm:$0xff]
      %v2001 = vld [vmem:[%s2 + $0x148] sm:$0xff]
      %v2002 = vld [vmem:[%s2 + $0x150] sm:$0xff]
      %v2003 = vld [vmem:[%s2 + $0x158] sm:$0xff]
      %v2004 = vld [vmem:[%s2 + $0x160] sm:$0xff]
      %v2005 = vld [vmem:[%s2 + $0x168] sm:$0xff]
      %v2006 = vld [vmem:[%s2 + $0x170] sm:$0xff]
      %v2007 = vld [vmem:[%s2 + $0x178] sm:$0xff]
      %v2008 = vld [vmem:[%s2 + $0x180] sm:$0xff]
      %v2009 = vld [vmem:[%s2 + $0x188] sm:$0xff]
      %v2010 = vld [vmem:[%s2 + $0x190] sm:$0xff]
      %v2011 = vld [vmem:[%s2 + $0x198] sm:$0xff]
      %v2012 = vld [vmem:[%s2 + $0x1a0] sm:$0xff]
      %v2013 = vld [vmem:[%s2 + $0x1a8] sm:$0xff]
      %v2014 = vld [vmem:[%s2 + $0x1b0] sm:$0xff]
      %v2015 = vld [vmem:[%s2 + $0x1b8] sm:$0xff]
      %v2016 = vld [vmem:[%s2 + $0x1c0] sm:$0xff]
      %v2017 = vld [vmem:[%s2 + $0x1c8] sm:$0xff]
      %v2018 = vld [vmem:[%s2 + $0x1d0] sm:$0xff]
      %v2019 = vld [vmem:[%s2 + $0x1d8] sm:$0xff]
      %v2020 = vld [vmem:[%s2 + $0x1e0] sm:$0xff]
      %v2021 = vld [vmem:[%s2 + $0x1e8] sm:$0xff]
      %v2022 = vld [vmem:[%s2 + $0x1f0] sm:$0xff]
      %v2023 = vld [vmem:[%s2 + $0x1f8] sm:$0xff]
      %v2024 = vpack.c.bf16 %v1961, %v1960
      %v2025 = vpack.c.bf16 %v1963, %v1962
      %v2026 = vpack.c.bf16 %v1965, %v1964
      %v2027 = vpack.c.bf16 %v1967, %v1966
      %v2028 = vpack.c.bf16 %v1969, %v1968
      %v2029 = vpack.c.bf16 %v1971, %v1970
      %v2030 = vpack.c.bf16 %v1973, %v1972
      %v2031 = vpack.c.bf16 %v1975, %v1974
      %v2032 = vpack.c.bf16 %v1977, %v1976
      %v2033 = vpack.c.bf16 %v1979, %v1978
      %v2034 = vpack.c.bf16 %v1981, %v1980
      %v2035 = vpack.c.bf16 %v1983, %v1982
      %v2036 = vpack.c.bf16 %v1985, %v1984
      %v2037 = vpack.c.bf16 %v1987, %v1986
      %v2038 = vpack.c.bf16 %v1989, %v1988
      %v2039 = vpack.c.bf16 %v1991, %v1990
      %v2040 = vpack.c.bf16 %v1993, %v1992
      %v2041 = vpack.c.bf16 %v1995, %v1994
      %v2042 = vpack.c.bf16 %v1997, %v1996
      %v2043 = vpack.c.bf16 %v1999, %v1998
      %v2044 = vpack.c.bf16 %v2001, %v2000
      %v2045 = vpack.c.bf16 %v2003, %v2002
      %v2046 = vpack.c.bf16 %v2005, %v2004
      %v2047 = vpack.c.bf16 %v2007, %v2006
      %v2048 = vpack.c.bf16 %v2009, %v2008
      %v2049 = vpack.c.bf16 %v2011, %v2010
      %v2050 = vpack.c.bf16 %v2013, %v2012
      %v2051 = vpack.c.bf16 %v2015, %v2014
      %v2052 = vpack.c.bf16 %v2017, %v2016
      %v2053 = vpack.c.bf16 %v2019, %v2018
      %v2054 = vpack.c.bf16 %v2021, %v2020
      %v2055 = vpack.c.bf16 %v2023, %v2022
      %v2056 = vld [vmem:[%s5] sm:$0xf]
      %v2057 = vld [vmem:[%s5 + $0x4] sm:$0xf]
      %v2058 = vld [vmem:[%s5 + $0x8] sm:$0xf]
      %v2059 = vld [vmem:[%s5 + $0xc] sm:$0xf]
      %v2060 = vld [vmem:[%s5 + $0x10] sm:$0xf]
      %v2061 = vld [vmem:[%s5 + $0x14] sm:$0xf]
      %v2062 = vld [vmem:[%s5 + $0x18] sm:$0xf]
      %v2063 = vld [vmem:[%s5 + $0x1c] sm:$0xf]
      %v2064 = vld [vmem:[%s5 + $0x20] sm:$0xf]
      %v2065 = vld [vmem:[%s5 + $0x24] sm:$0xf]
      %v2066 = vld [vmem:[%s5 + $0x28] sm:$0xf]
      %v2067 = vld [vmem:[%s5 + $0x2c] sm:$0xf]
      %v2068 = vld [vmem:[%s5 + $0x30] sm:$0xf]
      %v2069 = vld [vmem:[%s5 + $0x34] sm:$0xf]
      %v2070 = vld [vmem:[%s5 + $0x38] sm:$0xf]
      %v2071 = vld [vmem:[%s5 + $0x3c] sm:$0xf]
      %v2072 = vpack.c.bf16 %v1897, %v1896
      %v2073 = vpack.c.bf16 %v1899, %v1898
      %v2074 = vpack.c.bf16 %v1901, %v1900
      %v2075 = vpack.c.bf16 %v1903, %v1902
      %v2076 = vpack.c.bf16 %v1905, %v1904
      %v2077 = vpack.c.bf16 %v1907, %v1906
      %v2078 = vpack.c.bf16 %v1909, %v1908
      %v2079 = vpack.c.bf16 %v1911, %v1910
      %v2080 = vpack.c.bf16 %v1913, %v1912
      %v2081 = vpack.c.bf16 %v1915, %v1914
      %v2082 = vpack.c.bf16 %v1917, %v1916
      %v2083 = vpack.c.bf16 %v1919, %v1918
      %v2084 = vpack.c.bf16 %v1921, %v1920
      %v2085 = vpack.c.bf16 %v1923, %v1922
      %v2086 = vpack.c.bf16 %v1925, %v1924
      %v2087 = vpack.c.bf16 %v1927, %v1926
      %v2088 = vpack.c.bf16 %v1929, %v1928
      %v2089 = vpack.c.bf16 %v1931, %v1930
      %v2090 = vpack.c.bf16 %v1933, %v1932
      %v2091 = vpack.c.bf16 %v1935, %v1934
      %v2092 = vpack.c.bf16 %v1937, %v1936
      %v2093 = vpack.c.bf16 %v1939, %v1938
      %v2094 = vpack.c.bf16 %v1941, %v1940
      %v2095 = vpack.c.bf16 %v1943, %v1942
      %v2096 = vpack.c.bf16 %v1945, %v1944
      %v2097 = vpack.c.bf16 %v1947, %v1946
      %v2098 = vpack.c.bf16 %v1949, %v1948
      %v2099 = vpack.c.bf16 %v1951, %v1950
      %v2100 = vpack.c.bf16 %v1953, %v1952
      %v2101 = vpack.c.bf16 %v1955, %v1954
      %v2102 = vpack.c.bf16 %v1957, %v1956
      %v2103 = vpack.c.bf16 %v1959, %v1958
      %v2104 = vld [vmem:[%s6] sm:$0xf]
      %v2105 = vld [vmem:[%s6 + $0x4] sm:$0xf]
      %v2106 = vld [vmem:[%s6 + $0x8] sm:$0xf]
      %v2107 = vld [vmem:[%s6 + $0xc] sm:$0xf]
      %v2108 = vld [vmem:[%s6 + $0x10] sm:$0xf]
      %v2109 = vld [vmem:[%s6 + $0x14] sm:$0xf]
      %v2110 = vld [vmem:[%s6 + $0x18] sm:$0xf]
      %v2111 = vld [vmem:[%s6 + $0x1c] sm:$0xf]
      %v2112 = vld [vmem:[%s6 + $0x20] sm:$0xf]
      %v2113 = vld [vmem:[%s6 + $0x24] sm:$0xf]
      %v2114 = vld [vmem:[%s6 + $0x28] sm:$0xf]
      %v2115 = vld [vmem:[%s6 + $0x2c] sm:$0xf]
      %v2116 = vld [vmem:[%s6 + $0x30] sm:$0xf]
      %v2117 = vld [vmem:[%s6 + $0x34] sm:$0xf]
      %v2118 = vld [vmem:[%s6 + $0x38] sm:$0xf]
      %v2119 = vld [vmem:[%s6 + $0x3c] sm:$0xf]
      %v2136 = vunpack.c.l.b16 %v2104
      %v2137 = vunpack.c.l.b16 %v2105
      %v2138 = vunpack.c.l.b16 %v2106
      %v2139 = vunpack.c.l.b16 %v2107
      %v2140 = vunpack.c.l.b16 %v2108
      %v2141 = vunpack.c.l.b16 %v2109
      %v2142 = vunpack.c.l.b16 %v2110
      %v2143 = vunpack.c.l.b16 %v2111
      %v2144 = vunpack.c.l.b16 %v2112
      %v2145 = vunpack.c.l.b16 %v2113
      %v2146 = vunpack.c.l.b16 %v2114
      %v2147 = vunpack.c.l.b16 %v2115
      %v2148 = vunpack.c.l.b16 %v2116
      %v2149 = vunpack.c.l.b16 %v2117
      %v2150 = vunpack.c.l.b16 %v2118
      %v2151 = vunpack.c.l.b16 %v2119
      %v2152 = vpack.c.b16 %v2137, %v2136
      %v2153 = vpack.c.b16 %v2139, %v2138
      %v2154 = vpack.c.b16 %v2141, %v2140
      %v2155 = vpack.c.b16 %v2143, %v2142
      %v2156 = vpack.c.b16 %v2145, %v2144
      %v2157 = vpack.c.b16 %v2147, %v2146
      %v2158 = vpack.c.b16 %v2149, %v2148
      %v2159 = vpack.c.b16 %v2151, %v2150
      %2168 = vmatprep.subr.bf16.mxu0 0
      %2169 = vmatpush1.bf16.msra.mxu0 %v2152
      %2170 = vmatprep.subr.bf16.mxu0 0
      %2171 = vmatpush1.bf16.msra.mxu0 %v2153
      %2172 = vmatprep.subr.bf16.mxu0 0
      %2173 = vmatpush1.bf16.msra.mxu0 %v2154
      %2174 = vmatprep.subr.bf16.mxu0 0
      %2175 = vmatpush1.bf16.msra.mxu0 %v2155
      %2176 = vmatprep.subr.bf16.mxu0 0
      %2177 = vmatpush1.bf16.msra.mxu0 %v2156
      %2178 = vmatprep.subr.bf16.mxu0 0
      %2179 = vmatpush1.bf16.msra.mxu0 %v2157
      %2180 = vmatprep.subr.bf16.mxu0 0
      %2181 = vmatpush1.bf16.msra.mxu0 %v2158
      %2182 = vmatprep.subr.bf16.mxu0 0
      %2183 = vmatpush1.bf16.msra.mxu0 %v2159
      %2184 = vmatprep.subr.bf16.mxu0 0
      %2185 = vmatpush1.bf16.msra.mxu0 0
      %2186 = vmatprep.subr.bf16.mxu0 0
      %2187 = vmatpush1.bf16.msra.mxu0 0
      %2188 = vmatprep.subr.bf16.mxu0 0
      %2189 = vmatpush1.bf16.msra.mxu0 0
      %2190 = vmatprep.subr.bf16.mxu0 0
      %2191 = vmatpush1.bf16.msra.mxu0 0
      %2192 = vmatprep.subr.bf16.mxu0 0
      %2193 = vmatpush1.bf16.msra.mxu0 0
      %2194 = vmatprep.subr.bf16.mxu0 0
      %2195 = vmatpush1.bf16.msra.mxu0 0
      %2196 = vmatprep.subr.bf16.mxu0 0
      %2197 = vmatpush1.bf16.msra.mxu0 0
      %2198 = vmatprep.subr.bf16.mxu0 0
      %2199 = vmatpush1.bf16.msra.mxu0 0
      %2200 = vmatprep.mubr.bf16.mxu0 0
      %2201 = vmatmul.mubr.bf16.gmra.mrb[0].mxu0 %v2072
      %v2202 = vpop.f32.mrb[0].mxu0
      %v2203 = vadd.f32 0.0, %v2202
      %v2204 = vpop.f32.mrb[0].mxu0
      %v2205 = vpop.f32.mrb[0].mxu0
      %v2206 = vadd.f32 0.0, %v2205
      %v2207 = vpop.f32.mrb[0].mxu0
      %2208 = vmatprep.mubr.bf16.mxu0 0
      %2209 = vmatmul.mubr.bf16.gmra.mrb[0].mxu0 %v2073
      %v2210 = vpop.f32.mrb[0].mxu0
      %v2211 = vadd.f32 0.0, %v2210
      %v2212 = vpop.f32.mrb[0].mxu0
      %v2213 = vpop.f32.mrb[0].mxu0
      %v2214 = vadd.f32 0.0, %v2213
      %v2215 = vpop.f32.mrb[0].mxu0
      %2216 = vmatprep.mubr.bf16.mxu0 0
      %2217 = vmatmul.mubr.bf16.gmra.mrb[0].mxu0 %v2074
      %v2218 = vpop.f32.mrb[0].mxu0
      %v2219 = vadd.f32 0.0, %v2218
      %v2220 = vpop.f32.mrb[0].mxu0
      %v2221 = vpop.f32.mrb[0].mxu0
      %v2222 = vadd.f32 0.0, %v2221
      %v2223 = vpop.f32.mrb[0].mxu0
      %2224 = vmatprep.mubr.bf16.mxu0 0
      %2225 = vmatmul.mubr.bf16.gmra.mrb[0].mxu0 %v2075
      %v2226 = vpop.f32.mrb[0].mxu0
      %v2227 = vadd.f32 0.0, %v2226
      %v2228 = vpop.f32.mrb[0].mxu0
      %v2229 = vpop.f32.mrb[0].mxu0
      %v2230 = vadd.f32 0.0, %v2229
      %v2231 = vpop.f32.mrb[0].mxu0
      %2232 = vmatprep.mubr.bf16.mxu0 0
      %2233 = vmatmul.mubr.bf16.gmra.mrb[0].mxu0 %v2076
      %v2234 = vpop.f32.mrb[0].mxu0
      %v2235 = vadd.f32 0.0, %v2234
      %v2236 = vpop.f32.mrb[0].mxu0
      %v2237 = vpop.f32.mrb[0].mxu0
      %v2238 = vadd.f32 0.0, %v2237
      %v2239 = vpop.f32.mrb[0].mxu0
      %2240 = vmatprep.mubr.bf16.mxu0 0
      %2241 = vmatmul.mubr.bf16.gmra.mrb[0].mxu0 %v2077
      %v2242 = vpop.f32.mrb[0].mxu0
      %v2243 = vadd.f32 0.0, %v2242
      %v2244 = vpop.f32.mrb[0].mxu0
      %v2245 = vpop.f32.mrb[0].mxu0
      %v2246 = vadd.f32 0.0, %v2245
      %v2247 = vpop.f32.mrb[0].mxu0
      %2248 = vmatprep.mubr.bf16.mxu0 0
      %2249 = vmatmul.mubr.bf16.gmra.mrb[0].mxu0 %v2078
      %v2250 = vpop.f32.mrb[0].mxu0
      %v2251 = vadd.f32 0.0, %v2250
      %v2252 = vpop.f32.mrb[0].mxu0
      %v2253 = vpop.f32.mrb[0].mxu0
      %v2254 = vadd.f32 0.0, %v2253
      %v2255 = vpop.f32.mrb[0].mxu0
      %2256 = vmatprep.mubr.bf16.mxu0 0
      %2257 = vmatmul.mubr.bf16.gmra.mrb[0].mxu0 %v2079
      %v2258 = vpop.f32.mrb[0].mxu0
      %v2259 = vadd.f32 0.0, %v2258
      %v2260 = vpop.f32.mrb[0].mxu0
      %v2261 = vpop.f32.mrb[0].mxu0
      %v2262 = vadd.f32 0.0, %v2261
      %v2263 = vpop.f32.mrb[0].mxu0
      %2264 = vmatprep.mubr.bf16.mxu0 0
      %2265 = vmatmul.mubr.bf16.gmra.mrb[0].mxu0 %v2080
      %v2266 = vpop.f32.mrb[0].mxu0
      %v2267 = vadd.f32 0.0, %v2266
      %v2268 = vpop.f32.mrb[0].mxu0
      %v2269 = vpop.f32.mrb[0].mxu0
      %v2270 = vadd.f32 0.0, %v2269
      %v2271 = vpop.f32.mrb[0].mxu0
      %2272 = vmatprep.mubr.bf16.mxu0 0
      %2273 = vmatmul.mubr.bf16.gmra.mrb[0].mxu0 %v2081
      %v2274 = vpop.f32.mrb[0].mxu0
      %v2275 = vadd.f32 0.0, %v2274
      %v2276 = vpop.f32.mrb[0].mxu0
      %v2277 = vpop.f32.mrb[0].mxu0
      %v2278 = vadd.f32 0.0, %v2277
      %v2279 = vpop.f32.mrb[0].mxu0
      %2280 = vmatprep.mubr.bf16.mxu0 0
      %2281 = vmatmul.mubr.bf16.gmra.mrb[0].mxu0 %v2082
      %v2282 = vpop.f32.mrb[0].mxu0
      %v2283 = vadd.f32 0.0, %v2282
      %v2284 = vpop.f32.mrb[0].mxu0
      %v2285 = vpop.f32.mrb[0].mxu0
      %v2286 = vadd.f32 0.0, %v2285
      %v2287 = vpop.f32.mrb[0].mxu0
      %2288 = vmatprep.mubr.bf16.mxu0 0
      %2289 = vmatmul.mubr.bf16.gmra.mrb[0].mxu0 %v2083
      %v2290 = vpop.f32.mrb[0].mxu0
      %v2291 = vadd.f32 0.0, %v2290
      %v2292 = vpop.f32.mrb[0].mxu0
      %v2293 = vpop.f32.mrb[0].mxu0
      %v2294 = vadd.f32 0.0, %v2293
      %v2295 = vpop.f32.mrb[0].mxu0
      %2296 = vmatprep.mubr.bf16.mxu0 0
      %2297 = vmatmul.mubr.bf16.gmra.mrb[0].mxu0 %v2084
      %v2298 = vpop.f32.mrb[0].mxu0
      %v2299 = vadd.f32 0.0, %v2298
      %v2300 = vpop.f32.mrb[0].mxu0
      %v2301 = vpop.f32.mrb[0].mxu0
      %v2302 = vadd.f32 0.0, %v2301
      %v2303 = vpop.f32.mrb[0].mxu0
      %2304 = vmatprep.mubr.bf16.mxu0 0
      %2305 = vmatmul.mubr.bf16.gmra.mrb[0].mxu0 %v2085
      %v2306 = vpop.f32.mrb[0].mxu0
      %v2307 = vadd.f32 0.0, %v2306
      %v2308 = vpop.f32.mrb[0].mxu0
      %v2309 = vpop.f32.mrb[0].mxu0
      %v2310 = vadd.f32 0.0, %v2309
      %v2311 = vpop.f32.mrb[0].mxu0
      %2312 = vmatprep.mubr.bf16.mxu0 0
      %2313 = vmatmul.mubr.bf16.gmra.mrb[0].mxu0 %v2086
      %v2314 = vpop.f32.mrb[0].mxu0
      %v2315 = vadd.f32 0.0, %v2314
      %v2316 = vpop.f32.mrb[0].mxu0
      %v2317 = vpop.f32.mrb[0].mxu0
      %v2318 = vadd.f32 0.0, %v2317
      %v2319 = vpop.f32.mrb[0].mxu0
      %2320 = vmatprep.mubr.bf16.mxu0 0
      %2321 = vmatmul.mubr.bf16.gmra.mrb[0].mxu0 %v2087
      %v2322 = vpop.f32.mrb[0].mxu0
      %v2323 = vadd.f32 0.0, %v2322
      %v2324 = vpop.f32.mrb[0].mxu0
      %v2325 = vpop.f32.mrb[0].mxu0
      %v2326 = vadd.f32 0.0, %v2325
      %v2327 = vpop.f32.mrb[0].mxu0
      %2328 = vmatprep.mubr.bf16.mxu0 0
      %2329 = vmatmul.mubr.bf16.gmra.mrb[0].mxu0 %v2088
      %v2330 = vpop.f32.mrb[0].mxu0
      %v2331 = vadd.f32 0.0, %v2330
      %v2332 = vpop.f32.mrb[0].mxu0
      %v2333 = vpop.f32.mrb[0].mxu0
      %v2334 = vadd.f32 0.0, %v2333
      %v2335 = vpop.f32.mrb[0].mxu0
      %2336 = vmatprep.mubr.bf16.mxu0 0
      %2337 = vmatmul.mubr.bf16.gmra.mrb[0].mxu0 %v2089
      %v2338 = vpop.f32.mrb[0].mxu0
      %v2339 = vadd.f32 0.0, %v2338
      %v2340 = vpop.f32.mrb[0].mxu0
      %v2341 = vpop.f32.mrb[0].mxu0
      %v2342 = vadd.f32 0.0, %v2341
      %v2343 = vpop.f32.mrb[0].mxu0
      %2344 = vmatprep.mubr.bf16.mxu0 0
      %2345 = vmatmul.mubr.bf16.gmra.mrb[0].mxu0 %v2090
      %v2346 = vpop.f32.mrb[0].mxu0
      %v2347 = vadd.f32 0.0, %v2346
      %v2348 = vpop.f32.mrb[0].mxu0
      %v2349 = vpop.f32.mrb[0].mxu0
      %v2350 = vadd.f32 0.0, %v2349
      %v2351 = vpop.f32.mrb[0].mxu0
      %2352 = vmatprep.mubr.bf16.mxu0 0
      %2353 = vmatmul.mubr.bf16.gmra.mrb[0].mxu0 %v2091
      %v2354 = vpop.f32.mrb[0].mxu0
      %v2355 = vadd.f32 0.0, %v2354
      %v2356 = vpop.f32.mrb[0].mxu0
      %v2357 = vpop.f32.mrb[0].mxu0
      %v2358 = vadd.f32 0.0, %v2357
      %v2359 = vpop.f32.mrb[0].mxu0
      %2360 = vmatprep.mubr.bf16.mxu0 0
      %2361 = vmatmul.mubr.bf16.gmra.mrb[0].mxu0 %v2092
      %v2362 = vpop.f32.mrb[0].mxu0
      %v2363 = vadd.f32 0.0, %v2362
      %v2364 = vpop.f32.mrb[0].mxu0
      %v2365 = vpop.f32.mrb[0].mxu0
      %v2366 = vadd.f32 0.0, %v2365
      %v2367 = vpop.f32.mrb[0].mxu0
      %2368 = vmatprep.mubr.bf16.mxu0 0
      %2369 = vmatmul.mubr.bf16.gmra.mrb[0].mxu0 %v2093
      %v2370 = vpop.f32.mrb[0].mxu0
      %v2371 = vadd.f32 0.0, %v2370
      %v2372 = vpop.f32.mrb[0].mxu0
      %v2373 = vpop.f32.mrb[0].mxu0
      %v2374 = vadd.f32 0.0, %v2373
      %v2375 = vpop.f32.mrb[0].mxu0
      %2376 = vmatprep.mubr.bf16.mxu0 0
      %2377 = vmatmul.mubr.bf16.gmra.mrb[0].mxu0 %v2094
      %v2378 = vpop.f32.mrb[0].mxu0
      %v2379 = vadd.f32 0.0, %v2378
      %v2380 = vpop.f32.mrb[0].mxu0
      %v2381 = vpop.f32.mrb[0].mxu0
      %v2382 = vadd.f32 0.0, %v2381
      %v2383 = vpop.f32.mrb[0].mxu0
      %2384 = vmatprep.mubr.bf16.mxu0 0
      %2385 = vmatmul.mubr.bf16.gmra.mrb[0].mxu0 %v2095
      %v2386 = vpop.f32.mrb[0].mxu0
      %v2387 = vadd.f32 0.0, %v2386
      %v2388 = vpop.f32.mrb[0].mxu0
      %v2389 = vpop.f32.mrb[0].mxu0
      %v2390 = vadd.f32 0.0, %v2389
      %v2391 = vpop.f32.mrb[0].mxu0
      %2392 = vmatprep.mubr.bf16.mxu0 0
      %2393 = vmatmul.mubr.bf16.gmra.mrb[0].mxu0 %v2096
      %v2394 = vpop.f32.mrb[0].mxu0
      %v2395 = vadd.f32 0.0, %v2394
      %v2396 = vpop.f32.mrb[0].mxu0
      %v2397 = vpop.f32.mrb[0].mxu0
      %v2398 = vadd.f32 0.0, %v2397
      %v2399 = vpop.f32.mrb[0].mxu0
      %2400 = vmatprep.mubr.bf16.mxu0 0
      %2401 = vmatmul.mubr.bf16.gmra.mrb[0].mxu0 %v2097
      %v2402 = vpop.f32.mrb[0].mxu0
      %v2403 = vadd.f32 0.0, %v2402
      %v2404 = vpop.f32.mrb[0].mxu0
      %v2405 = vpop.f32.mrb[0].mxu0
      %v2406 = vadd.f32 0.0, %v2405
      %v2407 = vpop.f32.mrb[0].mxu0
      %2408 = vmatprep.mubr.bf16.mxu0 0
      %2409 = vmatmul.mubr.bf16.gmra.mrb[0].mxu0 %v2098
      %v2410 = vpop.f32.mrb[0].mxu0
      %v2411 = vadd.f32 0.0, %v2410
      %v2412 = vpop.f32.mrb[0].mxu0
      %v2413 = vpop.f32.mrb[0].mxu0
      %v2414 = vadd.f32 0.0, %v2413
      %v2415 = vpop.f32.mrb[0].mxu0
      %2416 = vmatprep.mubr.bf16.mxu0 0
      %2417 = vmatmul.mubr.bf16.gmra.mrb[0].mxu0 %v2099
      %v2418 = vpop.f32.mrb[0].mxu0
      %v2419 = vadd.f32 0.0, %v2418
      %v2420 = vpop.f32.mrb[0].mxu0
      %v2421 = vpop.f32.mrb[0].mxu0
      %v2422 = vadd.f32 0.0, %v2421
      %v2423 = vpop.f32.mrb[0].mxu0
      %2424 = vmatprep.mubr.bf16.mxu0 0
      %2425 = vmatmul.mubr.bf16.gmra.mrb[0].mxu0 %v2100
      %v2426 = vpop.f32.mrb[0].mxu0
      %v2427 = vadd.f32 0.0, %v2426
      %v2428 = vpop.f32.mrb[0].mxu0
      %v2429 = vpop.f32.mrb[0].mxu0
      %v2430 = vadd.f32 0.0, %v2429
      %v2431 = vpop.f32.mrb[0].mxu0
      %2432 = vmatprep.mubr.bf16.mxu0 0
      %2433 = vmatmul.mubr.bf16.gmra.mrb[0].mxu0 %v2101
      %v2434 = vpop.f32.mrb[0].mxu0
      %v2435 = vadd.f32 0.0, %v2434
      %v2436 = vpop.f32.mrb[0].mxu0
      %v2437 = vpop.f32.mrb[0].mxu0
      %v2438 = vadd.f32 0.0, %v2437
      %v2439 = vpop.f32.mrb[0].mxu0
      %2440 = vmatprep.mubr.bf16.mxu0 0
      %2441 = vmatmul.mubr.bf16.gmra.mrb[0].mxu0 %v2102
      %v2442 = vpop.f32.mrb[0].mxu0
      %v2443 = vadd.f32 0.0, %v2442
      %v2444 = vpop.f32.mrb[0].mxu0
      %v2445 = vpop.f32.mrb[0].mxu0
      %v2446 = vadd.f32 0.0, %v2445
      %v2447 = vpop.f32.mrb[0].mxu0
      %2448 = vmatprep.mubr.bf16.mxu0 0
      %2449 = vmatmul.mubr.bf16.gmra.mrb[0].mxu0 %v2103
      %v2450 = vpop.f32.mrb[0].mxu0
      %v2451 = vadd.f32 0.0, %v2450
      %v2452 = vpop.f32.mrb[0].mxu0
      %v2453 = vpop.f32.mrb[0].mxu0
      %v2454 = vadd.f32 0.0, %v2453
      %v2455 = vpop.f32.mrb[0].mxu0
      %2456 = vdwg.mxu0
      %v2473 = vunpack.c.l.b16 %v2056
      %v2474 = vunpack.c.l.b16 %v2057
      %v2475 = vunpack.c.l.b16 %v2058
      %v2476 = vunpack.c.l.b16 %v2059
      %v2477 = vunpack.c.l.b16 %v2060
      %v2478 = vunpack.c.l.b16 %v2061
      %v2479 = vunpack.c.l.b16 %v2062
      %v2480 = vunpack.c.l.b16 %v2063
      %v2481 = vunpack.c.l.b16 %v2064
      %v2482 = vunpack.c.l.b16 %v2065
      %v2483 = vunpack.c.l.b16 %v2066
      %v2484 = vunpack.c.l.b16 %v2067
      %v2485 = vunpack.c.l.b16 %v2068
      %v2486 = vunpack.c.l.b16 %v2069
      %v2487 = vunpack.c.l.b16 %v2070
      %v2488 = vunpack.c.l.b16 %v2071
      %v2489 = vpack.c.b16 %v2474, %v2473
      %v2490 = vpack.c.b16 %v2476, %v2475
      %v2491 = vpack.c.b16 %v2478, %v2477
      %v2492 = vpack.c.b16 %v2480, %v2479
      %v2493 = vpack.c.b16 %v2482, %v2481
      %v2494 = vpack.c.b16 %v2484, %v2483
      %v2495 = vpack.c.b16 %v2486, %v2485
      %v2496 = vpack.c.b16 %v2488, %v2487
      %2505 = vmatprep.subr.bf16.mxu0 0
      %2506 = vmatpush1.bf16.msra.mxu0 %v2489
      %2507 = vmatprep.subr.bf16.mxu0 0
      %2508 = vmatpush1.bf16.msra.mxu0 %v2490
      %2509 = vmatprep.subr.bf16.mxu0 0
      %2510 = vmatpush1.bf16.msra.mxu0 %v2491
      %2511 = vmatprep.subr.bf16.mxu0 0
      %2512 = vmatpush1.bf16.msra.mxu0 %v2492
      %2513 = vmatprep.subr.bf16.mxu0 0
      %2514 = vmatpush1.bf16.msra.mxu0 %v2493
      %2515 = vmatprep.subr.bf16.mxu0 0
      %2516 = vmatpush1.bf16.msra.mxu0 %v2494
      %2517 = vmatprep.subr.bf16.mxu0 0
      %2518 = vmatpush1.bf16.msra.mxu0 %v2495
      %2519 = vmatprep.subr.bf16.mxu0 0
      %2520 = vmatpush1.bf16.msra.mxu0 %v2496
      %2521 = vmatprep.subr.bf16.mxu0 0
      %2522 = vmatpush1.bf16.msra.mxu0 0
      %2523 = vmatprep.subr.bf16.mxu0 0
      %2524 = vmatpush1.bf16.msra.mxu0 0
      %2525 = vmatprep.subr.bf16.mxu0 0
      %2526 = vmatpush1.bf16.msra.mxu0 0
      %2527 = vmatprep.subr.bf16.mxu0 0
      %2528 = vmatpush1.bf16.msra.mxu0 0
      %2529 = vmatprep.subr.bf16.mxu0 0
      %2530 = vmatpush1.bf16.msra.mxu0 0
      %2531 = vmatprep.subr.bf16.mxu0 0
      %2532 = vmatpush1.bf16.msra.mxu0 0
      %2533 = vmatprep.subr.bf16.mxu0 0
      %2534 = vmatpush1.bf16.msra.mxu0 0
      %2535 = vmatprep.subr.bf16.mxu0 0
      %2536 = vmatpush1.bf16.msra.mxu0 0
      %2537 = vmatprep.mubr.bf16.mxu0 0
      %2538 = vmatmul.mubr.bf16.gmra.mrb[0].mxu0 %v2024
      %v2539 = vpop.f32.mrb[0].mxu0
      %v2540 = vadd.f32 %v2203, %v2539
      %v2541 = vpop.f32.mrb[0].mxu0
      %v2542 = vpop.f32.mrb[0].mxu0
      %v2543 = vadd.f32 %v2206, %v2542
      %v2544 = vpop.f32.mrb[0].mxu0
      %2545 = vmatprep.mubr.bf16.mxu0 0
      %2546 = vmatmul.mubr.bf16.gmra.mrb[0].mxu0 %v2025
      %v2547 = vpop.f32.mrb[0].mxu0
      %v2548 = vadd.f32 %v2211, %v2547
      %v2549 = vpop.f32.mrb[0].mxu0
      %v2550 = vpop.f32.mrb[0].mxu0
      %v2551 = vadd.f32 %v2214, %v2550
      %v2552 = vpop.f32.mrb[0].mxu0
      %2553 = vmatprep.mubr.bf16.mxu0 0
      %2554 = vmatmul.mubr.bf16.gmra.mrb[0].mxu0 %v2026
      %v2555 = vpop.f32.mrb[0].mxu0
      %v2556 = vadd.f32 %v2219, %v2555
      %v2557 = vpop.f32.mrb[0].mxu0
      %v2558 = vpop.f32.mrb[0].mxu0
      %v2559 = vadd.f32 %v2222, %v2558
      %v2560 = vpop.f32.mrb[0].mxu0
      %2561 = vmatprep.mubr.bf16.mxu0 0
      %2562 = vmatmul.mubr.bf16.gmra.mrb[0].mxu0 %v2027
      %v2563 = vpop.f32.mrb[0].mxu0
      %v2564 = vadd.f32 %v2227, %v2563
      %v2565 = vpop.f32.mrb[0].mxu0
      %v2566 = vpop.f32.mrb[0].mxu0
      %v2567 = vadd.f32 %v2230, %v2566
      %v2568 = vpop.f32.mrb[0].mxu0
      %2569 = vmatprep.mubr.bf16.mxu0 0
      %2570 = vmatmul.mubr.bf16.gmra.mrb[0].mxu0 %v2028
      %v2571 = vpop.f32.mrb[0].mxu0
      %v2572 = vadd.f32 %v2235, %v2571
      %v2573 = vpop.f32.mrb[0].mxu0
      %v2574 = vpop.f32.mrb[0].mxu0
      %v2575 = vadd.f32 %v2238, %v2574
      %v2576 = vpop.f32.mrb[0].mxu0
      %2577 = vmatprep.mubr.bf16.mxu0 0
      %2578 = vmatmul.mubr.bf16.gmra.mrb[0].mxu0 %v2029
      %v2579 = vpop.f32.mrb[0].mxu0
      %v2580 = vadd.f32 %v2243, %v2579
      %v2581 = vpop.f32.mrb[0].mxu0
      %v2582 = vpop.f32.mrb[0].mxu0
      %v2583 = vadd.f32 %v2246, %v2582
      %v2584 = vpop.f32.mrb[0].mxu0
      %2585 = vmatprep.mubr.bf16.mxu0 0
      %2586 = vmatmul.mubr.bf16.gmra.mrb[0].mxu0 %v2030
      %v2587 = vpop.f32.mrb[0].mxu0
      %v2588 = vadd.f32 %v2251, %v2587
      %v2589 = vpop.f32.mrb[0].mxu0
      %v2590 = vpop.f32.mrb[0].mxu0
      %v2591 = vadd.f32 %v2254, %v2590
      %v2592 = vpop.f32.mrb[0].mxu0
      %2593 = vmatprep.mubr.bf16.mxu0 0
      %2594 = vmatmul.mubr.bf16.gmra.mrb[0].mxu0 %v2031
      %v2595 = vpop.f32.mrb[0].mxu0
      %v2596 = vadd.f32 %v2259, %v2595
      %v2597 = vpop.f32.mrb[0].mxu0
      %v2598 = vpop.f32.mrb[0].mxu0
      %v2599 = vadd.f32 %v2262, %v2598
      %v2600 = vpop.f32.mrb[0].mxu0
      %2601 = vmatprep.mubr.bf16.mxu0 0
      %2602 = vmatmul.mubr.bf16.gmra.mrb[0].mxu0 %v2032
      %v2603 = vpop.f32.mrb[0].mxu0
      %v2604 = vadd.f32 %v2267, %v2603
      %v2605 = vpop.f32.mrb[0].mxu0
      %v2606 = vpop.f32.mrb[0].mxu0
      %v2607 = vadd.f32 %v2270, %v2606
      %v2608 = vpop.f32.mrb[0].mxu0
      %2609 = vmatprep.mubr.bf16.mxu0 0
      %2610 = vmatmul.mubr.bf16.gmra.mrb[0].mxu0 %v2033
      %v2611 = vpop.f32.mrb[0].mxu0
      %v2612 = vadd.f32 %v2275, %v2611
      %v2613 = vpop.f32.mrb[0].mxu0
      %v2614 = vpop.f32.mrb[0].mxu0
      %v2615 = vadd.f32 %v2278, %v2614
      %v2616 = vpop.f32.mrb[0].mxu0
      %2617 = vmatprep.mubr.bf16.mxu0 0
      %2618 = vmatmul.mubr.bf16.gmra.mrb[0].mxu0 %v2034
      %v2619 = vpop.f32.mrb[0].mxu0
      %v2620 = vadd.f32 %v2283, %v2619
      %v2621 = vpop.f32.mrb[0].mxu0
      %v2622 = vpop.f32.mrb[0].mxu0
      %v2623 = vadd.f32 %v2286, %v2622
      %v2624 = vpop.f32.mrb[0].mxu0
      %2625 = vmatprep.mubr.bf16.mxu0 0
      %2626 = vmatmul.mubr.bf16.gmra.mrb[0].mxu0 %v2035
      %v2627 = vpop.f32.mrb[0].mxu0
      %v2628 = vadd.f32 %v2291, %v2627
      %v2629 = vpop.f32.mrb[0].mxu0
      %v2630 = vpop.f32.mrb[0].mxu0
      %v2631 = vadd.f32 %v2294, %v2630
      %v2632 = vpop.f32.mrb[0].mxu0
      %2633 = vmatprep.mubr.bf16.mxu0 0
      %2634 = vmatmul.mubr.bf16.gmra.mrb[0].mxu0 %v2036
      %v2635 = vpop.f32.mrb[0].mxu0
      %v2636 = vadd.f32 %v2299, %v2635
      %v2637 = vpop.f32.mrb[0].mxu0
      %v2638 = vpop.f32.mrb[0].mxu0
      %v2639 = vadd.f32 %v2302, %v2638
      %v2640 = vpop.f32.mrb[0].mxu0
      %2641 = vmatprep.mubr.bf16.mxu0 0
      %2642 = vmatmul.mubr.bf16.gmra.mrb[0].mxu0 %v2037
      %v2643 = vpop.f32.mrb[0].mxu0
      %v2644 = vadd.f32 %v2307, %v2643
      %v2645 = vpop.f32.mrb[0].mxu0
      %v2646 = vpop.f32.mrb[0].mxu0
      %v2647 = vadd.f32 %v2310, %v2646
      %v2648 = vpop.f32.mrb[0].mxu0
      %2649 = vmatprep.mubr.bf16.mxu0 0
      %2650 = vmatmul.mubr.bf16.gmra.mrb[0].mxu0 %v2038
      %v2651 = vpop.f32.mrb[0].mxu0
      %v2652 = vadd.f32 %v2315, %v2651
      %v2653 = vpop.f32.mrb[0].mxu0
      %v2654 = vpop.f32.mrb[0].mxu0
      %v2655 = vadd.f32 %v2318, %v2654
      %v2656 = vpop.f32.mrb[0].mxu0
      %2657 = vmatprep.mubr.bf16.mxu0 0
      %2658 = vmatmul.mubr.bf16.gmra.mrb[0].mxu0 %v2039
      %v2659 = vpop.f32.mrb[0].mxu0
      %v2660 = vadd.f32 %v2323, %v2659
      %v2661 = vpop.f32.mrb[0].mxu0
      %v2662 = vpop.f32.mrb[0].mxu0
      %v2663 = vadd.f32 %v2326, %v2662
      %v2664 = vpop.f32.mrb[0].mxu0
      %2665 = vmatprep.mubr.bf16.mxu0 0
      %2666 = vmatmul.mubr.bf16.gmra.mrb[0].mxu0 %v2040
      %v2667 = vpop.f32.mrb[0].mxu0
      %v2668 = vadd.f32 %v2331, %v2667
      %v2669 = vpop.f32.mrb[0].mxu0
      %v2670 = vpop.f32.mrb[0].mxu0
      %v2671 = vadd.f32 %v2334, %v2670
      %v2672 = vpop.f32.mrb[0].mxu0
      %2673 = vmatprep.mubr.bf16.mxu0 0
      %2674 = vmatmul.mubr.bf16.gmra.mrb[0].mxu0 %v2041
      %v2675 = vpop.f32.mrb[0].mxu0
      %v2676 = vadd.f32 %v2339, %v2675
      %v2677 = vpop.f32.mrb[0].mxu0
      %v2678 = vpop.f32.mrb[0].mxu0
      %v2679 = vadd.f32 %v2342, %v2678
      %v2680 = vpop.f32.mrb[0].mxu0
      %2681 = vmatprep.mubr.bf16.mxu0 0
      %2682 = vmatmul.mubr.bf16.gmra.mrb[0].mxu0 %v2042
      %v2683 = vpop.f32.mrb[0].mxu0
      %v2684 = vadd.f32 %v2347, %v2683
      %v2685 = vpop.f32.mrb[0].mxu0
      %v2686 = vpop.f32.mrb[0].mxu0
      %v2687 = vadd.f32 %v2350, %v2686
      %v2688 = vpop.f32.mrb[0].mxu0
      %2689 = vmatprep.mubr.bf16.mxu0 0
      %2690 = vmatmul.mubr.bf16.gmra.mrb[0].mxu0 %v2043
      %v2691 = vpop.f32.mrb[0].mxu0
      %v2692 = vadd.f32 %v2355, %v2691
      %v2693 = vpop.f32.mrb[0].mxu0
      %v2694 = vpop.f32.mrb[0].mxu0
      %v2695 = vadd.f32 %v2358, %v2694
      %v2696 = vpop.f32.mrb[0].mxu0
      %2697 = vmatprep.mubr.bf16.mxu0 0
      %2698 = vmatmul.mubr.bf16.gmra.mrb[0].mxu0 %v2044
      %v2699 = vpop.f32.mrb[0].mxu0
      %v2700 = vadd.f32 %v2363, %v2699
      %v2701 = vpop.f32.mrb[0].mxu0
      %v2702 = vpop.f32.mrb[0].mxu0
      %v2703 = vadd.f32 %v2366, %v2702
      %v2704 = vpop.f32.mrb[0].mxu0
      %2705 = vmatprep.mubr.bf16.mxu0 0
      %2706 = vmatmul.mubr.bf16.gmra.mrb[0].mxu0 %v2045
      %v2707 = vpop.f32.mrb[0].mxu0
      %v2708 = vadd.f32 %v2371, %v2707
      %v2709 = vpop.f32.mrb[0].mxu0
      %v2710 = vpop.f32.mrb[0].mxu0
      %v2711 = vadd.f32 %v2374, %v2710
      %v2712 = vpop.f32.mrb[0].mxu0
      %2713 = vmatprep.mubr.bf16.mxu0 0
      %2714 = vmatmul.mubr.bf16.gmra.mrb[0].mxu0 %v2046
      %v2715 = vpop.f32.mrb[0].mxu0
      %v2716 = vadd.f32 %v2379, %v2715
      %v2717 = vpop.f32.mrb[0].mxu0
      %v2718 = vpop.f32.mrb[0].mxu0
      %v2719 = vadd.f32 %v2382, %v2718
      %v2720 = vpop.f32.mrb[0].mxu0
      %2721 = vmatprep.mubr.bf16.mxu0 0
      %2722 = vmatmul.mubr.bf16.gmra.mrb[0].mxu0 %v2047
      %v2723 = vpop.f32.mrb[0].mxu0
      %v2724 = vadd.f32 %v2387, %v2723
      %v2725 = vpop.f32.mrb[0].mxu0
      %v2726 = vpop.f32.mrb[0].mxu0
      %v2727 = vadd.f32 %v2390, %v2726
      %v2728 = vpop.f32.mrb[0].mxu0
      %2729 = vmatprep.mubr.bf16.mxu0 0
      %2730 = vmatmul.mubr.bf16.gmra.mrb[0].mxu0 %v2048
      %v2731 = vpop.f32.mrb[0].mxu0
      %v2732 = vadd.f32 %v2395, %v2731
      %v2733 = vpop.f32.mrb[0].mxu0
      %v2734 = vpop.f32.mrb[0].mxu0
      %v2735 = vadd.f32 %v2398, %v2734
      %v2736 = vpop.f32.mrb[0].mxu0
      %2737 = vmatprep.mubr.bf16.mxu0 0
      %2738 = vmatmul.mubr.bf16.gmra.mrb[0].mxu0 %v2049
      %v2739 = vpop.f32.mrb[0].mxu0
      %v2740 = vadd.f32 %v2403, %v2739
      %v2741 = vpop.f32.mrb[0].mxu0
      %v2742 = vpop.f32.mrb[0].mxu0
      %v2743 = vadd.f32 %v2406, %v2742
      %v2744 = vpop.f32.mrb[0].mxu0
      %2745 = vmatprep.mubr.bf16.mxu0 0
      %2746 = vmatmul.mubr.bf16.gmra.mrb[0].mxu0 %v2050
      %v2747 = vpop.f32.mrb[0].mxu0
      %v2748 = vadd.f32 %v2411, %v2747
      %v2749 = vpop.f32.mrb[0].mxu0
      %v2750 = vpop.f32.mrb[0].mxu0
      %v2751 = vadd.f32 %v2414, %v2750
      %v2752 = vpop.f32.mrb[0].mxu0
      %2753 = vmatprep.mubr.bf16.mxu0 0
      %2754 = vmatmul.mubr.bf16.gmra.mrb[0].mxu0 %v2051
      %v2755 = vpop.f32.mrb[0].mxu0
      %v2756 = vadd.f32 %v2419, %v2755
      %v2757 = vpop.f32.mrb[0].mxu0
      %v2758 = vpop.f32.mrb[0].mxu0
      %v2759 = vadd.f32 %v2422, %v2758
      %v2760 = vpop.f32.mrb[0].mxu0
      %2761 = vmatprep.mubr.bf16.mxu0 0
      %2762 = vmatmul.mubr.bf16.gmra.mrb[0].mxu0 %v2052
      %v2763 = vpop.f32.mrb[0].mxu0
      %v2764 = vadd.f32 %v2427, %v2763
      %v2765 = vpop.f32.mrb[0].mxu0
      %v2766 = vpop.f32.mrb[0].mxu0
      %v2767 = vadd.f32 %v2430, %v2766
      %v2768 = vpop.f32.mrb[0].mxu0
      %2769 = vmatprep.mubr.bf16.mxu0 0
      %2770 = vmatmul.mubr.bf16.gmra.mrb[0].mxu0 %v2053
      %v2771 = vpop.f32.mrb[0].mxu0
      %v2772 = vadd.f32 %v2435, %v2771
      %v2773 = vpop.f32.mrb[0].mxu0
      %v2774 = vpop.f32.mrb[0].mxu0
      %v2775 = vadd.f32 %v2438, %v2774
      %v2776 = vpop.f32.mrb[0].mxu0
      %2777 = vmatprep.mubr.bf16.mxu0 0
      %2778 = vmatmul.mubr.bf16.gmra.mrb[0].mxu0 %v2054
      %v2779 = vpop.f32.mrb[0].mxu0
      %v2780 = vadd.f32 %v2443, %v2779
      %v2781 = vpop.f32.mrb[0].mxu0
      %v2782 = vpop.f32.mrb[0].mxu0
      %v2783 = vadd.f32 %v2446, %v2782
      %v2784 = vpop.f32.mrb[0].mxu0
      %2785 = vmatprep.mubr.bf16.mxu0 0
      %2786 = vmatmul.mubr.bf16.gmra.mrb[0].mxu0 %v2055
      %v2787 = vpop.f32.mrb[0].mxu0
      %v2788 = vadd.f32 %v2451, %v2787
      %v2789 = vpop.f32.mrb[0].mxu0
      %v2790 = vpop.f32.mrb[0].mxu0
      %v2791 = vadd.f32 %v2454, %v2790
      %v2792 = vpop.f32.mrb[0].mxu0
      %2793 = vdwg.mxu0
      %v2794 = vld [vmem:[%s7] sm:$0x1]
      %v2796 = vlaneseq
      %v2797 = vshrl.u32 %v2796, 7
      %v2798 = vsub.s32 0, %v2797
      %v2799 = vrot.slane %v2794, %v2798
      %v2801 = vadd.f32 %v2540, %v2799
      %v2802 = vadd.f32 %v2543, %v2799
      %v2803 = vadd.f32 %v2548, %v2799
      %v2804 = vadd.f32 %v2551, %v2799
      %v2805 = vadd.f32 %v2556, %v2799
      %v2806 = vadd.f32 %v2559, %v2799
      %v2807 = vadd.f32 %v2564, %v2799
      %v2808 = vadd.f32 %v2567, %v2799
      %v2809 = vadd.f32 %v2572, %v2799
      %v2810 = vadd.f32 %v2575, %v2799
      %v2811 = vadd.f32 %v2580, %v2799
      %v2812 = vadd.f32 %v2583, %v2799
      %v2813 = vadd.f32 %v2588, %v2799
      %v2814 = vadd.f32 %v2591, %v2799
      %v2815 = vadd.f32 %v2596, %v2799
      %v2816 = vadd.f32 %v2599, %v2799
      %v2817 = vadd.f32 %v2604, %v2799
      %v2818 = vadd.f32 %v2607, %v2799
      %v2819 = vadd.f32 %v2612, %v2799
      %v2820 = vadd.f32 %v2615, %v2799
      %v2821 = vadd.f32 %v2620, %v2799
      %v2822 = vadd.f32 %v2623, %v2799
      %v2823 = vadd.f32 %v2628, %v2799
      %v2824 = vadd.f32 %v2631, %v2799
      %v2825 = vadd.f32 %v2636, %v2799
      %v2826 = vadd.f32 %v2639, %v2799
      %v2827 = vadd.f32 %v2644, %v2799
      %v2828 = vadd.f32 %v2647, %v2799
      %v2829 = vadd.f32 %v2652, %v2799
      %v2830 = vadd.f32 %v2655, %v2799
      %v2831 = vadd.f32 %v2660, %v2799
      %v2832 = vadd.f32 %v2663, %v2799
      %v2833 = vadd.f32 %v2668, %v2799
      %v2834 = vadd.f32 %v2671, %v2799
      %v2835 = vadd.f32 %v2676, %v2799
      %v2836 = vadd.f32 %v2679, %v2799
      %v2837 = vadd.f32 %v2684, %v2799
      %v2838 = vadd.f32 %v2687, %v2799
      %v2839 = vadd.f32 %v2692, %v2799
      %v2840 = vadd.f32 %v2695, %v2799
      %v2841 = vadd.f32 %v2700, %v2799
      %v2842 = vadd.f32 %v2703, %v2799
      %v2843 = vadd.f32 %v2708, %v2799
      %v2844 = vadd.f32 %v2711, %v2799
      %v2845 = vadd.f32 %v2716, %v2799
      %v2846 = vadd.f32 %v2719, %v2799
      %v2847 = vadd.f32 %v2724, %v2799
      %v2848 = vadd.f32 %v2727, %v2799
      %v2849 = vadd.f32 %v2732, %v2799
      %v2850 = vadd.f32 %v2735, %v2799
      %v2851 = vadd.f32 %v2740, %v2799
      %v2852 = vadd.f32 %v2743, %v2799
      %v2853 = vadd.f32 %v2748, %v2799
      %v2854 = vadd.f32 %v2751, %v2799
      %v2855 = vadd.f32 %v2756, %v2799
      %v2856 = vadd.f32 %v2759, %v2799
      %v2857 = vadd.f32 %v2764, %v2799
      %v2858 = vadd.f32 %v2767, %v2799
      %v2859 = vadd.f32 %v2772, %v2799
      %v2860 = vadd.f32 %v2775, %v2799
      %v2861 = vadd.f32 %v2780, %v2799
      %v2862 = vadd.f32 %v2783, %v2799
      %v2863 = vadd.f32 %v2788, %v2799
      %v2864 = vadd.f32 %v2791, %v2799
      %v2865 = vmax.f32 %v2801, 0.0
      %v2866 = vmax.f32 %v2802, 0.0
      %v2867 = vmax.f32 %v2803, 0.0
      %v2868 = vmax.f32 %v2804, 0.0
      %v2869 = vmax.f32 %v2805, 0.0
      %v2870 = vmax.f32 %v2806, 0.0
      %v2871 = vmax.f32 %v2807, 0.0
      %v2872 = vmax.f32 %v2808, 0.0
      %v2873 = vmax.f32 %v2809, 0.0
      %v2874 = vmax.f32 %v2810, 0.0
      %v2875 = vmax.f32 %v2811, 0.0
      %v2876 = vmax.f32 %v2812, 0.0
      %v2877 = vmax.f32 %v2813, 0.0
      %v2878 = vmax.f32 %v2814, 0.0
      %v2879 = vmax.f32 %v2815, 0.0
      %v2880 = vmax.f32 %v2816, 0.0
      %v2881 = vmax.f32 %v2817, 0.0
      %v2882 = vmax.f32 %v2818, 0.0
      %v2883 = vmax.f32 %v2819, 0.0
      %v2884 = vmax.f32 %v2820, 0.0
      %v2885 = vmax.f32 %v2821, 0.0
      %v2886 = vmax.f32 %v2822, 0.0
      %v2887 = vmax.f32 %v2823, 0.0
      %v2888 = vmax.f32 %v2824, 0.0
      %v2889 = vmax.f32 %v2825, 0.0
      %v2890 = vmax.f32 %v2826, 0.0
      %v2891 = vmax.f32 %v2827, 0.0
      %v2892 = vmax.f32 %v2828, 0.0
      %v2893 = vmax.f32 %v2829, 0.0
      %v2894 = vmax.f32 %v2830, 0.0
      %v2895 = vmax.f32 %v2831, 0.0
      %v2896 = vmax.f32 %v2832, 0.0
      %v2897 = vmax.f32 %v2833, 0.0
      %v2898 = vmax.f32 %v2834, 0.0
      %v2899 = vmax.f32 %v2835, 0.0
      %v2900 = vmax.f32 %v2836, 0.0
      %v2901 = vmax.f32 %v2837, 0.0
      %v2902 = vmax.f32 %v2838, 0.0
      %v2903 = vmax.f32 %v2839, 0.0
      %v2904 = vmax.f32 %v2840, 0.0
      %v2905 = vmax.f32 %v2841, 0.0
      %v2906 = vmax.f32 %v2842, 0.0
      %v2907 = vmax.f32 %v2843, 0.0
      %v2908 = vmax.f32 %v2844, 0.0
      %v2909 = vmax.f32 %v2845, 0.0
      %v2910 = vmax.f32 %v2846, 0.0
      %v2911 = vmax.f32 %v2847, 0.0
      %v2912 = vmax.f32 %v2848, 0.0
      %v2913 = vmax.f32 %v2849, 0.0
      %v2914 = vmax.f32 %v2850, 0.0
      %v2915 = vmax.f32 %v2851, 0.0
      %v2916 = vmax.f32 %v2852, 0.0
      %v2917 = vmax.f32 %v2853, 0.0
      %v2918 = vmax.f32 %v2854, 0.0
      %v2919 = vmax.f32 %v2855, 0.0
      %v2920 = vmax.f32 %v2856, 0.0
      %v2921 = vmax.f32 %v2857, 0.0
      %v2922 = vmax.f32 %v2858, 0.0
      %v2923 = vmax.f32 %v2859, 0.0
      %v2924 = vmax.f32 %v2860, 0.0
      %v2925 = vmax.f32 %v2861, 0.0
      %v2926 = vmax.f32 %v2862, 0.0
      %v2927 = vmax.f32 %v2863, 0.0
      %v2928 = vmax.f32 %v2864, 0.0
      %2929 = vst [vmem:[#allocation3] sm:$0xff] %v2865
      %2930 = vst [vmem:[#allocation3 + $0x8] sm:$0xff] %v2866
      %2931 = vst [vmem:[#allocation3 + $0x10] sm:$0xff] %v2867
      %2932 = vst [vmem:[#allocation3 + $0x18] sm:$0xff] %v2868
      %2933 = vst [vmem:[#allocation3 + $0x20] sm:$0xff] %v2869
      %2934 = vst [vmem:[#allocation3 + $0x28] sm:$0xff] %v2870
      %2935 = vst [vmem:[#allocation3 + $0x30] sm:$0xff] %v2871
      %2936 = vst [vmem:[#allocation3 + $0x38] sm:$0xff] %v2872
      %2937 = vst [vmem:[#allocation3 + $0x40] sm:$0xff] %v2873
      %2938 = vst [vmem:[#allocation3 + $0x48] sm:$0xff] %v2874
      %2939 = vst [vmem:[#allocation3 + $0x50] sm:$0xff] %v2875
      %2940 = vst [vmem:[#allocation3 + $0x58] sm:$0xff] %v2876
      %2941 = vst [vmem:[#allocation3 + $0x60] sm:$0xff] %v2877
      %2942 = vst [vmem:[#allocation3 + $0x68] sm:$0xff] %v2878
      %2943 = vst [vmem:[#allocation3 + $0x70] sm:$0xff] %v2879
      %2944 = vst [vmem:[#allocation3 + $0x78] sm:$0xff] %v2880
      %2945 = vst [vmem:[#allocation3 + $0x80] sm:$0xff] %v2881
      %2946 = vst [vmem:[#allocation3 + $0x88] sm:$0xff] %v2882
      %2947 = vst [vmem:[#allocation3 + $0x90] sm:$0xff] %v2883
      %2948 = vst [vmem:[#allocation3 + $0x98] sm:$0xff] %v2884
      %2949 = vst [vmem:[#allocation3 + $0xa0] sm:$0xff] %v2885
      %2950 = vst [vmem:[#allocation3 + $0xa8] sm:$0xff] %v2886
      %2951 = vst [vmem:[#allocation3 + $0xb0] sm:$0xff] %v2887
      %2952 = vst [vmem:[#allocation3 + $0xb8] sm:$0xff] %v2888
      %2953 = vst [vmem:[#allocation3 + $0xc0] sm:$0xff] %v2889
      %2954 = vst [vmem:[#allocation3 + $0xc8] sm:$0xff] %v2890
      %2955 = vst [vmem:[#allocation3 + $0xd0] sm:$0xff] %v2891
      %2956 = vst [vmem:[#allocation3 + $0xd8] sm:$0xff] %v2892
      %2957 = vst [vmem:[#allocation3 + $0xe0] sm:$0xff] %v2893
      %2958 = vst [vmem:[#allocation3 + $0xe8] sm:$0xff] %v2894
      %2959 = vst [vmem:[#allocation3 + $0xf0] sm:$0xff] %v2895
      %2960 = vst [vmem:[#allocation3 + $0xf8] sm:$0xff] %v2896
      %2961 = vst [vmem:[#allocation3 + $0x100] sm:$0xff] %v2897
      %2962 = vst [vmem:[#allocation3 + $0x108] sm:$0xff] %v2898
      %2963 = vst [vmem:[#allocation3 + $0x110] sm:$0xff] %v2899
      %2964 = vst [vmem:[#allocation3 + $0x118] sm:$0xff] %v2900
      %2965 = vst [vmem:[#allocation3 + $0x120] sm:$0xff] %v2901
      %2966 = vst [vmem:[#allocation3 + $0x128] sm:$0xff] %v2902
      %2967 = vst [vmem:[#allocation3 + $0x130] sm:$0xff] %v2903
      %2968 = vst [vmem:[#allocation3 + $0x138] sm:$0xff] %v2904
      %2969 = vst [vmem:[#allocation3 + $0x140] sm:$0xff] %v2905
      %2970 = vst [vmem:[#allocation3 + $0x148] sm:$0xff] %v2906
      %2971 = vst [vmem:[#allocation3 + $0x150] sm:$0xff] %v2907
      %2972 = vst [vmem:[#allocation3 + $0x158] sm:$0xff] %v2908
      %2973 = vst [vmem:[#allocation3 + $0x160] sm:$0xff] %v2909
      %2974 = vst [vmem:[#allocation3 + $0x168] sm:$0xff] %v2910
      %2975 = vst [vmem:[#allocation3 + $0x170] sm:$0xff] %v2911
      %2976 = vst [vmem:[#allocation3 + $0x178] sm:$0xff] %v2912
      %2977 = vst [vmem:[#allocation3 + $0x180] sm:$0xff] %v2913
      %2978 = vst [vmem:[#allocation3 + $0x188] sm:$0xff] %v2914
      %2979 = vst [vmem:[#allocation3 + $0x190] sm:$0xff] %v2915
      %2980 = vst [vmem:[#allocation3 + $0x198] sm:$0xff] %v2916
      %2981 = vst [vmem:[#allocation3 + $0x1a0] sm:$0xff] %v2917
      %2982 = vst [vmem:[#allocation3 + $0x1a8] sm:$0xff] %v2918
      %2983 = vst [vmem:[#allocation3 + $0x1b0] sm:$0xff] %v2919
      %2984 = vst [vmem:[#allocation3 + $0x1b8] sm:$0xff] %v2920
      %2985 = vst [vmem:[#allocation3 + $0x1c0] sm:$0xff] %v2921
      %2986 = vst [vmem:[#allocation3 + $0x1c8] sm:$0xff] %v2922
      %2987 = vst [vmem:[#allocation3 + $0x1d0] sm:$0xff] %v2923
      %2988 = vst [vmem:[#allocation3 + $0x1d8] sm:$0xff] %v2924
      %2989 = vst [vmem:[#allocation3 + $0x1e0] sm:$0xff] %v2925
      %2990 = vst [vmem:[#allocation3 + $0x1e8] sm:$0xff] %v2926
      %2991 = vst [vmem:[#allocation3 + $0x1f0] sm:$0xff] %v2927
      %2992 = vst [vmem:[#allocation3 + $0x1f8] sm:$0xff] %v2928
    $region41: #{_sage_cv_layer_impl.1} parent=1 // pred_fallthru
      _
    // Predicated region
    $region42: #{_sage_cv_layer_impl.1} parent=1 // pred_check
      _
    $region43: #{_sage_cv_layer_impl.1} parent=1 // pred_check_branch
      %2994 = sbr.rel (0) target = $region45
    $region44: #{_sage_cv_layer_impl.1} parent=1 // pred_region
      %s2996 = ssub.s32 8192, 8192
      %2997 = vsyncadd [#allocation4], %s2996
      %s2998 = sshll.u32 [#allocation3], 4
      %s2999 = int_to_ptr.vmem [resolvable:$true] %s2998
      %3004 = dma.vmem_to_hbm [thread:$0]  %s2999, 8192, %s8, [#allocation4], 128, 128, 8
    $region45: #{_sage_cv_layer_impl.1} parent=1 // pred_fallthru
      _
    // Predicated region
    $region46: #{_sage_cv_layer_impl.1} parent=1 // pred_check
      _
    $region47: #{_sage_cv_layer_impl.1} parent=1 // pred_check_branch
      %3006 = sbr.rel (0) target = $region49
    $region48: #{_sage_cv_layer_impl.1} parent=1 // pred_region
      %3007 = dma.done [#allocation4], 8192
    $region49: #{_sage_cv_layer_impl.1} parent=1 // pred_fallthru
      _
    %3008 = vsyncpa [#allocation4], 1

</llo_original>
